<compile_context>
chip_gen: v6e
topology: v6e:2x2x1
jax: 0.10.0
libtpu: 0.0.40
codegen_flags: <defaults>
</compile_context>

<pallas_src>
import math

import jax
import jax.numpy as jnp
from jax.experimental import pallas as pl
from jax.experimental.pallas import tpu as pltpu


# ----------------------------- fused kernel --------------------------------

def _make_fused_kernel(x_dim, y_dim, r_dim, z_dim, h_dim, scale):
    f32 = jnp.float32

    def dot(a, b):
        return jnp.dot(a, b, preferred_element_type=f32)

    def kernel(x_ctx_ref, y_ctx_ref, x_tgt_ref, eps_ref,
               # DeterministicEncoder (first layer split x/y)
               wd0x, wd0y, bd0, wd1, bd1, wd2, bd2,
               # LatentEncoder (first layer split x/y)
               wl0x, wl0y, bl0, wl1, bl1, wl2, bl2,
               # GaussianEncoder
               wgh, bgh, wgm, bgm, wgs, bgs,
               # Decoder (first layer split x/r/z, merged mu|sigma head)
               we0x, we0r, we0z, be0, we1, be1, we2, be2, weh, beh,
               # outputs
               dec_out_ref, z_out_ref):
        xc = x_ctx_ref[0].astype(f32)          # (C, x_dim)
        yc = y_ctx_ref[0].astype(f32)          # (C, y_dim)
        xt = x_tgt_ref[0].astype(f32)          # (T, x_dim)
        eps = eps_ref[0].astype(f32)           # (1, z_dim)

        # ---- DeterministicEncoder MLP (no input concat needed) -------------
        h = jnp.maximum(dot(xc, wd0x[...]) + dot(yc, wd0y[...]) + bd0[...], 0.0)
        h = jnp.maximum(dot(h, wd1[...]) + bd1[...], 0.0)
        hidden = dot(h, wd2[...]) + bd2[...]                     # (C, r_dim)

        # ---- scaled dot-product cross-attention -----------------------------
        s = jax.lax.dot_general(xt, xc, (((1,), (1,)), ((), ())),
                                preferred_element_type=f32) * scale   # (T, C)
        s = s - jnp.max(s, axis=-1, keepdims=True)
        w = jnp.exp(s)
        w = w * pl.reciprocal(jnp.sum(w, axis=-1, keepdims=True), approx=True)
        r = dot(w, hidden)                                       # (T, r_dim)

        # ---- LatentEncoder MLP + mean over context points -------------------
        g = jnp.maximum(dot(xc, wl0x[...]) + dot(yc, wl0y[...]) + bl0[...], 0.0)
        g = jnp.maximum(dot(g, wl1[...]) + bl1[...], 0.0)
        s_i = dot(g, wl2[...]) + bl2[...]                        # (C, h_dim)
        s_ctx = jnp.mean(s_i, axis=0, keepdims=True)             # (1, h_dim)

        # ---- GaussianEncoder + rsample (prior) -------------------------------
        hg = jnp.maximum(dot(s_ctx, wgh[...]) + bgh[...], 0.0)
        z_mu = dot(hg, wgm[...]) + bgm[...]                      # (1, z_dim)
        z_sigma = 0.1 + 0.9 * jax.nn.sigmoid(dot(hg, wgs[...]) + bgs[...])
        z = z_mu + z_sigma * eps                                 # (1, z_dim)
        z_out_ref[0] = jnp.concatenate([z_mu, z_sigma], axis=-1
                                       ).astype(z_out_ref.dtype)  # (1, 2*z)

        # ---- Decoder (z broadcast over T inside the kernel) ------------------
        hd = jnp.maximum(dot(xt, we0x[...]) + dot(r, we0r[...])
                         + dot(z, we0z[...]) + be0[...], 0.0)    # (T, h_dim)
        hd = jnp.maximum(dot(hd, we1[...]) + be1[...], 0.0)
        hd = jnp.maximum(dot(hd, we2[...]) + be2[...], 0.0)
        pre = dot(hd, weh[...]) + beh[...]                       # (T, 2*y_dim)
        # first y_dim lanes = mu (identity); last y_dim lanes = sigma transform
        col = jax.lax.broadcasted_iota(jnp.int32, pre.shape, 1)
        sig = 0.1 + 0.9 * jax.nn.softplus(pre)
        dec_out_ref[0] = jnp.where(col < y_dim, pre, sig).astype(dec_out_ref.dtype)

    return kernel


# --------------------------- parameter packing ------------------------------

def _prep_params(params, x_dim, y_dim, r_dim, z_dim, h_dim):
    """Flatten / split / merge PyTorch-layout params for the fused kernel."""
    (wd0, bd0), (wd1, bd1), (wd2, bd2) = params['det']
    (wl0, bl0), (wl1, bl1), (wl2, bl2) = params['lat']
    (wgh, bgh), (wgm, bgm), (wgs, bgs) = params['gauss']
    (we0, be0), (we1, be1), (we2, be2), (wem, bem), (wes, bes) = params['dec']
    flat = [
        # det encoder: split first-layer weight row-wise into x / y parts
        wd0[:x_dim], wd0[x_dim:], bd0, wd1, bd1, wd2, bd2,
        # latent encoder
        wl0[:x_dim], wl0[x_dim:], bl0, wl1, bl1, wl2, bl2,
        # gaussian encoder
        wgh, bgh, wgm, bgm, wgs, bgs,
        # decoder: split first-layer weight into x / r / z parts, merge heads
        we0[:x_dim], we0[x_dim:x_dim + r_dim], we0[x_dim + r_dim:], be0,
        we1, be1, we2, be2,
        jnp.concatenate([wem, wes], axis=1),
        jnp.concatenate([bem, bes], axis=1),
    ]
    return flat


# ------------------------------ ANP forward ---------------------------------

def anp_forward_eval(params, x_context, y_context, x_target, eps,
                     x_dim, y_dim, r_dim, z_dim, h_dim):
    B, C, _ = x_context.shape
    T = x_target.shape[1]
    scale = 1.0 / math.sqrt(x_dim)

    flat = _prep_params(params, x_dim, y_dim, r_dim, z_dim, h_dim)
    eps3 = eps.reshape(B, 1, z_dim)

    def pinned(a):
        nd = a.ndim
        return pl.BlockSpec(a.shape, lambda b, _nd=nd: (0,) * _nd)

    in_specs = [
        pl.BlockSpec((1, C, x_dim), lambda b: (b, 0, 0)),
        pl.BlockSpec((1, C, y_dim), lambda b: (b, 0, 0)),
        pl.BlockSpec((1, T, x_dim), lambda b: (b, 0, 0)),
        pl.BlockSpec((1, 1, z_dim), lambda b: (b, 0, 0)),
    ] + [pinned(a) for a in flat]

    out_specs = (
        pl.BlockSpec((1, T, 2 * y_dim), lambda b: (b, 0, 0)),
        pl.BlockSpec((1, 1, 2 * z_dim), lambda b: (b, 0, 0)),
    )
    out_shape = (
        jax.ShapeDtypeStruct((B, T, 2 * y_dim), jnp.float32),
        jax.ShapeDtypeStruct((B, 1, 2 * z_dim), jnp.float32),
    )

    dec_out, z_out = pl.pallas_call(
        _make_fused_kernel(x_dim, y_dim, r_dim, z_dim, h_dim, scale),
        grid=(B,),
        in_specs=in_specs,
        out_specs=out_specs,
        out_shape=out_shape,
        compiler_params=pltpu.CompilerParams(
            dimension_semantics=("parallel",)),
    )(x_context, y_context, x_target, eps3, *flat)

    mu = dec_out[..., :y_dim]
    sigma = dec_out[..., y_dim:]
    z_mu = z_out[:, 0, :z_dim]
    z_sigma = z_out[:, 0, z_dim:]
    return mu, sigma, z_mu, z_sigma


# ----------------------------- parameter setup -----------------------------

def _init_linear(key, fan_in, fan_out):
    """PyTorch nn.Linear default init: U(-1/sqrt(fan_in), 1/sqrt(fan_in))."""
    kw, kb = jax.random.split(key)
    bound = 1.0 / math.sqrt(fan_in)
    w = jax.random.uniform(kw, (fan_in, fan_out), jnp.float32, -bound, bound)
    b = jax.random.uniform(kb, (1, fan_out), jnp.float32, -bound, bound)
    return w, b


def init_anp_params(key, x_dim, y_dim, r_dim, z_dim, h_dim):
    keys = jax.random.split(key, 16)
    ki = iter(keys)
    params = {
        # DeterministicEncoder.input_to_hidden: (x+y)->h->h->r
        'det': [_init_linear(next(ki), x_dim + y_dim, h_dim),
                _init_linear(next(ki), h_dim, h_dim),
                _init_linear(next(ki), h_dim, r_dim)],
        # LatentEncoder.input_to_s: (x+y)->h->h->h
        'lat': [_init_linear(next(ki), x_dim + y_dim, h_dim),
                _init_linear(next(ki), h_dim, h_dim),
                _init_linear(next(ki), h_dim, h_dim)],
        # GaussianEncoder: s(=h)->h, h->z (mu), h->z (sigma)
        'gauss': [_init_linear(next(ki), h_dim, h_dim),
                  _init_linear(next(ki), h_dim, z_dim),
                  _init_linear(next(ki), h_dim, z_dim)],
        # Decoder: (x+r+z)->h->h->h, heads h->y (mu), h->y (sigma)
        'dec': [_init_linear(next(ki), x_dim + r_dim + z_dim, h_dim),
                _init_linear(next(ki), h_dim, h_dim),
                _init_linear(next(ki), h_dim, h_dim),
                _init_linear(next(ki), h_dim, y_dim),
                _init_linear(next(ki), h_dim, y_dim)],
    }
    return params


# ------------------------- pure-JAX reference ------------------------------

def _ref_forward(params, x_context, y_context, x_target, eps):
    def lin(x, wb, relu=False):
        h = x @ wb[0] + wb[1]
        return jnp.maximum(h, 0.0) if relu else h

    B, C, x_dim = x_context.shape
    T = x_target.shape[1]

    xy_c = jnp.concatenate([x_context, y_context], axis=-1)
    h = lin(lin(lin(xy_c.reshape(B * C, -1), params['det'][0], True),
                params['det'][1], True), params['det'][2])
    hidden = h.reshape(B, C, -1)
    scale = 1.0 / math.sqrt(x_dim)
    scores = jnp.einsum('btd,bcd->btc', x_target, x_context) * scale
    w = jax.nn.softmax(scores, axis=-1)
    r = jnp.einsum('btc,bcr->btr', w, hidden)

    s_i = lin(lin(lin(xy_c, params['lat'][0], True), params['lat'][1], True),
              params['lat'][2])
    s = jnp.mean(s_i, axis=1)

    hg = lin(s, params['gauss'][0], True)
    z_mu = lin(hg, params['gauss'][1])
    z_sigma = 0.1 + 0.9 * jax.nn.sigmoid(lin(hg, params['gauss'][2]))
    z = z_mu + z_sigma * eps

    z_rep = jnp.broadcast_to(z[:, None, :], (B, T, z.shape[-1]))
    dec_in = jnp.concatenate([x_target, r, z_rep], axis=-1).reshape(B * T, -1)
    hd = lin(lin(lin(dec_in, params['dec'][0], True), params['dec'][1], True),
             params['dec'][2], True)
    mu = lin(hd, params['dec'][3]).reshape(B, T, -1)
    sigma = (0.1 + 0.9 * jax.nn.softplus(lin(hd, params['dec'][4]))).reshape(B, T, -1)
    return mu, sigma, z_mu, z_sigma


# ---------------------------------- main ------------------------------------

if __name__ == "__main__":
    # r_dim == z_dim == h_dim is required by the reference module's .view calls.
    x_dim, y_dim = 2, 1
    h_dim = r_dim = z_dim = 32
    batch, num_context, num_target = 2, 8, 16

    key = jax.random.PRNGKey(0)
    kp, kxc, kyc, kxt, keps = jax.random.split(key, 5)

    params = init_anp_params(kp, x_dim, y_dim, r_dim, z_dim, h_dim)

    x_context = jax.random.normal(kxc, (batch, num_context, x_dim), jnp.float32)
    y_context = jax.random.normal(kyc, (batch, num_context, y_dim), jnp.float32)
    x_target = jax.random.normal(kxt, (batch, num_target, x_dim), jnp.float32)
    eps = jax.random.normal(keps, (batch, z_dim), jnp.float32)  # rsample noise

    mu, sigma, z_mu, z_sigma = jax.block_until_ready(
        anp_forward_eval(params, x_context, y_context, x_target, eps,
                         x_dim, y_dim, r_dim, z_dim, h_dim))

    # Validate against the pure-JAX reference.  Tolerance loosened slightly vs
    # the previous version because the softmax now uses the EUP approximate
    # reciprocal.
    mu_r, sigma_r, z_mu_r, z_sigma_r = _ref_forward(
        params, x_context, y_context, x_target, eps)
    assert mu.shape == (batch, num_target, y_dim)
    assert sigma.shape == (batch, num_target, y_dim)
    assert z_mu.shape == (batch, z_dim) and z_sigma.shape == (batch, z_dim)
    for a, b in [(mu, mu_r), (sigma, sigma_r), (z_mu, z_mu_r), (z_sigma, z_sigma_r)]:
        assert jnp.allclose(a, b, atol=2e-3, rtol=2e-3), "mismatch vs reference"

    print("KERNEL_OK")
</pallas_src>

<mosaic_0001>
module attributes {stable_mosaic.version = 11 : i64} {
  func.func @kernel(%arg0: i32, %arg1: memref<1x8x2xf32, #tpu.memory_space<vmem>>, %arg2: memref<1x8x1xf32, #tpu.memory_space<vmem>>, %arg3: memref<1x16x2xf32, #tpu.memory_space<vmem>>, %arg4: memref<1x1x32xf32, #tpu.memory_space<vmem>>, %arg5: memref<2x32xf32, #tpu.memory_space<vmem>>, %arg6: memref<1x32xf32, #tpu.memory_space<vmem>>, %arg7: memref<1x32xf32, #tpu.memory_space<vmem>>, %arg8: memref<32x32xf32, #tpu.memory_space<vmem>>, %arg9: memref<1x32xf32, #tpu.memory_space<vmem>>, %arg10: memref<32x32xf32, #tpu.memory_space<vmem>>, %arg11: memref<1x32xf32, #tpu.memory_space<vmem>>, %arg12: memref<2x32xf32, #tpu.memory_space<vmem>>, %arg13: memref<1x32xf32, #tpu.memory_space<vmem>>, %arg14: memref<1x32xf32, #tpu.memory_space<vmem>>, %arg15: memref<32x32xf32, #tpu.memory_space<vmem>>, %arg16: memref<1x32xf32, #tpu.memory_space<vmem>>, %arg17: memref<32x32xf32, #tpu.memory_space<vmem>>, %arg18: memref<1x32xf32, #tpu.memory_space<vmem>>, %arg19: memref<32x32xf32, #tpu.memory_space<vmem>>, %arg20: memref<1x32xf32, #tpu.memory_space<vmem>>, %arg21: memref<32x32xf32, #tpu.memory_space<vmem>>, %arg22: memref<1x32xf32, #tpu.memory_space<vmem>>, %arg23: memref<32x32xf32, #tpu.memory_space<vmem>>, %arg24: memref<1x32xf32, #tpu.memory_space<vmem>>, %arg25: memref<2x32xf32, #tpu.memory_space<vmem>>, %arg26: memref<32x32xf32, #tpu.memory_space<vmem>>, %arg27: memref<32x32xf32, #tpu.memory_space<vmem>>, %arg28: memref<1x32xf32, #tpu.memory_space<vmem>>, %arg29: memref<32x32xf32, #tpu.memory_space<vmem>>, %arg30: memref<1x32xf32, #tpu.memory_space<vmem>>, %arg31: memref<32x32xf32, #tpu.memory_space<vmem>>, %arg32: memref<1x32xf32, #tpu.memory_space<vmem>>, %arg33: memref<32x2xf32, #tpu.memory_space<vmem>>, %arg34: memref<1x2xf32, #tpu.memory_space<vmem>>, %arg35: memref<1x16x2xf32, #tpu.memory_space<vmem>>, %arg36: memref<1x1x64xf32, #tpu.memory_space<vmem>>) attributes {dimension_semantics = [#tpu.dimension_semantics<parallel>], iteration_bounds = array<i64: 2>, scalar_prefetch = 0 : i64, scratch_operands = 0 : i64, tpu.core_type = #tpu.core_type<tc>, window_params = [{transform_indices = @transform_0, window_bounds = array<i64: 1, 8, 2>}, {transform_indices = @transform_1, window_bounds = array<i64: 1, 8, 1>}, {transform_indices = @transform_2, window_bounds = array<i64: 1, 16, 2>}, {transform_indices = @transform_3, window_bounds = array<i64: 1, 1, 32>}, {pipeline_mode = #tpu.pipeline_mode<synchronous>, transform_indices = @transform_4, window_bounds = array<i64: 2, 32>}, {pipeline_mode = #tpu.pipeline_mode<synchronous>, transform_indices = @transform_5, window_bounds = array<i64: 1, 32>}, {pipeline_mode = #tpu.pipeline_mode<synchronous>, transform_indices = @transform_6, window_bounds = array<i64: 1, 32>}, {pipeline_mode = #tpu.pipeline_mode<synchronous>, transform_indices = @transform_7, window_bounds = array<i64: 32, 32>}, {pipeline_mode = #tpu.pipeline_mode<synchronous>, transform_indices = @transform_8, window_bounds = array<i64: 1, 32>}, {pipeline_mode = #tpu.pipeline_mode<synchronous>, transform_indices = @transform_9, window_bounds = array<i64: 32, 32>}, {pipeline_mode = #tpu.pipeline_mode<synchronous>, transform_indices = @transform_10, window_bounds = array<i64: 1, 32>}, {pipeline_mode = #tpu.pipeline_mode<synchronous>, transform_indices = @transform_11, window_bounds = array<i64: 2, 32>}, {pipeline_mode = #tpu.pipeline_mode<synchronous>, transform_indices = @transform_12, window_bounds = array<i64: 1, 32>}, {pipeline_mode = #tpu.pipeline_mode<synchronous>, transform_indices = @transform_13, window_bounds = array<i64: 1, 32>}, {pipeline_mode = #tpu.pipeline_mode<synchronous>, transform_indices = @transform_14, window_bounds = array<i64: 32, 32>}, {pipeline_mode = #tpu.pipeline_mode<synchronous>, transform_indices = @transform_15, window_bounds = array<i64: 1, 32>}, {pipeline_mode = #tpu.pipeline_mode<synchronous>, transform_indices = @transform_16, window_bounds = array<i64: 32, 32>}, {pipeline_mode = #tpu.pipeline_mode<synchronous>, transform_indices = @transform_17, window_bounds = array<i64: 1, 32>}, {pipeline_mode = #tpu.pipeline_mode<synchronous>, transform_indices = @transform_18, window_bounds = array<i64: 32, 32>}, {pipeline_mode = #tpu.pipeline_mode<synchronous>, transform_indices = @transform_19, window_bounds = array<i64: 1, 32>}, {pipeline_mode = #tpu.pipeline_mode<synchronous>, transform_indices = @transform_20, window_bounds = array<i64: 32, 32>}, {pipeline_mode = #tpu.pipeline_mode<synchronous>, transform_indices = @transform_21, window_bounds = array<i64: 1, 32>}, {pipeline_mode = #tpu.pipeline_mode<synchronous>, transform_indices = @transform_22, window_bounds = array<i64: 32, 32>}, {pipeline_mode = #tpu.pipeline_mode<synchronous>, transform_indices = @transform_23, window_bounds = array<i64: 1, 32>}, {pipeline_mode = #tpu.pipeline_mode<synchronous>, transform_indices = @transform_24, window_bounds = array<i64: 2, 32>}, {pipeline_mode = #tpu.pipeline_mode<synchronous>, transform_indices = @transform_25, window_bounds = array<i64: 32, 32>}, {pipeline_mode = #tpu.pipeline_mode<synchronous>, transform_indices = @transform_26, window_bounds = array<i64: 32, 32>}, {pipeline_mode = #tpu.pipeline_mode<synchronous>, transform_indices = @transform_27, window_bounds = array<i64: 1, 32>}, {pipeline_mode = #tpu.pipeline_mode<synchronous>, transform_indices = @transform_28, window_bounds = array<i64: 32, 32>}, {pipeline_mode = #tpu.pipeline_mode<synchronous>, transform_indices = @transform_29, window_bounds = array<i64: 1, 32>}, {pipeline_mode = #tpu.pipeline_mode<synchronous>, transform_indices = @transform_30, window_bounds = array<i64: 32, 32>}, {pipeline_mode = #tpu.pipeline_mode<synchronous>, transform_indices = @transform_31, window_bounds = array<i64: 1, 32>}, {pipeline_mode = #tpu.pipeline_mode<synchronous>, transform_indices = @transform_32, window_bounds = array<i64: 32, 2>}, {pipeline_mode = #tpu.pipeline_mode<synchronous>, transform_indices = @transform_33, window_bounds = array<i64: 1, 2>}, {transform_indices = @transform_34, window_bounds = array<i64: 1, 16, 2>}, {transform_indices = @transform_35, window_bounds = array<i64: 1, 1, 64>}]} {
    %c0 = arith.constant 0 : index
    %c0_0 = arith.constant 0 : index
    %c0_1 = arith.constant 0 : index
    %0 = vector.load %arg1[%c0, %c0_0, %c0_1] : memref<1x8x2xf32, #tpu.memory_space<vmem>>, vector<1x8x2xf32>
    %1 = vector.shape_cast %0 : vector<1x8x2xf32> to vector<8x2xf32>
    %c0_2 = arith.constant 0 : index
    %c0_3 = arith.constant 0 : index
    %c0_4 = arith.constant 0 : index
    %2 = vector.load %arg2[%c0_2, %c0_3, %c0_4] : memref<1x8x1xf32, #tpu.memory_space<vmem>>, vector<1x8x1xf32>
    %3 = vector.shape_cast %2 : vector<1x8x1xf32> to vector<8x1xf32>
    %c0_5 = arith.constant 0 : index
    %c0_6 = arith.constant 0 : index
    %c0_7 = arith.constant 0 : index
    %4 = vector.load %arg3[%c0_5, %c0_6, %c0_7] : memref<1x16x2xf32, #tpu.memory_space<vmem>>, vector<1x16x2xf32>
    %5 = vector.shape_cast %4 : vector<1x16x2xf32> to vector<16x2xf32>
    %c0_8 = arith.constant 0 : index
    %c0_9 = arith.constant 0 : index
    %c0_10 = arith.constant 0 : index
    %6 = vector.load %arg4[%c0_8, %c0_9, %c0_10] : memref<1x1x32xf32, #tpu.memory_space<vmem>>, vector<1x1x32xf32>
    %7 = vector.shape_cast %6 : vector<1x1x32xf32> to vector<1x32xf32>
    %c0_11 = arith.constant 0 : index
    %c0_12 = arith.constant 0 : index
    %8 = vector.load %arg5[%c0_11, %c0_12] : memref<2x32xf32, #tpu.memory_space<vmem>>, vector<2x32xf32>
    %cst = arith.constant dense<0.000000e+00> : vector<8x32xf32>
    %9 = tpu.matmul %1, %8, %cst {dimension_numbers = #tpu.dot_dimension_numbers<[1], [0], [0], [1], [0, 0, 1, 1], [], []>} : vector<8x2xf32>, vector<2x32xf32>, vector<8x32xf32> -> vector<8x32xf32>
    %c0_13 = arith.constant 0 : index
    %c0_14 = arith.constant 0 : index
    %10 = vector.load %arg6[%c0_13, %c0_14] : memref<1x32xf32, #tpu.memory_space<vmem>>, vector<1x32xf32>
    %cst_15 = arith.constant dense<0.000000e+00> : vector<8x32xf32>
    %11 = tpu.matmul %3, %10, %cst_15 {dimension_numbers = #tpu.dot_dimension_numbers<[1], [0], [0], [1], [0, 0, 1, 1], [], []>} : vector<8x1xf32>, vector<1x32xf32>, vector<8x32xf32> -> vector<8x32xf32>
    %12 = arith.addf %9, %11 : vector<8x32xf32>
    %c0_16 = arith.constant 0 : index
    %c0_17 = arith.constant 0 : index
    %13 = vector.load %arg7[%c0_16, %c0_17] : memref<1x32xf32, #tpu.memory_space<vmem>>, vector<1x32xf32>
    %14 = vector.broadcast %13 : vector<1x32xf32> to vector<8x32xf32>
    %15 = arith.addf %12, %14 : vector<8x32xf32>
    %cst_18 = arith.constant 0.000000e+00 : f32
    %16 = vector.broadcast %cst_18 : f32 to vector<8x32xf32>
    %17 = arith.maximumf %15, %16 : vector<8x32xf32>
    %c0_19 = arith.constant 0 : index
    %c0_20 = arith.constant 0 : index
    %18 = vector.load %arg8[%c0_19, %c0_20] : memref<32x32xf32, #tpu.memory_space<vmem>>, vector<32x32xf32>
    %cst_21 = arith.constant dense<0.000000e+00> : vector<8x32xf32>
    %19 = tpu.matmul %17, %18, %cst_21 {dimension_numbers = #tpu.dot_dimension_numbers<[1], [0], [0], [1], [0, 0, 1, 1], [], []>} : vector<8x32xf32>, vector<32x32xf32>, vector<8x32xf32> -> vector<8x32xf32>
    %c0_22 = arith.constant 0 : index
    %c0_23 = arith.constant 0 : index
    %20 = vector.load %arg9[%c0_22, %c0_23] : memref<1x32xf32, #tpu.memory_space<vmem>>, vector<1x32xf32>
    %21 = vector.broadcast %20 : vector<1x32xf32> to vector<8x32xf32>
    %22 = arith.addf %19, %21 : vector<8x32xf32>
    %cst_24 = arith.constant 0.000000e+00 : f32
    %23 = vector.broadcast %cst_24 : f32 to vector<8x32xf32>
    %24 = arith.maximumf %22, %23 : vector<8x32xf32>
    %c0_25 = arith.constant 0 : index
    %c0_26 = arith.constant 0 : index
    %25 = vector.load %arg10[%c0_25, %c0_26] : memref<32x32xf32, #tpu.memory_space<vmem>>, vector<32x32xf32>
    %cst_27 = arith.constant dense<0.000000e+00> : vector<8x32xf32>
    %26 = tpu.matmul %24, %25, %cst_27 {dimension_numbers = #tpu.dot_dimension_numbers<[1], [0], [0], [1], [0, 0, 1, 1], [], []>} : vector<8x32xf32>, vector<32x32xf32>, vector<8x32xf32> -> vector<8x32xf32>
    %c0_28 = arith.constant 0 : index
    %c0_29 = arith.constant 0 : index
    %27 = vector.load %arg11[%c0_28, %c0_29] : memref<1x32xf32, #tpu.memory_space<vmem>>, vector<1x32xf32>
    %28 = vector.broadcast %27 : vector<1x32xf32> to vector<8x32xf32>
    %29 = arith.addf %26, %28 : vector<8x32xf32>
    %cst_30 = arith.constant dense<0.000000e+00> : vector<16x8xf32>
    %30 = tpu.matmul %5, %1, %cst_30 {dimension_numbers = #tpu.dot_dimension_numbers<[1], [1], [0], [0], [0, 0, 1, 0], [], []>} : vector<16x2xf32>, vector<8x2xf32>, vector<16x8xf32> -> vector<16x8xf32>
    %cst_31 = arith.constant 0.707106769 : f32
    %31 = vector.broadcast %cst_31 : f32 to vector<16x8xf32>
    %32 = arith.mulf %30, %31 : vector<16x8xf32>
    %cst_32 = arith.constant dense<0xFF800000> : vector<16xf32>
    %33 = vector.multi_reduction <maximumf>, %32, %cst_32 [1] : vector<16x8xf32> to vector<16xf32>
    %34 = vector.shape_cast %33 : vector<16xf32> to vector<16x1xf32>
    %35 = vector.broadcast %34 : vector<16x1xf32> to vector<16x8xf32>
    %36 = arith.subf %32, %35 : vector<16x8xf32>
    %37 = math.exp %36 : vector<16x8xf32>
    %cst_33 = arith.constant dense<0.000000e+00> : vector<16xf32>
    %38 = vector.multi_reduction <add>, %37, %cst_33 [1] : vector<16x8xf32> to vector<16xf32>
    %39 = vector.shape_cast %38 : vector<16xf32> to vector<16x1xf32>
    %40 = tpu.reciprocal %39 {approx = true} : vector<16x1xf32> -> vector<16x1xf32>
    %41 = vector.broadcast %40 : vector<16x1xf32> to vector<16x8xf32>
    %42 = arith.mulf %37, %41 : vector<16x8xf32>
    %cst_34 = arith.constant dense<0.000000e+00> : vector<16x32xf32>
    %43 = tpu.matmul %42, %29, %cst_34 {dimension_numbers = #tpu.dot_dimension_numbers<[1], [0], [0], [1], [0, 0, 1, 1], [], []>} : vector<16x8xf32>, vector<8x32xf32>, vector<16x32xf32> -> vector<16x32xf32>
    %c0_35 = arith.constant 0 : index
    %c0_36 = arith.constant 0 : index
    %44 = vector.load %arg12[%c0_35, %c0_36] : memref<2x32xf32, #tpu.memory_space<vmem>>, vector<2x32xf32>
    %cst_37 = arith.constant dense<0.000000e+00> : vector<8x32xf32>
    %45 = tpu.matmul %1, %44, %cst_37 {dimension_numbers = #tpu.dot_dimension_numbers<[1], [0], [0], [1], [0, 0, 1, 1], [], []>} : vector<8x2xf32>, vector<2x32xf32>, vector<8x32xf32> -> vector<8x32xf32>
    %c0_38 = arith.constant 0 : index
    %c0_39 = arith.constant 0 : index
    %46 = vector.load %arg13[%c0_38, %c0_39] : memref<1x32xf32, #tpu.memory_space<vmem>>, vector<1x32xf32>
    %cst_40 = arith.constant dense<0.000000e+00> : vector<8x32xf32>
    %47 = tpu.matmul %3, %46, %cst_40 {dimension_numbers = #tpu.dot_dimension_numbers<[1], [0], [0], [1], [0, 0, 1, 1], [], []>} : vector<8x1xf32>, vector<1x32xf32>, vector<8x32xf32> -> vector<8x32xf32>
    %48 = arith.addf %45, %47 : vector<8x32xf32>
    %c0_41 = arith.constant 0 : index
    %c0_42 = arith.constant 0 : index
    %49 = vector.load %arg14[%c0_41, %c0_42] : memref<1x32xf32, #tpu.memory_space<vmem>>, vector<1x32xf32>
    %50 = vector.broadcast %49 : vector<1x32xf32> to vector<8x32xf32>
    %51 = arith.addf %48, %50 : vector<8x32xf32>
    %cst_43 = arith.constant 0.000000e+00 : f32
    %52 = vector.broadcast %cst_43 : f32 to vector<8x32xf32>
    %53 = arith.maximumf %51, %52 : vector<8x32xf32>
    %c0_44 = arith.constant 0 : index
    %c0_45 = arith.constant 0 : index
    %54 = vector.load %arg15[%c0_44, %c0_45] : memref<32x32xf32, #tpu.memory_space<vmem>>, vector<32x32xf32>
    %cst_46 = arith.constant dense<0.000000e+00> : vector<8x32xf32>
    %55 = tpu.matmul %53, %54, %cst_46 {dimension_numbers = #tpu.dot_dimension_numbers<[1], [0], [0], [1], [0, 0, 1, 1], [], []>} : vector<8x32xf32>, vector<32x32xf32>, vector<8x32xf32> -> vector<8x32xf32>
    %c0_47 = arith.constant 0 : index
    %c0_48 = arith.constant 0 : index
    %56 = vector.load %arg16[%c0_47, %c0_48] : memref<1x32xf32, #tpu.memory_space<vmem>>, vector<1x32xf32>
    %57 = vector.broadcast %56 : vector<1x32xf32> to vector<8x32xf32>
    %58 = arith.addf %55, %57 : vector<8x32xf32>
    %cst_49 = arith.constant 0.000000e+00 : f32
    %59 = vector.broadcast %cst_49 : f32 to vector<8x32xf32>
    %60 = arith.maximumf %58, %59 : vector<8x32xf32>
    %c0_50 = arith.constant 0 : index
    %c0_51 = arith.constant 0 : index
    %61 = vector.load %arg17[%c0_50, %c0_51] : memref<32x32xf32, #tpu.memory_space<vmem>>, vector<32x32xf32>
    %cst_52 = arith.constant dense<0.000000e+00> : vector<8x32xf32>
    %62 = tpu.matmul %60, %61, %cst_52 {dimension_numbers = #tpu.dot_dimension_numbers<[1], [0], [0], [1], [0, 0, 1, 1], [], []>} : vector<8x32xf32>, vector<32x32xf32>, vector<8x32xf32> -> vector<8x32xf32>
    %c0_53 = arith.constant 0 : index
    %c0_54 = arith.constant 0 : index
    %63 = vector.load %arg18[%c0_53, %c0_54] : memref<1x32xf32, #tpu.memory_space<vmem>>, vector<1x32xf32>
    %64 = vector.broadcast %63 : vector<1x32xf32> to vector<8x32xf32>
    %65 = arith.addf %62, %64 : vector<8x32xf32>
    %cst_55 = arith.constant dense<0.000000e+00> : vector<32xf32>
    %66 = vector.multi_reduction <add>, %65, %cst_55 [0] : vector<8x32xf32> to vector<32xf32>
    %67 = vector.shape_cast %66 : vector<32xf32> to vector<1x32xf32>
    %cst_56 = arith.constant 8.000000e+00 : f32
    %68 = vector.broadcast %cst_56 : f32 to vector<1x32xf32>
    %69 = arith.divf %67, %68 : vector<1x32xf32>
    %c0_57 = arith.constant 0 : index
    %c0_58 = arith.constant 0 : index
    %70 = vector.load %arg19[%c0_57, %c0_58] : memref<32x32xf32, #tpu.memory_space<vmem>>, vector<32x32xf32>
    %cst_59 = arith.constant dense<0.000000e+00> : vector<1x32xf32>
    %71 = tpu.matmul %69, %70, %cst_59 {dimension_numbers = #tpu.dot_dimension_numbers<[1], [0], [0], [1], [0, 0, 1, 1], [], []>} : vector<1x32xf32>, vector<32x32xf32>, vector<1x32xf32> -> vector<1x32xf32>
    %c0_60 = arith.constant 0 : index
    %c0_61 = arith.constant 0 : index
    %72 = vector.load %arg20[%c0_60, %c0_61] : memref<1x32xf32, #tpu.memory_space<vmem>>, vector<1x32xf32>
    %73 = arith.addf %71, %72 : vector<1x32xf32>
    %cst_62 = arith.constant 0.000000e+00 : f32
    %74 = vector.broadcast %cst_62 : f32 to vector<1x32xf32>
    %75 = arith.maximumf %73, %74 : vector<1x32xf32>
    %c0_63 = arith.constant 0 : index
    %c0_64 = arith.constant 0 : index
    %76 = vector.load %arg21[%c0_63, %c0_64] : memref<32x32xf32, #tpu.memory_space<vmem>>, vector<32x32xf32>
    %cst_65 = arith.constant dense<0.000000e+00> : vector<1x32xf32>
    %77 = tpu.matmul %75, %76, %cst_65 {dimension_numbers = #tpu.dot_dimension_numbers<[1], [0], [0], [1], [0, 0, 1, 1], [], []>} : vector<1x32xf32>, vector<32x32xf32>, vector<1x32xf32> -> vector<1x32xf32>
    %c0_66 = arith.constant 0 : index
    %c0_67 = arith.constant 0 : index
    %78 = vector.load %arg22[%c0_66, %c0_67] : memref<1x32xf32, #tpu.memory_space<vmem>>, vector<1x32xf32>
    %79 = arith.addf %77, %78 : vector<1x32xf32>
    %c0_68 = arith.constant 0 : index
    %c0_69 = arith.constant 0 : index
    %80 = vector.load %arg23[%c0_68, %c0_69] : memref<32x32xf32, #tpu.memory_space<vmem>>, vector<32x32xf32>
    %cst_70 = arith.constant dense<0.000000e+00> : vector<1x32xf32>
    %81 = tpu.matmul %75, %80, %cst_70 {dimension_numbers = #tpu.dot_dimension_numbers<[1], [0], [0], [1], [0, 0, 1, 1], [], []>} : vector<1x32xf32>, vector<32x32xf32>, vector<1x32xf32> -> vector<1x32xf32>
    %c0_71 = arith.constant 0 : index
    %c0_72 = arith.constant 0 : index
    %82 = vector.load %arg24[%c0_71, %c0_72] : memref<1x32xf32, #tpu.memory_space<vmem>>, vector<1x32xf32>
    %83 = arith.addf %81, %82 : vector<1x32xf32>
    %84 = arith.negf %83 : vector<1x32xf32>
    %85 = math.exp %84 : vector<1x32xf32>
    %cst_73 = arith.constant 1.000000e+00 : f32
    %86 = vector.broadcast %cst_73 : f32 to vector<1x32xf32>
    %87 = arith.addf %86, %85 : vector<1x32xf32>
    %88 = arith.divf %86, %87 : vector<1x32xf32>
    %cst_74 = arith.constant 0.899999976 : f32
    %89 = vector.broadcast %cst_74 : f32 to vector<1x32xf32>
    %90 = arith.mulf %89, %88 : vector<1x32xf32>
    %cst_75 = arith.constant 1.000000e-01 : f32
    %91 = vector.broadcast %cst_75 : f32 to vector<1x32xf32>
    %92 = arith.addf %91, %90 : vector<1x32xf32>
    %93 = arith.mulf %92, %7 : vector<1x32xf32>
    %94 = arith.addf %79, %93 : vector<1x32xf32>
    %95 = tpu.concatenate %79, %92 in 1 : vector<1x32xf32>, vector<1x32xf32> -> vector<1x64xf32>
    %c0_76 = arith.constant 0 : index
    %c0_77 = arith.constant 0 : index
    %c0_78 = arith.constant 0 : index
    %96 = vector.load %arg36[%c0_76, %c0_77, %c0_78] : memref<1x1x64xf32, #tpu.memory_space<vmem>>, vector<1x1x64xf32>
    %97 = vector.shape_cast %96 : vector<1x1x64xf32> to vector<1x64xf32>
    %98 = vector.shape_cast %95 : vector<1x64xf32> to vector<1x1x64xf32>
    tpu.vector_store %arg36[%c0_76, %c0_77, %c0_78], %98 {strides = array<i32>} : memref<1x1x64xf32, #tpu.memory_space<vmem>>, vector<1x1x64xf32>,
    %c0_79 = arith.constant 0 : index
    %c0_80 = arith.constant 0 : index
    %99 = vector.load %arg25[%c0_79, %c0_80] : memref<2x32xf32, #tpu.memory_space<vmem>>, vector<2x32xf32>
    %cst_81 = arith.constant dense<0.000000e+00> : vector<16x32xf32>
    %100 = tpu.matmul %5, %99, %cst_81 {dimension_numbers = #tpu.dot_dimension_numbers<[1], [0], [0], [1], [0, 0, 1, 1], [], []>} : vector<16x2xf32>, vector<2x32xf32>, vector<16x32xf32> -> vector<16x32xf32>
    %c0_82 = arith.constant 0 : index
    %c0_83 = arith.constant 0 : index
    %101 = vector.load %arg26[%c0_82, %c0_83] : memref<32x32xf32, #tpu.memory_space<vmem>>, vector<32x32xf32>
    %cst_84 = arith.constant dense<0.000000e+00> : vector<16x32xf32>
    %102 = tpu.matmul %43, %101, %cst_84 {dimension_numbers = #tpu.dot_dimension_numbers<[1], [0], [0], [1], [0, 0, 1, 1], [], []>} : vector<16x32xf32>, vector<32x32xf32>, vector<16x32xf32> -> vector<16x32xf32>
    %103 = arith.addf %100, %102 : vector<16x32xf32>
    %c0_85 = arith.constant 0 : index
    %c0_86 = arith.constant 0 : index
    %104 = vector.load %arg27[%c0_85, %c0_86] : memref<32x32xf32, #tpu.memory_space<vmem>>, vector<32x32xf32>
    %cst_87 = arith.constant dense<0.000000e+00> : vector<1x32xf32>
    %105 = tpu.matmul %94, %104, %cst_87 {dimension_numbers = #tpu.dot_dimension_numbers<[1], [0], [0], [1], [0, 0, 1, 1], [], []>} : vector<1x32xf32>, vector<32x32xf32>, vector<1x32xf32> -> vector<1x32xf32>
    %106 = vector.broadcast %105 : vector<1x32xf32> to vector<16x32xf32>
    %107 = arith.addf %103, %106 : vector<16x32xf32>
    %c0_88 = arith.constant 0 : index
    %c0_89 = arith.constant 0 : index
    %108 = vector.load %arg28[%c0_88, %c0_89] : memref<1x32xf32, #tpu.memory_space<vmem>>, vector<1x32xf32>
    %109 = vector.broadcast %108 : vector<1x32xf32> to vector<16x32xf32>
    %110 = arith.addf %107, %109 : vector<16x32xf32>
    %cst_90 = arith.constant 0.000000e+00 : f32
    %111 = vector.broadcast %cst_90 : f32 to vector<16x32xf32>
    %112 = arith.maximumf %110, %111 : vector<16x32xf32>
    %c0_91 = arith.constant 0 : index
    %c0_92 = arith.constant 0 : index
    %113 = vector.load %arg29[%c0_91, %c0_92] : memref<32x32xf32, #tpu.memory_space<vmem>>, vector<32x32xf32>
    %cst_93 = arith.constant dense<0.000000e+00> : vector<16x32xf32>
    %114 = tpu.matmul %112, %113, %cst_93 {dimension_numbers = #tpu.dot_dimension_numbers<[1], [0], [0], [1], [0, 0, 1, 1], [], []>} : vector<16x32xf32>, vector<32x32xf32>, vector<16x32xf32> -> vector<16x32xf32>
    %c0_94 = arith.constant 0 : index
    %c0_95 = arith.constant 0 : index
    %115 = vector.load %arg30[%c0_94, %c0_95] : memref<1x32xf32, #tpu.memory_space<vmem>>, vector<1x32xf32>
    %116 = vector.broadcast %115 : vector<1x32xf32> to vector<16x32xf32>
    %117 = arith.addf %114, %116 : vector<16x32xf32>
    %cst_96 = arith.constant 0.000000e+00 : f32
    %118 = vector.broadcast %cst_96 : f32 to vector<16x32xf32>
    %119 = arith.maximumf %117, %118 : vector<16x32xf32>
    %c0_97 = arith.constant 0 : index
    %c0_98 = arith.constant 0 : index
    %120 = vector.load %arg31[%c0_97, %c0_98] : memref<32x32xf32, #tpu.memory_space<vmem>>, vector<32x32xf32>
    %cst_99 = arith.constant dense<0.000000e+00> : vector<16x32xf32>
    %121 = tpu.matmul %119, %120, %cst_99 {dimension_numbers = #tpu.dot_dimension_numbers<[1], [0], [0], [1], [0, 0, 1, 1], [], []>} : vector<16x32xf32>, vector<32x32xf32>, vector<16x32xf32> -> vector<16x32xf32>
    %c0_100 = arith.constant 0 : index
    %c0_101 = arith.constant 0 : index
    %122 = vector.load %arg32[%c0_100, %c0_101] : memref<1x32xf32, #tpu.memory_space<vmem>>, vector<1x32xf32>
    %123 = vector.broadcast %122 : vector<1x32xf32> to vector<16x32xf32>
    %124 = arith.addf %121, %123 : vector<16x32xf32>
    %cst_102 = arith.constant 0.000000e+00 : f32
    %125 = vector.broadcast %cst_102 : f32 to vector<16x32xf32>
    %126 = arith.maximumf %124, %125 : vector<16x32xf32>
    %c0_103 = arith.constant 0 : index
    %c0_104 = arith.constant 0 : index
    %127 = vector.load %arg33[%c0_103, %c0_104] : memref<32x2xf32, #tpu.memory_space<vmem>>, vector<32x2xf32>
    %cst_105 = arith.constant dense<0.000000e+00> : vector<16x2xf32>
    %128 = tpu.matmul %126, %127, %cst_105 {dimension_numbers = #tpu.dot_dimension_numbers<[1], [0], [0], [1], [0, 0, 1, 1], [], []>} : vector<16x32xf32>, vector<32x2xf32>, vector<16x2xf32> -> vector<16x2xf32>
    %c0_106 = arith.constant 0 : index
    %c0_107 = arith.constant 0 : index
    %129 = vector.load %arg34[%c0_106, %c0_107] : memref<1x2xf32, #tpu.memory_space<vmem>>, vector<1x2xf32>
    %130 = vector.broadcast %129 : vector<1x2xf32> to vector<16x2xf32>
    %131 = arith.addf %128, %130 : vector<16x2xf32>
    %132 = tpu.iota {dimensions = array<i32: 1>} : vector<16x2xi32>
    %cst_108 = arith.constant 0.000000e+00 : f32
    %133 = vector.broadcast %cst_108 : f32 to vector<16x2xf32>
    %134 = arith.maximumf %131, %133 : vector<16x2xf32>
    %135 = vector.broadcast %cst_108 : f32 to vector<16x2xf32>
    %136 = arith.subf %131, %135 : vector<16x2xf32>
    %137 = arith.cmpf one, %136, %136 : vector<16x2xf32>
    %138 = vector.broadcast %cst_108 : f32 to vector<16x2xf32>
    %139 = arith.addf %131, %138 : vector<16x2xf32>
    %140 = math.absf %136 : vector<16x2xf32>
    %cst_109 = arith.constant 0.000000e+00 : f32
    %141 = vector.broadcast %cst_109 : f32 to vector<16x2xf32>
    %142 = arith.subf %141, %140 : vector<16x2xf32>
    %143 = math.exp %142 : vector<16x2xf32>
    %144 = math.log1p %143 : vector<16x2xf32>
    %145 = arith.addf %134, %144 : vector<16x2xf32>
    %146 = arith.select %137, %139, %145 : vector<16x2xi1>, vector<16x2xf32>
    %cst_110 = arith.constant 0.899999976 : f32
    %147 = vector.broadcast %cst_110 : f32 to vector<16x2xf32>
    %148 = arith.mulf %147, %146 : vector<16x2xf32>
    %cst_111 = arith.constant 1.000000e-01 : f32
    %149 = vector.broadcast %cst_111 : f32 to vector<16x2xf32>
    %150 = arith.addf %149, %148 : vector<16x2xf32>
    %c1_i32 = arith.constant 1 : i32
    %151 = vector.broadcast %c1_i32 : i32 to vector<16x2xi32>
    %152 = arith.cmpi slt, %132, %151 : vector<16x2xi32>
    %153 = arith.select %152, %131, %150 : vector<16x2xi1>, vector<16x2xf32>
    %c0_112 = arith.constant 0 : index
    %c0_113 = arith.constant 0 : index
    %c0_114 = arith.constant 0 : index
    %154 = vector.load %arg35[%c0_112, %c0_113, %c0_114] : memref<1x16x2xf32, #tpu.memory_space<vmem>>, vector<1x16x2xf32>
    %155 = vector.shape_cast %154 : vector<1x16x2xf32> to vector<16x2xf32>
    %156 = vector.shape_cast %153 : vector<16x2xf32> to vector<1x16x2xf32>
    tpu.vector_store %arg35[%c0_112, %c0_113, %c0_114], %156 {strides = array<i32>} : memref<1x16x2xf32, #tpu.memory_space<vmem>>, vector<1x16x2xf32>,
    return
  }
  func.func @transform_0(%arg0: i32) -> (i32, i32, i32) {
    %c0_i32 = arith.constant 0 : i32
    %c0_i32_0 = arith.constant 0 : i32
    %c0_i32_1 = arith.constant 0 : i32
    return %arg0, %c0_i32, %c0_i32_0 : i32, i32, i32
  }
  func.func @transform_1(%arg0: i32) -> (i32, i32, i32) {
    %c0_i32 = arith.constant 0 : i32
    %c0_i32_0 = arith.constant 0 : i32
    %c0_i32_1 = arith.constant 0 : i32
    return %arg0, %c0_i32, %c0_i32_0 : i32, i32, i32
  }
  func.func @transform_2(%arg0: i32) -> (i32, i32, i32) {
    %c0_i32 = arith.constant 0 : i32
    %c0_i32_0 = arith.constant 0 : i32
    %c0_i32_1 = arith.constant 0 : i32
    return %arg0, %c0_i32, %c0_i32_0 : i32, i32, i32
  }
  func.func @transform_3(%arg0: i32) -> (i32, i32, i32) {
    %c0_i32 = arith.constant 0 : i32
    %c0_i32_0 = arith.constant 0 : i32
    %c0_i32_1 = arith.constant 0 : i32
    return %arg0, %c0_i32, %c0_i32_0 : i32, i32, i32
  }
  func.func @transform_4(%arg0: i32) -> (i32, i32) {
    %c0_i32 = arith.constant 0 : i32
    %c0_i32_0 = arith.constant 0 : i32
    %c0_i32_1 = arith.constant 0 : i32
    return %c0_i32, %c0_i32_0 : i32, i32
  }
  func.func @transform_5(%arg0: i32) -> (i32, i32) {
    %c0_i32 = arith.constant 0 : i32
    %c0_i32_0 = arith.constant 0 : i32
    %c0_i32_1 = arith.constant 0 : i32
    return %c0_i32, %c0_i32_0 : i32, i32
  }
  func.func @transform_6(%arg0: i32) -> (i32, i32) {
    %c0_i32 = arith.constant 0 : i32
    %c0_i32_0 = arith.constant 0 : i32
    %c0_i32_1 = arith.constant 0 : i32
    return %c0_i32, %c0_i32_0 : i32, i32
  }
  func.func @transform_7(%arg0: i32) -> (i32, i32) {
    %c0_i32 = arith.constant 0 : i32
    %c0_i32_0 = arith.constant 0 : i32
    %c0_i32_1 = arith.constant 0 : i32
    return %c0_i32, %c0_i32_0 : i32, i32
  }
  func.func @transform_8(%arg0: i32) -> (i32, i32) {
    %c0_i32 = arith.constant 0 : i32
    %c0_i32_0 = arith.constant 0 : i32
    %c0_i32_1 = arith.constant 0 : i32
    return %c0_i32, %c0_i32_0 : i32, i32
  }
  func.func @transform_9(%arg0: i32) -> (i32, i32) {
    %c0_i32 = arith.constant 0 : i32
    %c0_i32_0 = arith.constant 0 : i32
    %c0_i32_1 = arith.constant 0 : i32
    return %c0_i32, %c0_i32_0 : i32, i32
  }
  func.func @transform_10(%arg0: i32) -> (i32, i32) {
    %c0_i32 = arith.constant 0 : i32
    %c0_i32_0 = arith.constant 0 : i32
    %c0_i32_1 = arith.constant 0 : i32
    return %c0_i32, %c0_i32_0 : i32, i32
  }
  func.func @transform_11(%arg0: i32) -> (i32, i32) {
    %c0_i32 = arith.constant 0 : i32
    %c0_i32_0 = arith.constant 0 : i32
    %c0_i32_1 = arith.constant 0 : i32
    return %c0_i32, %c0_i32_0 : i32, i32
  }
  func.func @transform_12(%arg0: i32) -> (i32, i32) {
    %c0_i32 = arith.constant 0 : i32
    %c0_i32_0 = arith.constant 0 : i32
    %c0_i32_1 = arith.constant 0 : i32
    return %c0_i32, %c0_i32_0 : i32, i32
  }
  func.func @transform_13(%arg0: i32) -> (i32, i32) {
    %c0_i32 = arith.constant 0 : i32
    %c0_i32_0 = arith.constant 0 : i32
    %c0_i32_1 = arith.constant 0 : i32
    return %c0_i32, %c0_i32_0 : i32, i32
  }
  func.func @transform_14(%arg0: i32) -> (i32, i32) {
    %c0_i32 = arith.constant 0 : i32
    %c0_i32_0 = arith.constant 0 : i32
    %c0_i32_1 = arith.constant 0 : i32
    return %c0_i32, %c0_i32_0 : i32, i32
  }
  func.func @transform_15(%arg0: i32) -> (i32, i32) {
    %c0_i32 = arith.constant 0 : i32
    %c0_i32_0 = arith.constant 0 : i32
    %c0_i32_1 = arith.constant 0 : i32
    return %c0_i32, %c0_i32_0 : i32, i32
  }
  func.func @transform_16(%arg0: i32) -> (i32, i32) {
    %c0_i32 = arith.constant 0 : i32
    %c0_i32_0 = arith.constant 0 : i32
    %c0_i32_1 = arith.constant 0 : i32
    return %c0_i32, %c0_i32_0 : i32, i32
  }
  func.func @transform_17(%arg0: i32) -> (i32, i32) {
    %c0_i32 = arith.constant 0 : i32
    %c0_i32_0 = arith.constant 0 : i32
    %c0_i32_1 = arith.constant 0 : i32
    return %c0_i32, %c0_i32_0 : i32, i32
  }
  func.func @transform_18(%arg0: i32) -> (i32, i32) {
    %c0_i32 = arith.constant 0 : i32
    %c0_i32_0 = arith.constant 0 : i32
    %c0_i32_1 = arith.constant 0 : i32
    return %c0_i32, %c0_i32_0 : i32, i32
  }
  func.func @transform_19(%arg0: i32) -> (i32, i32) {
    %c0_i32 = arith.constant 0 : i32
    %c0_i32_0 = arith.constant 0 : i32
    %c0_i32_1 = arith.constant 0 : i32
    return %c0_i32, %c0_i32_0 : i32, i32
  }
  func.func @transform_20(%arg0: i32) -> (i32, i32) {
    %c0_i32 = arith.constant 0 : i32
    %c0_i32_0 = arith.constant 0 : i32
    %c0_i32_1 = arith.constant 0 : i32
    return %c0_i32, %c0_i32_0 : i32, i32
  }
  func.func @transform_21(%arg0: i32) -> (i32, i32) {
    %c0_i32 = arith.constant 0 : i32
    %c0_i32_0 = arith.constant 0 : i32
    %c0_i32_1 = arith.constant 0 : i32
    return %c0_i32, %c0_i32_0 : i32, i32
  }
  func.func @transform_22(%arg0: i32) -> (i32, i32) {
    %c0_i32 = arith.constant 0 : i32
    %c0_i32_0 = arith.constant 0 : i32
    %c0_i32_1 = arith.constant 0 : i32
    return %c0_i32, %c0_i32_0 : i32, i32
  }
  func.func @transform_23(%arg0: i32) -> (i32, i32) {
    %c0_i32 = arith.constant 0 : i32
    %c0_i32_0 = arith.constant 0 : i32
    %c0_i32_1 = arith.constant 0 : i32
    return %c0_i32, %c0_i32_0 : i32, i32
  }
  func.func @transform_24(%arg0: i32) -> (i32, i32) {
    %c0_i32 = arith.constant 0 : i32
    %c0_i32_0 = arith.constant 0 : i32
    %c0_i32_1 = arith.constant 0 : i32
    return %c0_i32, %c0_i32_0 : i32, i32
  }
  func.func @transform_25(%arg0: i32) -> (i32, i32) {
    %c0_i32 = arith.constant 0 : i32
    %c0_i32_0 = arith.constant 0 : i32
    %c0_i32_1 = arith.constant 0 : i32
    return %c0_i32, %c0_i32_0 : i32, i32
  }
  func.func @transform_26(%arg0: i32) -> (i32, i32) {
    %c0_i32 = arith.constant 0 : i32
    %c0_i32_0 = arith.constant 0 : i32
    %c0_i32_1 = arith.constant 0 : i32
    return %c0_i32, %c0_i32_0 : i32, i32
  }
  func.func @transform_27(%arg0: i32) -> (i32, i32) {
    %c0_i32 = arith.constant 0 : i32
    %c0_i32_0 = arith.constant 0 : i32
    %c0_i32_1 = arith.constant 0 : i32
    return %c0_i32, %c0_i32_0 : i32, i32
  }
  func.func @transform_28(%arg0: i32) -> (i32, i32) {
    %c0_i32 = arith.constant 0 : i32
    %c0_i32_0 = arith.constant 0 : i32
    %c0_i32_1 = arith.constant 0 : i32
    return %c0_i32, %c0_i32_0 : i32, i32
  }
  func.func @transform_29(%arg0: i32) -> (i32, i32) {
    %c0_i32 = arith.constant 0 : i32
    %c0_i32_0 = arith.constant 0 : i32
    %c0_i32_1 = arith.constant 0 : i32
    return %c0_i32, %c0_i32_0 : i32, i32
  }
  func.func @transform_30(%arg0: i32) -> (i32, i32) {
    %c0_i32 = arith.constant 0 : i32
    %c0_i32_0 = arith.constant 0 : i32
    %c0_i32_1 = arith.constant 0 : i32
    return %c0_i32, %c0_i32_0 : i32, i32
  }
  func.func @transform_31(%arg0: i32) -> (i32, i32) {
    %c0_i32 = arith.constant 0 : i32
    %c0_i32_0 = arith.constant 0 : i32
    %c0_i32_1 = arith.constant 0 : i32
    return %c0_i32, %c0_i32_0 : i32, i32
  }
  func.func @transform_32(%arg0: i32) -> (i32, i32) {
    %c0_i32 = arith.constant 0 : i32
    %c0_i32_0 = arith.constant 0 : i32
    %c0_i32_1 = arith.constant 0 : i32
    return %c0_i32, %c0_i32_0 : i32, i32
  }
  func.func @transform_33(%arg0: i32) -> (i32, i32) {
    %c0_i32 = arith.constant 0 : i32
    %c0_i32_0 = arith.constant 0 : i32
    %c0_i32_1 = arith.constant 0 : i32
    return %c0_i32, %c0_i32_0 : i32, i32
  }
  func.func @transform_34(%arg0: i32) -> (i32, i32, i32) {
    %c0_i32 = arith.constant 0 : i32
    %c0_i32_0 = arith.constant 0 : i32
    %c0_i32_1 = arith.constant 0 : i32
    return %arg0, %c0_i32, %c0_i32_0 : i32, i32, i32
  }
  func.func @transform_35(%arg0: i32) -> (i32, i32, i32) {
    %c0_i32 = arith.constant 0 : i32
    %c0_i32_0 = arith.constant 0 : i32
    %c0_i32_1 = arith.constant 0 : i32
    return %arg0, %c0_i32, %c0_i32_0 : i32, i32, i32
  }
}

</mosaic_0001>

<llo_original>
// kernel: tpu_custom_call.1
$region0: #{tpu_custom_call.1}
  #allocation0 [shape = 'u32[]', space=smem, size = 0x4, offset = 0x4, fixed_abs, tag = 'smem constant byte address 0x4 - core index']
  #allocation1 [shape = 'u32[144,128]{1,0:T(1,128)}', space=vmem, size = 0x12000, scoped, tag = 'internal scratch']
  %s0 = inlined_call_operand.smem [shape: u32[36], index: -1, kind: input, shape index: {}]
  %s1 = sld [smem:[%s0]]
  %s2 = scalar_lea.smem %s0, 1
  %s3 = sld [smem:[%s2]]
  %s4 = scalar_lea.smem %s0, 2
  %s5 = sld [smem:[%s4]]
  %s6 = scalar_lea.smem %s0, 3
  %s7 = sld [smem:[%s6]]
  %s8 = scalar_lea.smem %s0, 4
  %s9 = sld [smem:[%s8]]
  %s10 = scalar_lea.smem %s0, 5
  %s11 = sld [smem:[%s10]]
  %s12 = scalar_lea.smem %s0, 6
  %s13 = sld [smem:[%s12]]
  %s14 = scalar_lea.smem %s0, 7
  %s15 = sld [smem:[%s14]]
  %s16 = scalar_lea.smem %s0, 8
  %s17 = sld [smem:[%s16]]
  %s18 = scalar_lea.smem %s0, 9
  %s19 = sld [smem:[%s18]]
  %s20 = scalar_lea.smem %s0, 10
  %s21 = sld [smem:[%s20]]
  %s22 = scalar_lea.smem %s0, 11
  %s23 = sld [smem:[%s22]]
  %s24 = scalar_lea.smem %s0, 12
  %s25 = sld [smem:[%s24]]
  %s26 = scalar_lea.smem %s0, 13
  %s27 = sld [smem:[%s26]]
  %s28 = scalar_lea.smem %s0, 14
  %s29 = sld [smem:[%s28]]
  %s30 = scalar_lea.smem %s0, 15
  %s31 = sld [smem:[%s30]]
  %s32 = scalar_lea.smem %s0, 16
  %s33 = sld [smem:[%s32]]
  %s34 = scalar_lea.smem %s0, 17
  %s35 = sld [smem:[%s34]]
  %s36 = scalar_lea.smem %s0, 18
  %s37 = sld [smem:[%s36]]
  %s38 = scalar_lea.smem %s0, 19
  %s39 = sld [smem:[%s38]]
  %s40 = scalar_lea.smem %s0, 20
  %s41 = sld [smem:[%s40]]
  %s42 = scalar_lea.smem %s0, 21
  %s43 = sld [smem:[%s42]]
  %s44 = scalar_lea.smem %s0, 22
  %s45 = sld [smem:[%s44]]
  %s46 = scalar_lea.smem %s0, 23
  %s47 = sld [smem:[%s46]]
  %s48 = scalar_lea.smem %s0, 24
  %s49 = sld [smem:[%s48]]
  %s50 = scalar_lea.smem %s0, 25
  %s51 = sld [smem:[%s50]]
  %s52 = scalar_lea.smem %s0, 26
  %s53 = sld [smem:[%s52]]
  %s54 = scalar_lea.smem %s0, 27
  %s55 = sld [smem:[%s54]]
  %s56 = scalar_lea.smem %s0, 28
  %s57 = sld [smem:[%s56]]
  %s58 = scalar_lea.smem %s0, 29
  %s59 = sld [smem:[%s58]]
  %s60 = scalar_lea.smem %s0, 30
  %s61 = sld [smem:[%s60]]
  %s62 = scalar_lea.smem %s0, 31
  %s63 = sld [smem:[%s62]]
  %s64 = scalar_lea.smem %s0, 32
  %s65 = sld [smem:[%s64]]
  %s66 = scalar_lea.smem %s0, 33
  %s67 = sld [smem:[%s66]]
  %s68 = scalar_lea.smem %s0, 34
  %s69 = sld [smem:[%s68]]
  %s70 = scalar_lea.smem %s0, 35
  %s71 = sld [smem:[%s70]]
  %72 = xla_tuple %s69, %s71
  %s73 = sld [smem:[#allocation0]]
  $region269: #{tpu_custom_call.1} parent=0
    _
  %s75 = ssub.s32 1, %s73
  %s76 = scalar_select 0, %s75, %s73
  $region1: #{tpu_custom_call.1} parent=0
    #allocation2 [shape = 'u8[1024]{0}', space=vmem, size = 0x400, scoped, tag = 'input window, operand 3']
    #allocation3 [shape = 's32[2]{0}', space=sflag, size = 0x8, scoped, tag = 'scoped memory for tpu_custom_call.1']
    #allocation4 [shape = 's32[2]{0}', space=sflag, size = 0x8, scoped, tag = 'scoped memory for tpu_custom_call.1']
    #allocation5 [shape = 'u8[1024]{0}', space=vmem, size = 0x400, scoped, tag = 'input window, operand 4, single buffered']
    #allocation6 [shape = 's32[1]{0}', space=sflag, size = 0x4, scoped, tag = 'scoped memory for tpu_custom_call.1']
    #allocation7 [shape = 'u8[512]{0}', space=vmem, size = 0x400, scoped, tag = 'input window, operand 5, single buffered']
    #allocation8 [shape = 'u8[512]{0}', space=vmem, size = 0x400, scoped, tag = 'input window, operand 6, single buffered']
    #allocation9 [shape = 's32[1]{0}', space=sflag, size = 0x4, scoped, tag = 'scoped memory for tpu_custom_call.1']
    #allocation10 [shape = 'u8[512]{0}', space=vmem, size = 0x400, scoped, tag = 'input window, operand 8, single buffered']
    #allocation11 [shape = 'u8[512]{0}', space=vmem, size = 0x400, scoped, tag = 'input window, operand 10, single buffered']
    #allocation12 [shape = 's32[1]{0}', space=sflag, size = 0x4, scoped, tag = 'scoped memory for tpu_custom_call.1']
    #allocation13 [shape = 'u8[1024]{0}', space=vmem, size = 0x400, scoped, tag = 'input window, operand 11, single buffered']
    #allocation14 [shape = 'u8[512]{0}', space=vmem, size = 0x400, scoped, tag = 'input window, operand 12, single buffered']
    #allocation15 [shape = 's32[1]{0}', space=sflag, size = 0x4, scoped, tag = 'scoped memory for tpu_custom_call.1']
    #allocation16 [shape = 'u8[512]{0}', space=vmem, size = 0x400, scoped, tag = 'input window, operand 13, single buffered']
    #allocation17 [shape = 'u8[512]{0}', space=vmem, size = 0x400, scoped, tag = 'input window, operand 15, single buffered']
    #allocation18 [shape = 's32[1]{0}', space=sflag, size = 0x4, scoped, tag = 'scoped memory for tpu_custom_call.1']
    #allocation19 [shape = 'u8[512]{0}', space=vmem, size = 0x400, scoped, tag = 'input window, operand 17, single buffered']
    #allocation20 [shape = 'u8[16384]{0}', space=vmem, size = 0x4000, scoped, tag = 'input window, operand 18, single buffered']
    #allocation21 [shape = 's32[1]{0}', space=sflag, size = 0x4, scoped, tag = 'scoped memory for tpu_custom_call.1']
    #allocation22 [shape = 'u8[512]{0}', space=vmem, size = 0x400, scoped, tag = 'input window, operand 19, single buffered']
    #allocation23 [shape = 'u8[16384]{0}', space=vmem, size = 0x4000, scoped, tag = 'input window, operand 20, single buffered']
    #allocation24 [shape = 's32[1]{0}', space=sflag, size = 0x4, scoped, tag = 'scoped memory for tpu_custom_call.1']
    #allocation25 [shape = 'u8[512]{0}', space=vmem, size = 0x400, scoped, tag = 'input window, operand 21, single buffered']
    #allocation26 [shape = 'u8[16384]{0}', space=vmem, size = 0x4000, scoped, tag = 'input window, operand 22, single buffered']
    #allocation27 [shape = 's32[1]{0}', space=sflag, size = 0x4, scoped, tag = 'scoped memory for tpu_custom_call.1']
    #allocation28 [shape = 'u8[512]{0}', space=vmem, size = 0x400, scoped, tag = 'input window, operand 23, single buffered']
    #allocation29 [shape = 'u8[1024]{0}', space=vmem, size = 0x400, scoped, tag = 'input window, operand 24, single buffered']
    #allocation30 [shape = 's32[1]{0}', space=sflag, size = 0x4, scoped, tag = 'scoped memory for tpu_custom_call.1']
    #allocation31 [shape = 'u8[16384]{0}', space=vmem, size = 0x4000, scoped, tag = 'input window, operand 25, single buffered']
    #allocation32 [shape = 'u8[16384]{0}', space=vmem, size = 0x4000, scoped, tag = 'input window, operand 26, single buffered']
    #allocation33 [shape = 's32[1]{0}', space=sflag, size = 0x4, scoped, tag = 'scoped memory for tpu_custom_call.1']
    #allocation34 [shape = 'u8[512]{0}', space=vmem, size = 0x400, scoped, tag = 'input window, operand 27, single buffered']
    #allocation35 [shape = 'u8[16384]{0}', space=vmem, size = 0x4000, scoped, tag = 'input window, operand 28, single buffered']
    #allocation36 [shape = 's32[1]{0}', space=sflag, size = 0x4, scoped, tag = 'scoped memory for tpu_custom_call.1']
    #allocation37 [shape = 'u8[512]{0}', space=vmem, size = 0x400, scoped, tag = 'input window, operand 29, single buffered']
    #allocation38 [shape = 'u8[1024]{0}', space=vmem, size = 0x400, scoped, tag = 'output window, operand 1']
    %77 = vsyncpa [#allocation3], 0
    %s78 = scalar_lea.sflag [#allocation3], 1
    %79 = vsyncpa %s78, 0
    %80 = vsyncpa [#allocation6], 0
    %81 = vsyncpa [#allocation9], 0
    %82 = vsyncpa [#allocation12], 0
    %83 = vsyncpa [#allocation15], 0
    %84 = vsyncpa [#allocation18], 0
    %85 = vsyncpa [#allocation21], 0
    %86 = vsyncpa [#allocation24], 0
    %87 = vsyncpa [#allocation27], 0
    %88 = vsyncpa [#allocation30], 0
    %89 = vsyncpa [#allocation33], 0
    %90 = vsyncpa [#allocation36], 0
    %91 = vsyncpa [#allocation4], 0
    %s92 = scalar_lea.sflag [#allocation4], 1
    %93 = vsyncpa %s92, 0
    loop: start=0, step=1, limit=4
    $region2: #{tpu_custom_call.1} parent=1 // loop_pre_header
      _
    $region3: #{tpu_custom_call.1} parent=1 // loop_header
      %s95 = sphi 0, %s99
      %p96 = scmp.ge.s32.totalorder %s95, 4
      %s105 = sphi 0, %s107
      %s108 = sphi 0, %s105
      %s109 = sphi 0, %s108
      %s125 = sphi 0, %s109
      %s131 = sphi 0, %s133
      %s134 = sphi 0, %s131
      %s135 = sphi 0, %s134
      %s151 = sphi 0, %s135
      %s157 = sphi 0, %s159
      %s160 = sphi 0, %s157
      %s161 = sphi 0, %s160
      %s177 = sphi 0, %s161
      %s183 = sphi 0, %s185
      %s186 = sphi 0, %s183
      %s187 = sphi 0, %s186
      %s203 = sphi 0, %s187
      %s207 = sphi 0, %s207
      %s209 = sphi 0, %s207
      %s210 = sphi 0, %s209
      %s224 = sphi 0, %s210
      %s228 = sphi 0, %s228
      %s230 = sphi 0, %s228
      %s231 = sphi 0, %s230
      %s245 = sphi 0, %s231
      %s249 = sphi 0, %s249
      %s251 = sphi 0, %s249
      %s252 = sphi 0, %s251
      %s266 = sphi 0, %s252
      %s270 = sphi 0, %s270
      %s272 = sphi 0, %s270
      %s273 = sphi 0, %s272
      %s287 = sphi 0, %s273
      %s291 = sphi 0, %s291
      %s293 = sphi 0, %s291
      %s294 = sphi 0, %s293
      %s308 = sphi 0, %s294
      %s312 = sphi 0, %s312
      %s314 = sphi 0, %s312
      %s315 = sphi 0, %s314
      %s329 = sphi 0, %s315
      %s333 = sphi 0, %s333
      %s335 = sphi 0, %s333
      %s336 = sphi 0, %s335
      %s350 = sphi 0, %s336
      %s354 = sphi 0, %s354
      %s356 = sphi 0, %s354
      %s357 = sphi 0, %s356
      %s371 = sphi 0, %s357
      %s375 = sphi 0, %s375
      %s377 = sphi 0, %s375
      %s378 = sphi 0, %s377
      %s392 = sphi 0, %s378
      %s396 = sphi 0, %s396
      %s398 = sphi 0, %s396
      %s399 = sphi 0, %s398
      %s413 = sphi 0, %s399
      %s417 = sphi 0, %s417
      %s419 = sphi 0, %s417
      %s420 = sphi 0, %s419
      %s434 = sphi 0, %s420
      %s438 = sphi 0, %s438
      %s440 = sphi 0, %s438
      %s441 = sphi 0, %s440
      %s455 = sphi 0, %s441
      %s459 = sphi 0, %s459
      %s461 = sphi 0, %s459
      %s462 = sphi 0, %s461
      %s476 = sphi 0, %s462
      %s480 = sphi 0, %s480
      %s482 = sphi 0, %s480
      %s483 = sphi 0, %s482
      %s497 = sphi 0, %s483
      %s501 = sphi 0, %s501
      %s503 = sphi 0, %s501
      %s504 = sphi 0, %s503
      %s518 = sphi 0, %s504
      %s522 = sphi 0, %s522
      %s524 = sphi 0, %s522
      %s525 = sphi 0, %s524
      %s539 = sphi 0, %s525
      %s543 = sphi 0, %s543
      %s545 = sphi 0, %s543
      %s546 = sphi 0, %s545
      %s560 = sphi 0, %s546
      %s564 = sphi 0, %s564
      %s566 = sphi 0, %s564
      %s567 = sphi 0, %s566
      %s581 = sphi 0, %s567
      %s585 = sphi 0, %s585
      %s587 = sphi 0, %s585
      %s588 = sphi 0, %s587
      %s602 = sphi 0, %s588
      %s606 = sphi 0, %s606
      %s608 = sphi 0, %s606
      %s609 = sphi 0, %s608
      %s623 = sphi 0, %s609
      %s627 = sphi 0, %s627
      %s629 = sphi 0, %s627
      %s630 = sphi 0, %s629
      %s644 = sphi 0, %s630
      %s648 = sphi 0, %s648
      %s650 = sphi 0, %s648
      %s651 = sphi 0, %s650
      %s665 = sphi 0, %s651
      %s669 = sphi 0, %s669
      %s671 = sphi 0, %s669
      %s672 = sphi 0, %s671
      %s686 = sphi 0, %s672
      %s690 = sphi 0, %s690
      %s692 = sphi 0, %s690
      %s693 = sphi 0, %s692
      %s707 = sphi 0, %s693
      %s711 = sphi 0, %s711
      %s713 = sphi 0, %s711
      %s714 = sphi 0, %s713
      %s728 = sphi 0, %s714
      %s732 = sphi 0, %s732
      %s734 = sphi 0, %s732
      %s735 = sphi 0, %s734
      %s749 = sphi 0, %s735
      %s753 = sphi 0, %s753
      %s755 = sphi 0, %s753
      %s756 = sphi 0, %s755
      %s770 = sphi 0, %s756
      %s774 = sphi 0, %s774
      %s776 = sphi 0, %s774
      %s777 = sphi 0, %s776
      %s791 = sphi 0, %s777
      %s795 = sphi 0, %s795
      %s797 = sphi 0, %s795
      %s798 = sphi 0, %s797
      %s812 = sphi 0, %s798
      %s816 = sphi 0, %s816
      %s818 = sphi 0, %s816
      %s819 = sphi 0, %s818
      %s833 = sphi 0, %s819
      %s839 = sphi 0, %s841
      %s842 = sphi 0, %s839
      %s843 = sphi 0, %s842
      %s859 = sphi 0, %s843
      %s865 = sphi 0, %s867
      %s868 = sphi 0, %s865
      %s869 = sphi 0, %s868
      %s885 = sphi 0, %s869
    $region4: #{tpu_custom_call.1} parent=1 // loop_header_branch
      %98 = sbr.rel (%p96) target = $region8
    $region5: #{tpu_custom_call.1} parent=1 // loop_body
      %s100 = ssub.s32 %s95, 1
      %s101 = ssub.s32 %s95, 2
      %s102 = sadd.s32 %s95, 1
      %s103 = ssub.s32 %s95, %s102
      %p104 = scmp.eq.s32.totalorder %s103, 0
      %s106 = sadd.s32 %s105, 1
      %s107 = scalar_select %p104, %s105, %s106
      %p110 = pneg %p104
      %p111 = scmp.eq.s32.totalorder %s95, 1
      %p112 = por %p110, %p111
      %p113 = scmp.ne.s32.totalorder %s105, %s108
      %p114 = scmp.eq.s32.totalorder %s95, 0
      %p115 = por %p113, %p114
      %p116 = scmp.ne.s32.totalorder %s105, %s108
      %p117 = scmp.eq.s32.totalorder %s100, 1
      %p118 = por %p116, %p117
      %p119 = scmp.ne.s32.totalorder %s108, %s109
      %p120 = scmp.eq.s32.totalorder %s100, 0
      %p121 = por %p119, %p120
      %p122 = scmp.ne.s32.totalorder %s108, %s109
      %p123 = scmp.eq.s32.totalorder %s101, 1
      %p124 = por %p122, %p123
      %p126 = scmp.ne.s32.totalorder %s109, %s125
      %p127 = scmp.eq.s32.totalorder %s101, 0
      %p128 = por %p126, %p127
      %s129 = ssub.s32 %s95, %s102
      %p130 = scmp.eq.s32.totalorder %s129, 0
      %s132 = sadd.s32 %s131, 1
      %s133 = scalar_select %p130, %s131, %s132
      %p136 = pneg %p130
      %p137 = scmp.eq.s32.totalorder %s95, 1
      %p138 = por %p136, %p137
      %p139 = scmp.ne.s32.totalorder %s131, %s134
      %p140 = scmp.eq.s32.totalorder %s95, 0
      %p141 = por %p139, %p140
      %p142 = scmp.ne.s32.totalorder %s131, %s134
      %p143 = scmp.eq.s32.totalorder %s100, 1
      %p144 = por %p142, %p143
      %p145 = scmp.ne.s32.totalorder %s134, %s135
      %p146 = scmp.eq.s32.totalorder %s100, 0
      %p147 = por %p145, %p146
      %p148 = scmp.ne.s32.totalorder %s134, %s135
      %p149 = scmp.eq.s32.totalorder %s101, 1
      %p150 = por %p148, %p149
      %p152 = scmp.ne.s32.totalorder %s135, %s151
      %p153 = scmp.eq.s32.totalorder %s101, 0
      %p154 = por %p152, %p153
      %s155 = ssub.s32 %s95, %s102
      %p156 = scmp.eq.s32.totalorder %s155, 0
      %s158 = sadd.s32 %s157, 1
      %s159 = scalar_select %p156, %s157, %s158
      %p162 = pneg %p156
      %p163 = scmp.eq.s32.totalorder %s95, 1
      %p164 = por %p162, %p163
      %p165 = scmp.ne.s32.totalorder %s157, %s160
      %p166 = scmp.eq.s32.totalorder %s95, 0
      %p167 = por %p165, %p166
      %p168 = scmp.ne.s32.totalorder %s157, %s160
      %p169 = scmp.eq.s32.totalorder %s100, 1
      %p170 = por %p168, %p169
      %p171 = scmp.ne.s32.totalorder %s160, %s161
      %p172 = scmp.eq.s32.totalorder %s100, 0
      %p173 = por %p171, %p172
      %p174 = scmp.ne.s32.totalorder %s160, %s161
      %p175 = scmp.eq.s32.totalorder %s101, 1
      %p176 = por %p174, %p175
      %p178 = scmp.ne.s32.totalorder %s161, %s177
      %p179 = scmp.eq.s32.totalorder %s101, 0
      %p180 = por %p178, %p179
      %s181 = ssub.s32 %s95, %s102
      %p182 = scmp.eq.s32.totalorder %s181, 0
      %s184 = sadd.s32 %s183, 1
      %s185 = scalar_select %p182, %s183, %s184
      %p188 = pneg %p182
      %p189 = scmp.eq.s32.totalorder %s95, 1
      %p190 = por %p188, %p189
      %p191 = scmp.ne.s32.totalorder %s183, %s186
      %p192 = scmp.eq.s32.totalorder %s95, 0
      %p193 = por %p191, %p192
      %p194 = scmp.ne.s32.totalorder %s183, %s186
      %p195 = scmp.eq.s32.totalorder %s100, 1
      %p196 = por %p194, %p195
      %p197 = scmp.ne.s32.totalorder %s186, %s187
      %p198 = scmp.eq.s32.totalorder %s100, 0
      %p199 = por %p197, %p198
      %p200 = scmp.ne.s32.totalorder %s186, %s187
      %p201 = scmp.eq.s32.totalorder %s101, 1
      %p202 = por %p200, %p201
      %p204 = scmp.ne.s32.totalorder %s187, %s203
      %p205 = scmp.eq.s32.totalorder %s101, 0
      %p206 = por %p204, %p205
      %s208 = sadd.s32 %s207, 1
      %p211 = scmp.eq.s32.totalorder %s95, 1
      %p212 = scmp.ne.s32.totalorder %s207, %s209
      %p213 = scmp.eq.s32.totalorder %s95, 0
      %p214 = por %p212, %p213
      %p215 = scmp.ne.s32.totalorder %s207, %s209
      %p216 = scmp.eq.s32.totalorder %s100, 1
      %p217 = por %p215, %p216
      %p218 = scmp.ne.s32.totalorder %s209, %s210
      %p219 = scmp.eq.s32.totalorder %s100, 0
      %p220 = por %p218, %p219
      %p221 = scmp.ne.s32.totalorder %s209, %s210
      %p222 = scmp.eq.s32.totalorder %s101, 1
      %p223 = por %p221, %p222
      %p225 = scmp.ne.s32.totalorder %s210, %s224
      %p226 = scmp.eq.s32.totalorder %s101, 0
      %p227 = por %p225, %p226
      %s229 = sadd.s32 %s228, 1
      %p232 = scmp.eq.s32.totalorder %s95, 1
      %p233 = scmp.ne.s32.totalorder %s228, %s230
      %p234 = scmp.eq.s32.totalorder %s95, 0
      %p235 = por %p233, %p234
      %p236 = scmp.ne.s32.totalorder %s228, %s230
      %p237 = scmp.eq.s32.totalorder %s100, 1
      %p238 = por %p236, %p237
      %p239 = scmp.ne.s32.totalorder %s230, %s231
      %p240 = scmp.eq.s32.totalorder %s100, 0
      %p241 = por %p239, %p240
      %p242 = scmp.ne.s32.totalorder %s230, %s231
      %p243 = scmp.eq.s32.totalorder %s101, 1
      %p244 = por %p242, %p243
      %p246 = scmp.ne.s32.totalorder %s231, %s245
      %p247 = scmp.eq.s32.totalorder %s101, 0
      %p248 = por %p246, %p247
      %s250 = sadd.s32 %s249, 1
      %p253 = scmp.eq.s32.totalorder %s95, 1
      %p254 = scmp.ne.s32.totalorder %s249, %s251
      %p255 = scmp.eq.s32.totalorder %s95, 0
      %p256 = por %p254, %p255
      %p257 = scmp.ne.s32.totalorder %s249, %s251
      %p258 = scmp.eq.s32.totalorder %s100, 1
      %p259 = por %p257, %p258
      %p260 = scmp.ne.s32.totalorder %s251, %s252
      %p261 = scmp.eq.s32.totalorder %s100, 0
      %p262 = por %p260, %p261
      %p263 = scmp.ne.s32.totalorder %s251, %s252
      %p264 = scmp.eq.s32.totalorder %s101, 1
      %p265 = por %p263, %p264
      %p267 = scmp.ne.s32.totalorder %s252, %s266
      %p268 = scmp.eq.s32.totalorder %s101, 0
      %p269 = por %p267, %p268
      %s271 = sadd.s32 %s270, 1
      %p274 = scmp.eq.s32.totalorder %s95, 1
      %p275 = scmp.ne.s32.totalorder %s270, %s272
      %p276 = scmp.eq.s32.totalorder %s95, 0
      %p277 = por %p275, %p276
      %p278 = scmp.ne.s32.totalorder %s270, %s272
      %p279 = scmp.eq.s32.totalorder %s100, 1
      %p280 = por %p278, %p279
      %p281 = scmp.ne.s32.totalorder %s272, %s273
      %p282 = scmp.eq.s32.totalorder %s100, 0
      %p283 = por %p281, %p282
      %p284 = scmp.ne.s32.totalorder %s272, %s273
      %p285 = scmp.eq.s32.totalorder %s101, 1
      %p286 = por %p284, %p285
      %p288 = scmp.ne.s32.totalorder %s273, %s287
      %p289 = scmp.eq.s32.totalorder %s101, 0
      %p290 = por %p288, %p289
      %s292 = sadd.s32 %s291, 1
      %p295 = scmp.eq.s32.totalorder %s95, 1
      %p296 = scmp.ne.s32.totalorder %s291, %s293
      %p297 = scmp.eq.s32.totalorder %s95, 0
      %p298 = por %p296, %p297
      %p299 = scmp.ne.s32.totalorder %s291, %s293
      %p300 = scmp.eq.s32.totalorder %s100, 1
      %p301 = por %p299, %p300
      %p302 = scmp.ne.s32.totalorder %s293, %s294
      %p303 = scmp.eq.s32.totalorder %s100, 0
      %p304 = por %p302, %p303
      %p305 = scmp.ne.s32.totalorder %s293, %s294
      %p306 = scmp.eq.s32.totalorder %s101, 1
      %p307 = por %p305, %p306
      %p309 = scmp.ne.s32.totalorder %s294, %s308
      %p310 = scmp.eq.s32.totalorder %s101, 0
      %p311 = por %p309, %p310
      %s313 = sadd.s32 %s312, 1
      %p316 = scmp.eq.s32.totalorder %s95, 1
      %p317 = scmp.ne.s32.totalorder %s312, %s314
      %p318 = scmp.eq.s32.totalorder %s95, 0
      %p319 = por %p317, %p318
      %p320 = scmp.ne.s32.totalorder %s312, %s314
      %p321 = scmp.eq.s32.totalorder %s100, 1
      %p322 = por %p320, %p321
      %p323 = scmp.ne.s32.totalorder %s314, %s315
      %p324 = scmp.eq.s32.totalorder %s100, 0
      %p325 = por %p323, %p324
      %p326 = scmp.ne.s32.totalorder %s314, %s315
      %p327 = scmp.eq.s32.totalorder %s101, 1
      %p328 = por %p326, %p327
      %p330 = scmp.ne.s32.totalorder %s315, %s329
      %p331 = scmp.eq.s32.totalorder %s101, 0
      %p332 = por %p330, %p331
      %s334 = sadd.s32 %s333, 1
      %p337 = scmp.eq.s32.totalorder %s95, 1
      %p338 = scmp.ne.s32.totalorder %s333, %s335
      %p339 = scmp.eq.s32.totalorder %s95, 0
      %p340 = por %p338, %p339
      %p341 = scmp.ne.s32.totalorder %s333, %s335
      %p342 = scmp.eq.s32.totalorder %s100, 1
      %p343 = por %p341, %p342
      %p344 = scmp.ne.s32.totalorder %s335, %s336
      %p345 = scmp.eq.s32.totalorder %s100, 0
      %p346 = por %p344, %p345
      %p347 = scmp.ne.s32.totalorder %s335, %s336
      %p348 = scmp.eq.s32.totalorder %s101, 1
      %p349 = por %p347, %p348
      %p351 = scmp.ne.s32.totalorder %s336, %s350
      %p352 = scmp.eq.s32.totalorder %s101, 0
      %p353 = por %p351, %p352
      %s355 = sadd.s32 %s354, 1
      %p358 = scmp.eq.s32.totalorder %s95, 1
      %p359 = scmp.ne.s32.totalorder %s354, %s356
      %p360 = scmp.eq.s32.totalorder %s95, 0
      %p361 = por %p359, %p360
      %p362 = scmp.ne.s32.totalorder %s354, %s356
      %p363 = scmp.eq.s32.totalorder %s100, 1
      %p364 = por %p362, %p363
      %p365 = scmp.ne.s32.totalorder %s356, %s357
      %p366 = scmp.eq.s32.totalorder %s100, 0
      %p367 = por %p365, %p366
      %p368 = scmp.ne.s32.totalorder %s356, %s357
      %p369 = scmp.eq.s32.totalorder %s101, 1
      %p370 = por %p368, %p369
      %p372 = scmp.ne.s32.totalorder %s357, %s371
      %p373 = scmp.eq.s32.totalorder %s101, 0
      %p374 = por %p372, %p373
      %s376 = sadd.s32 %s375, 1
      %p379 = scmp.eq.s32.totalorder %s95, 1
      %p380 = scmp.ne.s32.totalorder %s375, %s377
      %p381 = scmp.eq.s32.totalorder %s95, 0
      %p382 = por %p380, %p381
      %p383 = scmp.ne.s32.totalorder %s375, %s377
      %p384 = scmp.eq.s32.totalorder %s100, 1
      %p385 = por %p383, %p384
      %p386 = scmp.ne.s32.totalorder %s377, %s378
      %p387 = scmp.eq.s32.totalorder %s100, 0
      %p388 = por %p386, %p387
      %p389 = scmp.ne.s32.totalorder %s377, %s378
      %p390 = scmp.eq.s32.totalorder %s101, 1
      %p391 = por %p389, %p390
      %p393 = scmp.ne.s32.totalorder %s378, %s392
      %p394 = scmp.eq.s32.totalorder %s101, 0
      %p395 = por %p393, %p394
      %s397 = sadd.s32 %s396, 1
      %p400 = scmp.eq.s32.totalorder %s95, 1
      %p401 = scmp.ne.s32.totalorder %s396, %s398
      %p402 = scmp.eq.s32.totalorder %s95, 0
      %p403 = por %p401, %p402
      %p404 = scmp.ne.s32.totalorder %s396, %s398
      %p405 = scmp.eq.s32.totalorder %s100, 1
      %p406 = por %p404, %p405
      %p407 = scmp.ne.s32.totalorder %s398, %s399
      %p408 = scmp.eq.s32.totalorder %s100, 0
      %p409 = por %p407, %p408
      %p410 = scmp.ne.s32.totalorder %s398, %s399
      %p411 = scmp.eq.s32.totalorder %s101, 1
      %p412 = por %p410, %p411
      %p414 = scmp.ne.s32.totalorder %s399, %s413
      %p415 = scmp.eq.s32.totalorder %s101, 0
      %p416 = por %p414, %p415
      %s418 = sadd.s32 %s417, 1
      %p421 = scmp.eq.s32.totalorder %s95, 1
      %p422 = scmp.ne.s32.totalorder %s417, %s419
      %p423 = scmp.eq.s32.totalorder %s95, 0
      %p424 = por %p422, %p423
      %p425 = scmp.ne.s32.totalorder %s417, %s419
      %p426 = scmp.eq.s32.totalorder %s100, 1
      %p427 = por %p425, %p426
      %p428 = scmp.ne.s32.totalorder %s419, %s420
      %p429 = scmp.eq.s32.totalorder %s100, 0
      %p430 = por %p428, %p429
      %p431 = scmp.ne.s32.totalorder %s419, %s420
      %p432 = scmp.eq.s32.totalorder %s101, 1
      %p433 = por %p431, %p432
      %p435 = scmp.ne.s32.totalorder %s420, %s434
      %p436 = scmp.eq.s32.totalorder %s101, 0
      %p437 = por %p435, %p436
      %s439 = sadd.s32 %s438, 1
      %p442 = scmp.eq.s32.totalorder %s95, 1
      %p443 = scmp.ne.s32.totalorder %s438, %s440
      %p444 = scmp.eq.s32.totalorder %s95, 0
      %p445 = por %p443, %p444
      %p446 = scmp.ne.s32.totalorder %s438, %s440
      %p447 = scmp.eq.s32.totalorder %s100, 1
      %p448 = por %p446, %p447
      %p449 = scmp.ne.s32.totalorder %s440, %s441
      %p450 = scmp.eq.s32.totalorder %s100, 0
      %p451 = por %p449, %p450
      %p452 = scmp.ne.s32.totalorder %s440, %s441
      %p453 = scmp.eq.s32.totalorder %s101, 1
      %p454 = por %p452, %p453
      %p456 = scmp.ne.s32.totalorder %s441, %s455
      %p457 = scmp.eq.s32.totalorder %s101, 0
      %p458 = por %p456, %p457
      %s460 = sadd.s32 %s459, 1
      %p463 = scmp.eq.s32.totalorder %s95, 1
      %p464 = scmp.ne.s32.totalorder %s459, %s461
      %p465 = scmp.eq.s32.totalorder %s95, 0
      %p466 = por %p464, %p465
      %p467 = scmp.ne.s32.totalorder %s459, %s461
      %p468 = scmp.eq.s32.totalorder %s100, 1
      %p469 = por %p467, %p468
      %p470 = scmp.ne.s32.totalorder %s461, %s462
      %p471 = scmp.eq.s32.totalorder %s100, 0
      %p472 = por %p470, %p471
      %p473 = scmp.ne.s32.totalorder %s461, %s462
      %p474 = scmp.eq.s32.totalorder %s101, 1
      %p475 = por %p473, %p474
      %p477 = scmp.ne.s32.totalorder %s462, %s476
      %p478 = scmp.eq.s32.totalorder %s101, 0
      %p479 = por %p477, %p478
      %s481 = sadd.s32 %s480, 1
      %p484 = scmp.eq.s32.totalorder %s95, 1
      %p485 = scmp.ne.s32.totalorder %s480, %s482
      %p486 = scmp.eq.s32.totalorder %s95, 0
      %p487 = por %p485, %p486
      %p488 = scmp.ne.s32.totalorder %s480, %s482
      %p489 = scmp.eq.s32.totalorder %s100, 1
      %p490 = por %p488, %p489
      %p491 = scmp.ne.s32.totalorder %s482, %s483
      %p492 = scmp.eq.s32.totalorder %s100, 0
      %p493 = por %p491, %p492
      %p494 = scmp.ne.s32.totalorder %s482, %s483
      %p495 = scmp.eq.s32.totalorder %s101, 1
      %p496 = por %p494, %p495
      %p498 = scmp.ne.s32.totalorder %s483, %s497
      %p499 = scmp.eq.s32.totalorder %s101, 0
      %p500 = por %p498, %p499
      %s502 = sadd.s32 %s501, 1
      %p505 = scmp.eq.s32.totalorder %s95, 1
      %p506 = scmp.ne.s32.totalorder %s501, %s503
      %p507 = scmp.eq.s32.totalorder %s95, 0
      %p508 = por %p506, %p507
      %p509 = scmp.ne.s32.totalorder %s501, %s503
      %p510 = scmp.eq.s32.totalorder %s100, 1
      %p511 = por %p509, %p510
      %p512 = scmp.ne.s32.totalorder %s503, %s504
      %p513 = scmp.eq.s32.totalorder %s100, 0
      %p514 = por %p512, %p513
      %p515 = scmp.ne.s32.totalorder %s503, %s504
      %p516 = scmp.eq.s32.totalorder %s101, 1
      %p517 = por %p515, %p516
      %p519 = scmp.ne.s32.totalorder %s504, %s518
      %p520 = scmp.eq.s32.totalorder %s101, 0
      %p521 = por %p519, %p520
      %s523 = sadd.s32 %s522, 1
      %p526 = scmp.eq.s32.totalorder %s95, 1
      %p527 = scmp.ne.s32.totalorder %s522, %s524
      %p528 = scmp.eq.s32.totalorder %s95, 0
      %p529 = por %p527, %p528
      %p530 = scmp.ne.s32.totalorder %s522, %s524
      %p531 = scmp.eq.s32.totalorder %s100, 1
      %p532 = por %p530, %p531
      %p533 = scmp.ne.s32.totalorder %s524, %s525
      %p534 = scmp.eq.s32.totalorder %s100, 0
      %p535 = por %p533, %p534
      %p536 = scmp.ne.s32.totalorder %s524, %s525
      %p537 = scmp.eq.s32.totalorder %s101, 1
      %p538 = por %p536, %p537
      %p540 = scmp.ne.s32.totalorder %s525, %s539
      %p541 = scmp.eq.s32.totalorder %s101, 0
      %p542 = por %p540, %p541
      %s544 = sadd.s32 %s543, 1
      %p547 = scmp.eq.s32.totalorder %s95, 1
      %p548 = scmp.ne.s32.totalorder %s543, %s545
      %p549 = scmp.eq.s32.totalorder %s95, 0
      %p550 = por %p548, %p549
      %p551 = scmp.ne.s32.totalorder %s543, %s545
      %p552 = scmp.eq.s32.totalorder %s100, 1
      %p553 = por %p551, %p552
      %p554 = scmp.ne.s32.totalorder %s545, %s546
      %p555 = scmp.eq.s32.totalorder %s100, 0
      %p556 = por %p554, %p555
      %p557 = scmp.ne.s32.totalorder %s545, %s546
      %p558 = scmp.eq.s32.totalorder %s101, 1
      %p559 = por %p557, %p558
      %p561 = scmp.ne.s32.totalorder %s546, %s560
      %p562 = scmp.eq.s32.totalorder %s101, 0
      %p563 = por %p561, %p562
      %s565 = sadd.s32 %s564, 1
      %p568 = scmp.eq.s32.totalorder %s95, 1
      %p569 = scmp.ne.s32.totalorder %s564, %s566
      %p570 = scmp.eq.s32.totalorder %s95, 0
      %p571 = por %p569, %p570
      %p572 = scmp.ne.s32.totalorder %s564, %s566
      %p573 = scmp.eq.s32.totalorder %s100, 1
      %p574 = por %p572, %p573
      %p575 = scmp.ne.s32.totalorder %s566, %s567
      %p576 = scmp.eq.s32.totalorder %s100, 0
      %p577 = por %p575, %p576
      %p578 = scmp.ne.s32.totalorder %s566, %s567
      %p579 = scmp.eq.s32.totalorder %s101, 1
      %p580 = por %p578, %p579
      %p582 = scmp.ne.s32.totalorder %s567, %s581
      %p583 = scmp.eq.s32.totalorder %s101, 0
      %p584 = por %p582, %p583
      %s586 = sadd.s32 %s585, 1
      %p589 = scmp.eq.s32.totalorder %s95, 1
      %p590 = scmp.ne.s32.totalorder %s585, %s587
      %p591 = scmp.eq.s32.totalorder %s95, 0
      %p592 = por %p590, %p591
      %p593 = scmp.ne.s32.totalorder %s585, %s587
      %p594 = scmp.eq.s32.totalorder %s100, 1
      %p595 = por %p593, %p594
      %p596 = scmp.ne.s32.totalorder %s587, %s588
      %p597 = scmp.eq.s32.totalorder %s100, 0
      %p598 = por %p596, %p597
      %p599 = scmp.ne.s32.totalorder %s587, %s588
      %p600 = scmp.eq.s32.totalorder %s101, 1
      %p601 = por %p599, %p600
      %p603 = scmp.ne.s32.totalorder %s588, %s602
      %p604 = scmp.eq.s32.totalorder %s101, 0
      %p605 = por %p603, %p604
      %s607 = sadd.s32 %s606, 1
      %p610 = scmp.eq.s32.totalorder %s95, 1
      %p611 = scmp.ne.s32.totalorder %s606, %s608
      %p612 = scmp.eq.s32.totalorder %s95, 0
      %p613 = por %p611, %p612
      %p614 = scmp.ne.s32.totalorder %s606, %s608
      %p615 = scmp.eq.s32.totalorder %s100, 1
      %p616 = por %p614, %p615
      %p617 = scmp.ne.s32.totalorder %s608, %s609
      %p618 = scmp.eq.s32.totalorder %s100, 0
      %p619 = por %p617, %p618
      %p620 = scmp.ne.s32.totalorder %s608, %s609
      %p621 = scmp.eq.s32.totalorder %s101, 1
      %p622 = por %p620, %p621
      %p624 = scmp.ne.s32.totalorder %s609, %s623
      %p625 = scmp.eq.s32.totalorder %s101, 0
      %p626 = por %p624, %p625
      %s628 = sadd.s32 %s627, 1
      %p631 = scmp.eq.s32.totalorder %s95, 1
      %p632 = scmp.ne.s32.totalorder %s627, %s629
      %p633 = scmp.eq.s32.totalorder %s95, 0
      %p634 = por %p632, %p633
      %p635 = scmp.ne.s32.totalorder %s627, %s629
      %p636 = scmp.eq.s32.totalorder %s100, 1
      %p637 = por %p635, %p636
      %p638 = scmp.ne.s32.totalorder %s629, %s630
      %p639 = scmp.eq.s32.totalorder %s100, 0
      %p640 = por %p638, %p639
      %p641 = scmp.ne.s32.totalorder %s629, %s630
      %p642 = scmp.eq.s32.totalorder %s101, 1
      %p643 = por %p641, %p642
      %p645 = scmp.ne.s32.totalorder %s630, %s644
      %p646 = scmp.eq.s32.totalorder %s101, 0
      %p647 = por %p645, %p646
      %s649 = sadd.s32 %s648, 1
      %p652 = scmp.eq.s32.totalorder %s95, 1
      %p653 = scmp.ne.s32.totalorder %s648, %s650
      %p654 = scmp.eq.s32.totalorder %s95, 0
      %p655 = por %p653, %p654
      %p656 = scmp.ne.s32.totalorder %s648, %s650
      %p657 = scmp.eq.s32.totalorder %s100, 1
      %p658 = por %p656, %p657
      %p659 = scmp.ne.s32.totalorder %s650, %s651
      %p660 = scmp.eq.s32.totalorder %s100, 0
      %p661 = por %p659, %p660
      %p662 = scmp.ne.s32.totalorder %s650, %s651
      %p663 = scmp.eq.s32.totalorder %s101, 1
      %p664 = por %p662, %p663
      %p666 = scmp.ne.s32.totalorder %s651, %s665
      %p667 = scmp.eq.s32.totalorder %s101, 0
      %p668 = por %p666, %p667
      %s670 = sadd.s32 %s669, 1
      %p673 = scmp.eq.s32.totalorder %s95, 1
      %p674 = scmp.ne.s32.totalorder %s669, %s671
      %p675 = scmp.eq.s32.totalorder %s95, 0
      %p676 = por %p674, %p675
      %p677 = scmp.ne.s32.totalorder %s669, %s671
      %p678 = scmp.eq.s32.totalorder %s100, 1
      %p679 = por %p677, %p678
      %p680 = scmp.ne.s32.totalorder %s671, %s672
      %p681 = scmp.eq.s32.totalorder %s100, 0
      %p682 = por %p680, %p681
      %p683 = scmp.ne.s32.totalorder %s671, %s672
      %p684 = scmp.eq.s32.totalorder %s101, 1
      %p685 = por %p683, %p684
      %p687 = scmp.ne.s32.totalorder %s672, %s686
      %p688 = scmp.eq.s32.totalorder %s101, 0
      %p689 = por %p687, %p688
      %s691 = sadd.s32 %s690, 1
      %p694 = scmp.eq.s32.totalorder %s95, 1
      %p695 = scmp.ne.s32.totalorder %s690, %s692
      %p696 = scmp.eq.s32.totalorder %s95, 0
      %p697 = por %p695, %p696
      %p698 = scmp.ne.s32.totalorder %s690, %s692
      %p699 = scmp.eq.s32.totalorder %s100, 1
      %p700 = por %p698, %p699
      %p701 = scmp.ne.s32.totalorder %s692, %s693
      %p702 = scmp.eq.s32.totalorder %s100, 0
      %p703 = por %p701, %p702
      %p704 = scmp.ne.s32.totalorder %s692, %s693
      %p705 = scmp.eq.s32.totalorder %s101, 1
      %p706 = por %p704, %p705
      %p708 = scmp.ne.s32.totalorder %s693, %s707
      %p709 = scmp.eq.s32.totalorder %s101, 0
      %p710 = por %p708, %p709
      %s712 = sadd.s32 %s711, 1
      %p715 = scmp.eq.s32.totalorder %s95, 1
      %p716 = scmp.ne.s32.totalorder %s711, %s713
      %p717 = scmp.eq.s32.totalorder %s95, 0
      %p718 = por %p716, %p717
      %p719 = scmp.ne.s32.totalorder %s711, %s713
      %p720 = scmp.eq.s32.totalorder %s100, 1
      %p721 = por %p719, %p720
      %p722 = scmp.ne.s32.totalorder %s713, %s714
      %p723 = scmp.eq.s32.totalorder %s100, 0
      %p724 = por %p722, %p723
      %p725 = scmp.ne.s32.totalorder %s713, %s714
      %p726 = scmp.eq.s32.totalorder %s101, 1
      %p727 = por %p725, %p726
      %p729 = scmp.ne.s32.totalorder %s714, %s728
      %p730 = scmp.eq.s32.totalorder %s101, 0
      %p731 = por %p729, %p730
      %s733 = sadd.s32 %s732, 1
      %p736 = scmp.eq.s32.totalorder %s95, 1
      %p737 = scmp.ne.s32.totalorder %s732, %s734
      %p738 = scmp.eq.s32.totalorder %s95, 0
      %p739 = por %p737, %p738
      %p740 = scmp.ne.s32.totalorder %s732, %s734
      %p741 = scmp.eq.s32.totalorder %s100, 1
      %p742 = por %p740, %p741
      %p743 = scmp.ne.s32.totalorder %s734, %s735
      %p744 = scmp.eq.s32.totalorder %s100, 0
      %p745 = por %p743, %p744
      %p746 = scmp.ne.s32.totalorder %s734, %s735
      %p747 = scmp.eq.s32.totalorder %s101, 1
      %p748 = por %p746, %p747
      %p750 = scmp.ne.s32.totalorder %s735, %s749
      %p751 = scmp.eq.s32.totalorder %s101, 0
      %p752 = por %p750, %p751
      %s754 = sadd.s32 %s753, 1
      %p757 = scmp.eq.s32.totalorder %s95, 1
      %p758 = scmp.ne.s32.totalorder %s753, %s755
      %p759 = scmp.eq.s32.totalorder %s95, 0
      %p760 = por %p758, %p759
      %p761 = scmp.ne.s32.totalorder %s753, %s755
      %p762 = scmp.eq.s32.totalorder %s100, 1
      %p763 = por %p761, %p762
      %p764 = scmp.ne.s32.totalorder %s755, %s756
      %p765 = scmp.eq.s32.totalorder %s100, 0
      %p766 = por %p764, %p765
      %p767 = scmp.ne.s32.totalorder %s755, %s756
      %p768 = scmp.eq.s32.totalorder %s101, 1
      %p769 = por %p767, %p768
      %p771 = scmp.ne.s32.totalorder %s756, %s770
      %p772 = scmp.eq.s32.totalorder %s101, 0
      %p773 = por %p771, %p772
      %s775 = sadd.s32 %s774, 1
      %p778 = scmp.eq.s32.totalorder %s95, 1
      %p779 = scmp.ne.s32.totalorder %s774, %s776
      %p780 = scmp.eq.s32.totalorder %s95, 0
      %p781 = por %p779, %p780
      %p782 = scmp.ne.s32.totalorder %s774, %s776
      %p783 = scmp.eq.s32.totalorder %s100, 1
      %p784 = por %p782, %p783
      %p785 = scmp.ne.s32.totalorder %s776, %s777
      %p786 = scmp.eq.s32.totalorder %s100, 0
      %p787 = por %p785, %p786
      %p788 = scmp.ne.s32.totalorder %s776, %s777
      %p789 = scmp.eq.s32.totalorder %s101, 1
      %p790 = por %p788, %p789
      %p792 = scmp.ne.s32.totalorder %s777, %s791
      %p793 = scmp.eq.s32.totalorder %s101, 0
      %p794 = por %p792, %p793
      %s796 = sadd.s32 %s795, 1
      %p799 = scmp.eq.s32.totalorder %s95, 1
      %p800 = scmp.ne.s32.totalorder %s795, %s797
      %p801 = scmp.eq.s32.totalorder %s95, 0
      %p802 = por %p800, %p801
      %p803 = scmp.ne.s32.totalorder %s795, %s797
      %p804 = scmp.eq.s32.totalorder %s100, 1
      %p805 = por %p803, %p804
      %p806 = scmp.ne.s32.totalorder %s797, %s798
      %p807 = scmp.eq.s32.totalorder %s100, 0
      %p808 = por %p806, %p807
      %p809 = scmp.ne.s32.totalorder %s797, %s798
      %p810 = scmp.eq.s32.totalorder %s101, 1
      %p811 = por %p809, %p810
      %p813 = scmp.ne.s32.totalorder %s798, %s812
      %p814 = scmp.eq.s32.totalorder %s101, 0
      %p815 = por %p813, %p814
      %s817 = sadd.s32 %s816, 1
      %p820 = scmp.eq.s32.totalorder %s95, 1
      %p821 = scmp.ne.s32.totalorder %s816, %s818
      %p822 = scmp.eq.s32.totalorder %s95, 0
      %p823 = por %p821, %p822
      %p824 = scmp.ne.s32.totalorder %s816, %s818
      %p825 = scmp.eq.s32.totalorder %s100, 1
      %p826 = por %p824, %p825
      %p827 = scmp.ne.s32.totalorder %s818, %s819
      %p828 = scmp.eq.s32.totalorder %s100, 0
      %p829 = por %p827, %p828
      %p830 = scmp.ne.s32.totalorder %s818, %s819
      %p831 = scmp.eq.s32.totalorder %s101, 1
      %p832 = por %p830, %p831
      %p834 = scmp.ne.s32.totalorder %s819, %s833
      %p835 = scmp.eq.s32.totalorder %s101, 0
      %p836 = por %p834, %p835
      %s837 = ssub.s32 %s95, %s102
      %p838 = scmp.eq.s32.totalorder %s837, 0
      %s840 = sadd.s32 %s839, 1
      %s841 = scalar_select %p838, %s839, %s840
      %p844 = pneg %p838
      %p845 = scmp.eq.s32.totalorder %s95, 1
      %p846 = por %p844, %p845
      %p847 = scmp.ne.s32.totalorder %s839, %s842
      %p848 = scmp.eq.s32.totalorder %s95, 0
      %p849 = por %p847, %p848
      %p850 = scmp.ne.s32.totalorder %s839, %s842
      %p851 = scmp.eq.s32.totalorder %s100, 1
      %p852 = por %p850, %p851
      %p853 = scmp.ne.s32.totalorder %s842, %s843
      %p854 = scmp.eq.s32.totalorder %s100, 0
      %p855 = por %p853, %p854
      %p856 = scmp.ne.s32.totalorder %s842, %s843
      %p857 = scmp.eq.s32.totalorder %s101, 1
      %p858 = por %p856, %p857
      %p860 = scmp.ne.s32.totalorder %s843, %s859
      %p861 = scmp.eq.s32.totalorder %s101, 0
      %p862 = por %p860, %p861
      %s863 = ssub.s32 %s95, %s102
      %p864 = scmp.eq.s32.totalorder %s863, 0
      %s866 = sadd.s32 %s865, 1
      %s867 = scalar_select %p864, %s865, %s866
      %p870 = pneg %p864
      %p871 = scmp.eq.s32.totalorder %s95, 1
      %p872 = por %p870, %p871
      %p873 = scmp.ne.s32.totalorder %s865, %s868
      %p874 = scmp.eq.s32.totalorder %s95, 0
      %p875 = por %p873, %p874
      %p876 = scmp.ne.s32.totalorder %s865, %s868
      %p877 = scmp.eq.s32.totalorder %s100, 1
      %p878 = por %p876, %p877
      %p879 = scmp.ne.s32.totalorder %s868, %s869
      %p880 = scmp.eq.s32.totalorder %s100, 0
      %p881 = por %p879, %p880
      %p882 = scmp.ne.s32.totalorder %s868, %s869
      %p883 = scmp.eq.s32.totalorder %s101, 1
      %p884 = por %p882, %p883
      %p886 = scmp.ne.s32.totalorder %s869, %s885
      %p887 = scmp.eq.s32.totalorder %s101, 0
      %p888 = por %p886, %p887
      %p889 = scmp.le.s32.totalorder 1, %s95
      %p890 = scmp.lt.s32.totalorder %s95, 3
      %p891 = pnand %p889, %p890
      %p892 = pneg %p891
      // Predicated region
      $region9: #{tpu_custom_call.1} parent=5 // pred_check
        _
      $region10: #{tpu_custom_call.1} parent=5 // pred_check_branch
        %894 = sbr.rel (%p891) target = $region12
      $region11: #{tpu_custom_call.1} parent=5 // pred_region
        %s895 = ssub.s32 %s95, 1
        // Predicated region
        $region13: #{tpu_custom_call.1} parent=11 // pred_check
          %p896 = pneg %p220
        $region14: #{tpu_custom_call.1} parent=11 // pred_check_branch
          %898 = sbr.rel (%p896) target = $region16
        $region15: #{tpu_custom_call.1} parent=11 // pred_region
          %s900 = ssub.s32 32, 32
          %901 = vsyncadd [#allocation6], %s900
          %s903 = sshll.u32 [#allocation5], 4
          %s904 = int_to_ptr.vmem [resolvable:$true] %s903
          %906 = dma.hbm_to_vmem [thread:$0]  %s9, 32, %s904, [#allocation6]
        $region16: #{tpu_custom_call.1} parent=11 // pred_fallthru
          _
        // Predicated region
        $region17: #{tpu_custom_call.1} parent=11 // pred_check
          %p907 = pneg %p241
        $region18: #{tpu_custom_call.1} parent=11 // pred_check_branch
          %909 = sbr.rel (%p907) target = $region20
        $region19: #{tpu_custom_call.1} parent=11 // pred_region
          %s911 = ssub.s32 16, 16
          %912 = vsyncadd [#allocation6], %s911
          %s914 = sshll.u32 [#allocation7], 4
          %s915 = int_to_ptr.vmem [resolvable:$true] %s914
          %917 = dma.hbm_to_vmem [thread:$0]  %s11, 16, %s915, [#allocation6]
        $region20: #{tpu_custom_call.1} parent=11 // pred_fallthru
          _
        // Predicated region
        $region21: #{tpu_custom_call.1} parent=11 // pred_check
          %p918 = pneg %p262
        $region22: #{tpu_custom_call.1} parent=11 // pred_check_branch
          %920 = sbr.rel (%p918) target = $region24
        $region23: #{tpu_custom_call.1} parent=11 // pred_region
          %s922 = ssub.s32 16, 16
          %923 = vsyncadd [#allocation9], %s922
          %s925 = sshll.u32 [#allocation8], 4
          %s926 = int_to_ptr.vmem [resolvable:$true] %s925
          %928 = dma.hbm_to_vmem [thread:$0]  %s13, 16, %s926, [#allocation9]
        $region24: #{tpu_custom_call.1} parent=11 // pred_fallthru
          _
        // Predicated region
        $region25: #{tpu_custom_call.1} parent=11 // pred_check
          %p929 = pneg %p283
        $region26: #{tpu_custom_call.1} parent=11 // pred_check_branch
          %931 = sbr.rel (%p929) target = $region28
        $region27: #{tpu_custom_call.1} parent=11 // pred_region
          _
        $region28: #{tpu_custom_call.1} parent=11 // pred_fallthru
          _
        // Predicated region
        $region29: #{tpu_custom_call.1} parent=11 // pred_check
          %p932 = pneg %p304
        $region30: #{tpu_custom_call.1} parent=11 // pred_check_branch
          %934 = sbr.rel (%p932) target = $region32
        $region31: #{tpu_custom_call.1} parent=11 // pred_region
          %s936 = ssub.s32 16, 16
          %937 = vsyncadd [#allocation9], %s936
          %s939 = sshll.u32 [#allocation10], 4
          %s940 = int_to_ptr.vmem [resolvable:$true] %s939
          %942 = dma.hbm_to_vmem [thread:$0]  %s17, 16, %s940, [#allocation9]
        $region32: #{tpu_custom_call.1} parent=11 // pred_fallthru
          _
        // Predicated region
        $region33: #{tpu_custom_call.1} parent=11 // pred_check
          %p943 = pneg %p325
        $region34: #{tpu_custom_call.1} parent=11 // pred_check_branch
          %945 = sbr.rel (%p943) target = $region36
        $region35: #{tpu_custom_call.1} parent=11 // pred_region
          _
        $region36: #{tpu_custom_call.1} parent=11 // pred_fallthru
          _
        // Predicated region
        $region37: #{tpu_custom_call.1} parent=11 // pred_check
          %p946 = pneg %p346
        $region38: #{tpu_custom_call.1} parent=11 // pred_check_branch
          %948 = sbr.rel (%p946) target = $region40
        $region39: #{tpu_custom_call.1} parent=11 // pred_region
          %s950 = ssub.s32 16, 16
          %951 = vsyncadd [#allocation12], %s950
          %s953 = sshll.u32 [#allocation11], 4
          %s954 = int_to_ptr.vmem [resolvable:$true] %s953
          %956 = dma.hbm_to_vmem [thread:$0]  %s21, 16, %s954, [#allocation12]
        $region40: #{tpu_custom_call.1} parent=11 // pred_fallthru
          _
        // Predicated region
        $region41: #{tpu_custom_call.1} parent=11 // pred_check
          %p957 = pneg %p367
        $region42: #{tpu_custom_call.1} parent=11 // pred_check_branch
          %959 = sbr.rel (%p957) target = $region44
        $region43: #{tpu_custom_call.1} parent=11 // pred_region
          %s961 = ssub.s32 32, 32
          %962 = vsyncadd [#allocation12], %s961
          %s964 = sshll.u32 [#allocation13], 4
          %s965 = int_to_ptr.vmem [resolvable:$true] %s964
          %967 = dma.hbm_to_vmem [thread:$0]  %s23, 32, %s965, [#allocation12]
        $region44: #{tpu_custom_call.1} parent=11 // pred_fallthru
          _
        // Predicated region
        $region45: #{tpu_custom_call.1} parent=11 // pred_check
          %p968 = pneg %p388
        $region46: #{tpu_custom_call.1} parent=11 // pred_check_branch
          %970 = sbr.rel (%p968) target = $region48
        $region47: #{tpu_custom_call.1} parent=11 // pred_region
          %s972 = ssub.s32 16, 16
          %973 = vsyncadd [#allocation15], %s972
          %s975 = sshll.u32 [#allocation14], 4
          %s976 = int_to_ptr.vmem [resolvable:$true] %s975
          %978 = dma.hbm_to_vmem [thread:$0]  %s25, 16, %s976, [#allocation15]
        $region48: #{tpu_custom_call.1} parent=11 // pred_fallthru
          _
        // Predicated region
        $region49: #{tpu_custom_call.1} parent=11 // pred_check
          %p979 = pneg %p409
        $region50: #{tpu_custom_call.1} parent=11 // pred_check_branch
          %981 = sbr.rel (%p979) target = $region52
        $region51: #{tpu_custom_call.1} parent=11 // pred_region
          %s983 = ssub.s32 16, 16
          %984 = vsyncadd [#allocation15], %s983
          %s986 = sshll.u32 [#allocation16], 4
          %s987 = int_to_ptr.vmem [resolvable:$true] %s986
          %989 = dma.hbm_to_vmem [thread:$0]  %s27, 16, %s987, [#allocation15]
        $region52: #{tpu_custom_call.1} parent=11 // pred_fallthru
          _
        // Predicated region
        $region53: #{tpu_custom_call.1} parent=11 // pred_check
          %p990 = pneg %p430
        $region54: #{tpu_custom_call.1} parent=11 // pred_check_branch
          %992 = sbr.rel (%p990) target = $region56
        $region55: #{tpu_custom_call.1} parent=11 // pred_region
          _
        $region56: #{tpu_custom_call.1} parent=11 // pred_fallthru
          _
        // Predicated region
        $region57: #{tpu_custom_call.1} parent=11 // pred_check
          %p993 = pneg %p451
        $region58: #{tpu_custom_call.1} parent=11 // pred_check_branch
          %995 = sbr.rel (%p993) target = $region60
        $region59: #{tpu_custom_call.1} parent=11 // pred_region
          %s997 = ssub.s32 16, 16
          %998 = vsyncadd [#allocation18], %s997
          %s1000 = sshll.u32 [#allocation17], 4
          %s1001 = int_to_ptr.vmem [resolvable:$true] %s1000
          %1003 = dma.hbm_to_vmem [thread:$0]  %s31, 16, %s1001, [#allocation18]
        $region60: #{tpu_custom_call.1} parent=11 // pred_fallthru
          _
        // Predicated region
        $region61: #{tpu_custom_call.1} parent=11 // pred_check
          %p1004 = pneg %p472
        $region62: #{tpu_custom_call.1} parent=11 // pred_check_branch
          %1006 = sbr.rel (%p1004) target = $region64
        $region63: #{tpu_custom_call.1} parent=11 // pred_region
          _
        $region64: #{tpu_custom_call.1} parent=11 // pred_fallthru
          _
        // Predicated region
        $region65: #{tpu_custom_call.1} parent=11 // pred_check
          %p1007 = pneg %p493
        $region66: #{tpu_custom_call.1} parent=11 // pred_check_branch
          %1009 = sbr.rel (%p1007) target = $region68
        $region67: #{tpu_custom_call.1} parent=11 // pred_region
          %s1011 = ssub.s32 16, 16
          %1012 = vsyncadd [#allocation18], %s1011
          %s1014 = sshll.u32 [#allocation19], 4
          %s1015 = int_to_ptr.vmem [resolvable:$true] %s1014
          %1017 = dma.hbm_to_vmem [thread:$0]  %s35, 16, %s1015, [#allocation18]
        $region68: #{tpu_custom_call.1} parent=11 // pred_fallthru
          _
        // Predicated region
        $region69: #{tpu_custom_call.1} parent=11 // pred_check
          %p1018 = pneg %p514
        $region70: #{tpu_custom_call.1} parent=11 // pred_check_branch
          %1020 = sbr.rel (%p1018) target = $region72
        $region71: #{tpu_custom_call.1} parent=11 // pred_region
          %s1022 = ssub.s32 512, 512
          %1023 = vsyncadd [#allocation21], %s1022
          %s1024 = sshll.u32 [#allocation20], 4
          %s1025 = int_to_ptr.vmem [resolvable:$true] %s1024
          %1030 = dma.hbm_to_vmem [thread:$0]  %s37, 512, %s1025, [#allocation21], 128, 128, 8
        $region72: #{tpu_custom_call.1} parent=11 // pred_fallthru
          _
        // Predicated region
        $region73: #{tpu_custom_call.1} parent=11 // pred_check
          %p1031 = pneg %p535
        $region74: #{tpu_custom_call.1} parent=11 // pred_check_branch
          %1033 = sbr.rel (%p1031) target = $region76
        $region75: #{tpu_custom_call.1} parent=11 // pred_region
          %s1035 = ssub.s32 16, 16
          %1036 = vsyncadd [#allocation21], %s1035
          %s1038 = sshll.u32 [#allocation22], 4
          %s1039 = int_to_ptr.vmem [resolvable:$true] %s1038
          %1041 = dma.hbm_to_vmem [thread:$0]  %s39, 16, %s1039, [#allocation21]
        $region76: #{tpu_custom_call.1} parent=11 // pred_fallthru
          _
        // Predicated region
        $region77: #{tpu_custom_call.1} parent=11 // pred_check
          %p1042 = pneg %p556
        $region78: #{tpu_custom_call.1} parent=11 // pred_check_branch
          %1044 = sbr.rel (%p1042) target = $region80
        $region79: #{tpu_custom_call.1} parent=11 // pred_region
          %s1046 = ssub.s32 512, 512
          %1047 = vsyncadd [#allocation24], %s1046
          %s1048 = sshll.u32 [#allocation23], 4
          %s1049 = int_to_ptr.vmem [resolvable:$true] %s1048
          %1054 = dma.hbm_to_vmem [thread:$0]  %s41, 512, %s1049, [#allocation24], 128, 128, 8
        $region80: #{tpu_custom_call.1} parent=11 // pred_fallthru
          _
        // Predicated region
        $region81: #{tpu_custom_call.1} parent=11 // pred_check
          %p1055 = pneg %p577
        $region82: #{tpu_custom_call.1} parent=11 // pred_check_branch
          %1057 = sbr.rel (%p1055) target = $region84
        $region83: #{tpu_custom_call.1} parent=11 // pred_region
          %s1059 = ssub.s32 16, 16
          %1060 = vsyncadd [#allocation24], %s1059
          %s1062 = sshll.u32 [#allocation25], 4
          %s1063 = int_to_ptr.vmem [resolvable:$true] %s1062
          %1065 = dma.hbm_to_vmem [thread:$0]  %s43, 16, %s1063, [#allocation24]
        $region84: #{tpu_custom_call.1} parent=11 // pred_fallthru
          _
        // Predicated region
        $region85: #{tpu_custom_call.1} parent=11 // pred_check
          %p1066 = pneg %p598
        $region86: #{tpu_custom_call.1} parent=11 // pred_check_branch
          %1068 = sbr.rel (%p1066) target = $region88
        $region87: #{tpu_custom_call.1} parent=11 // pred_region
          %s1070 = ssub.s32 512, 512
          %1071 = vsyncadd [#allocation27], %s1070
          %s1072 = sshll.u32 [#allocation26], 4
          %s1073 = int_to_ptr.vmem [resolvable:$true] %s1072
          %1078 = dma.hbm_to_vmem [thread:$0]  %s45, 512, %s1073, [#allocation27], 128, 128, 8
        $region88: #{tpu_custom_call.1} parent=11 // pred_fallthru
          _
        // Predicated region
        $region89: #{tpu_custom_call.1} parent=11 // pred_check
          %p1079 = pneg %p619
        $region90: #{tpu_custom_call.1} parent=11 // pred_check_branch
          %1081 = sbr.rel (%p1079) target = $region92
        $region91: #{tpu_custom_call.1} parent=11 // pred_region
          %s1083 = ssub.s32 16, 16
          %1084 = vsyncadd [#allocation27], %s1083
          %s1086 = sshll.u32 [#allocation28], 4
          %s1087 = int_to_ptr.vmem [resolvable:$true] %s1086
          %1089 = dma.hbm_to_vmem [thread:$0]  %s47, 16, %s1087, [#allocation27]
        $region92: #{tpu_custom_call.1} parent=11 // pred_fallthru
          _
        // Predicated region
        $region93: #{tpu_custom_call.1} parent=11 // pred_check
          %p1090 = pneg %p640
        $region94: #{tpu_custom_call.1} parent=11 // pred_check_branch
          %1092 = sbr.rel (%p1090) target = $region96
        $region95: #{tpu_custom_call.1} parent=11 // pred_region
          %s1094 = ssub.s32 32, 32
          %1095 = vsyncadd [#allocation30], %s1094
          %s1097 = sshll.u32 [#allocation29], 4
          %s1098 = int_to_ptr.vmem [resolvable:$true] %s1097
          %1100 = dma.hbm_to_vmem [thread:$0]  %s49, 32, %s1098, [#allocation30]
        $region96: #{tpu_custom_call.1} parent=11 // pred_fallthru
          _
        // Predicated region
        $region97: #{tpu_custom_call.1} parent=11 // pred_check
          %p1101 = pneg %p661
        $region98: #{tpu_custom_call.1} parent=11 // pred_check_branch
          %1103 = sbr.rel (%p1101) target = $region100
        $region99: #{tpu_custom_call.1} parent=11 // pred_region
          %s1105 = ssub.s32 512, 512
          %1106 = vsyncadd [#allocation30], %s1105
          %s1107 = sshll.u32 [#allocation31], 4
          %s1108 = int_to_ptr.vmem [resolvable:$true] %s1107
          %1113 = dma.hbm_to_vmem [thread:$0]  %s51, 512, %s1108, [#allocation30], 128, 128, 8
        $region100: #{tpu_custom_call.1} parent=11 // pred_fallthru
          _
        // Predicated region
        $region101: #{tpu_custom_call.1} parent=11 // pred_check
          %p1114 = pneg %p682
        $region102: #{tpu_custom_call.1} parent=11 // pred_check_branch
          %1116 = sbr.rel (%p1114) target = $region104
        $region103: #{tpu_custom_call.1} parent=11 // pred_region
          %s1118 = ssub.s32 512, 512
          %1119 = vsyncadd [#allocation33], %s1118
          %s1120 = sshll.u32 [#allocation32], 4
          %s1121 = int_to_ptr.vmem [resolvable:$true] %s1120
          %1126 = dma.hbm_to_vmem [thread:$0]  %s53, 512, %s1121, [#allocation33], 128, 128, 8
        $region104: #{tpu_custom_call.1} parent=11 // pred_fallthru
          _
        // Predicated region
        $region105: #{tpu_custom_call.1} parent=11 // pred_check
          %p1127 = pneg %p703
        $region106: #{tpu_custom_call.1} parent=11 // pred_check_branch
          %1129 = sbr.rel (%p1127) target = $region108
        $region107: #{tpu_custom_call.1} parent=11 // pred_region
          %s1131 = ssub.s32 16, 16
          %1132 = vsyncadd [#allocation33], %s1131
          %s1134 = sshll.u32 [#allocation34], 4
          %s1135 = int_to_ptr.vmem [resolvable:$true] %s1134
          %1137 = dma.hbm_to_vmem [thread:$0]  %s55, 16, %s1135, [#allocation33]
        $region108: #{tpu_custom_call.1} parent=11 // pred_fallthru
          _
        // Predicated region
        $region109: #{tpu_custom_call.1} parent=11 // pred_check
          %p1138 = pneg %p724
        $region110: #{tpu_custom_call.1} parent=11 // pred_check_branch
          %1140 = sbr.rel (%p1138) target = $region112
        $region111: #{tpu_custom_call.1} parent=11 // pred_region
          %s1142 = ssub.s32 512, 512
          %1143 = vsyncadd [#allocation36], %s1142
          %s1144 = sshll.u32 [#allocation35], 4
          %s1145 = int_to_ptr.vmem [resolvable:$true] %s1144
          %1150 = dma.hbm_to_vmem [thread:$0]  %s57, 512, %s1145, [#allocation36], 128, 128, 8
        $region112: #{tpu_custom_call.1} parent=11 // pred_fallthru
          _
        // Predicated region
        $region113: #{tpu_custom_call.1} parent=11 // pred_check
          %p1151 = pneg %p745
        $region114: #{tpu_custom_call.1} parent=11 // pred_check_branch
          %1153 = sbr.rel (%p1151) target = $region116
        $region115: #{tpu_custom_call.1} parent=11 // pred_region
          %s1155 = ssub.s32 16, 16
          %1156 = vsyncadd [#allocation36], %s1155
          %s1158 = sshll.u32 [#allocation37], 4
          %s1159 = int_to_ptr.vmem [resolvable:$true] %s1158
          %1161 = dma.hbm_to_vmem [thread:$0]  %s59, 16, %s1159, [#allocation36]
        $region116: #{tpu_custom_call.1} parent=11 // pred_fallthru
          _
        // Predicated region
        $region117: #{tpu_custom_call.1} parent=11 // pred_check
          %p1162 = pneg %p766
        $region118: #{tpu_custom_call.1} parent=11 // pred_check_branch
          %1164 = sbr.rel (%p1162) target = $region120
        $region119: #{tpu_custom_call.1} parent=11 // pred_region
          _
        $region120: #{tpu_custom_call.1} parent=11 // pred_fallthru
          _
        // Predicated region
        $region121: #{tpu_custom_call.1} parent=11 // pred_check
          %p1165 = pneg %p787
        $region122: #{tpu_custom_call.1} parent=11 // pred_check_branch
          %1167 = sbr.rel (%p1165) target = $region124
        $region123: #{tpu_custom_call.1} parent=11 // pred_region
          _
        $region124: #{tpu_custom_call.1} parent=11 // pred_fallthru
          _
        // Predicated region
        $region125: #{tpu_custom_call.1} parent=11 // pred_check
          %p1168 = pneg %p808
        $region126: #{tpu_custom_call.1} parent=11 // pred_check_branch
          %1170 = sbr.rel (%p1168) target = $region128
        $region127: #{tpu_custom_call.1} parent=11 // pred_region
          _
        $region128: #{tpu_custom_call.1} parent=11 // pred_fallthru
          _
        // Predicated region
        $region129: #{tpu_custom_call.1} parent=11 // pred_check
          %p1171 = pneg %p829
        $region130: #{tpu_custom_call.1} parent=11 // pred_check_branch
          %1173 = sbr.rel (%p1171) target = $region132
        $region131: #{tpu_custom_call.1} parent=11 // pred_region
          _
        $region132: #{tpu_custom_call.1} parent=11 // pred_fallthru
          _
      $region12: #{tpu_custom_call.1} parent=5 // pred_fallthru
        _
      %p1174 = scmp.lt.s32.totalorder %s95, 2
      // Predicated region
      $region133: #{tpu_custom_call.1} parent=5 // pred_check
        %p1175 = pneg %p1174
      $region134: #{tpu_custom_call.1} parent=5 // pred_check_branch
        %1177 = sbr.rel (%p1175) target = $region136
      $region135: #{tpu_custom_call.1} parent=5 // pred_region
        // Predicated region
        $region137: #{tpu_custom_call.1} parent=135 // pred_check
          %p1178 = pneg %p115
        $region138: #{tpu_custom_call.1} parent=135 // pred_check_branch
          %1180 = sbr.rel (%p1178) target = $region140
        $region139: #{tpu_custom_call.1} parent=135 // pred_region
          %p1181 = scmp.lt.s32.totalorder %s95, 1
          %s1182 = scalar_select %p1181, %s95, 1
          %s1183 = smul.addr %s1182, 8
          %s1184 = scalar_lea.vmem %s1, %s1183
        $region140: #{tpu_custom_call.1} parent=135 // pred_fallthru
          _
        // Predicated region
        $region141: #{tpu_custom_call.1} parent=135 // pred_check
          %p1185 = pneg %p141
        $region142: #{tpu_custom_call.1} parent=135 // pred_check_branch
          %1187 = sbr.rel (%p1185) target = $region144
        $region143: #{tpu_custom_call.1} parent=135 // pred_region
          %p1188 = scmp.lt.s32.totalorder %s95, 1
          %s1189 = scalar_select %p1188, %s95, 1
          %s1190 = smul.addr %s1189, 8
          %s1191 = scalar_lea.vmem %s3, %s1190
        $region144: #{tpu_custom_call.1} parent=135 // pred_fallthru
          _
        // Predicated region
        $region145: #{tpu_custom_call.1} parent=135 // pred_check
          %p1192 = pneg %p167
        $region146: #{tpu_custom_call.1} parent=135 // pred_check_branch
          %1194 = sbr.rel (%p1192) target = $region148
        $region147: #{tpu_custom_call.1} parent=135 // pred_region
          %p1195 = scmp.lt.s32.totalorder %s95, 1
          %s1196 = scalar_select %p1195, %s95, 1
          %s1197 = smul.addr %s1196, 2
          %s1198 = smul.addr %s1197, 8
          %s1199 = scalar_lea.vmem %s5, %s1198
        $region148: #{tpu_custom_call.1} parent=135 // pred_fallthru
          _
        // Predicated region
        $region149: #{tpu_custom_call.1} parent=135 // pred_check
          %p1200 = pneg %p193
        $region150: #{tpu_custom_call.1} parent=135 // pred_check_branch
          %1202 = sbr.rel (%p1200) target = $region152
        $region151: #{tpu_custom_call.1} parent=135 // pred_region
          %s1203 = sand.u32 %s183, 1
          %s1204 = scalar_lea.sflag [#allocation3], %s1203
          %s1205 = sand.u32 %s183, 1
          %s1206 = scalar_lea.vmem [#allocation2], %s1205
          %s1208 = ssub.s32 16, 16
          %1209 = vsyncadd %s1204, %s1208
          %s1210 = smul.addr %s95, 16
          %s1211 = scalar_lea.hbm %s7, %s1210
          %s1213 = sshll.u32 %s1206, 4
          %s1214 = int_to_ptr.vmem [resolvable:$true] %s1213
          %1216 = dma.hbm_to_vmem [thread:$0]  %s1211, 16, %s1214, %s1204
        $region152: #{tpu_custom_call.1} parent=135 // pred_fallthru
          _
      $region136: #{tpu_custom_call.1} parent=5 // pred_fallthru
        _
      %p1217 = scmp.le.s32.totalorder 1, %s95
      %p1218 = scmp.lt.s32.totalorder %s95, 3
      %p1219 = pnand %p1217, %p1218
      %p1220 = pneg %p1219
      // Predicated region
      $region153: #{tpu_custom_call.1} parent=5 // pred_check
        _
      $region154: #{tpu_custom_call.1} parent=5 // pred_check_branch
        %1222 = sbr.rel (%p1219) target = $region156
      $region155: #{tpu_custom_call.1} parent=5 // pred_region
        %s1223 = ssub.s32 %s95, 1
        %s1224 = sand.u32 %s186, 1
        %s1225 = scalar_lea.sflag [#allocation3], %s1224
        %s1226 = sand.u32 %s186, 1
        %s1227 = scalar_lea.vmem [#allocation2], %s1226
        // Predicated region
        $region157: #{tpu_custom_call.1} parent=155 // pred_check
          %p1228 = pneg %p199
        $region158: #{tpu_custom_call.1} parent=155 // pred_check_branch
          %1230 = sbr.rel (%p1228) target = $region160
        $region159: #{tpu_custom_call.1} parent=155 // pred_region
          %1231 = dma.done %s1225, 16
        $region160: #{tpu_custom_call.1} parent=155 // pred_fallthru
          _
        // Predicated region
        $region161: #{tpu_custom_call.1} parent=155 // pred_check
          %p1232 = pneg %p220
        $region162: #{tpu_custom_call.1} parent=155 // pred_check_branch
          %1234 = sbr.rel (%p1232) target = $region164
        $region163: #{tpu_custom_call.1} parent=155 // pred_region
          %1235 = dma.done [#allocation6], 32
        $region164: #{tpu_custom_call.1} parent=155 // pred_fallthru
          _
        // Predicated region
        $region165: #{tpu_custom_call.1} parent=155 // pred_check
          %p1236 = pneg %p241
        $region166: #{tpu_custom_call.1} parent=155 // pred_check_branch
          %1238 = sbr.rel (%p1236) target = $region168
        $region167: #{tpu_custom_call.1} parent=155 // pred_region
          %1239 = dma.done [#allocation6], 16
        $region168: #{tpu_custom_call.1} parent=155 // pred_fallthru
          _
        // Predicated region
        $region169: #{tpu_custom_call.1} parent=155 // pred_check
          %p1240 = pneg %p262
        $region170: #{tpu_custom_call.1} parent=155 // pred_check_branch
          %1242 = sbr.rel (%p1240) target = $region172
        $region171: #{tpu_custom_call.1} parent=155 // pred_region
          %1243 = dma.done [#allocation9], 16
        $region172: #{tpu_custom_call.1} parent=155 // pred_fallthru
          _
        // Predicated region
        $region173: #{tpu_custom_call.1} parent=155 // pred_check
          %p1244 = pneg %p304
        $region174: #{tpu_custom_call.1} parent=155 // pred_check_branch
          %1246 = sbr.rel (%p1244) target = $region176
        $region175: #{tpu_custom_call.1} parent=155 // pred_region
          %1247 = dma.done [#allocation9], 16
        $region176: #{tpu_custom_call.1} parent=155 // pred_fallthru
          _
        // Predicated region
        $region177: #{tpu_custom_call.1} parent=155 // pred_check
          %p1248 = pneg %p346
        $region178: #{tpu_custom_call.1} parent=155 // pred_check_branch
          %1250 = sbr.rel (%p1248) target = $region180
        $region179: #{tpu_custom_call.1} parent=155 // pred_region
          %1251 = dma.done [#allocation12], 16
        $region180: #{tpu_custom_call.1} parent=155 // pred_fallthru
          _
        // Predicated region
        $region181: #{tpu_custom_call.1} parent=155 // pred_check
          %p1252 = pneg %p367
        $region182: #{tpu_custom_call.1} parent=155 // pred_check_branch
          %1254 = sbr.rel (%p1252) target = $region184
        $region183: #{tpu_custom_call.1} parent=155 // pred_region
          %1255 = dma.done [#allocation12], 32
        $region184: #{tpu_custom_call.1} parent=155 // pred_fallthru
          _
        // Predicated region
        $region185: #{tpu_custom_call.1} parent=155 // pred_check
          %p1256 = pneg %p388
        $region186: #{tpu_custom_call.1} parent=155 // pred_check_branch
          %1258 = sbr.rel (%p1256) target = $region188
        $region187: #{tpu_custom_call.1} parent=155 // pred_region
          %1259 = dma.done [#allocation15], 16
        $region188: #{tpu_custom_call.1} parent=155 // pred_fallthru
          _
        // Predicated region
        $region189: #{tpu_custom_call.1} parent=155 // pred_check
          %p1260 = pneg %p409
        $region190: #{tpu_custom_call.1} parent=155 // pred_check_branch
          %1262 = sbr.rel (%p1260) target = $region192
        $region191: #{tpu_custom_call.1} parent=155 // pred_region
          %1263 = dma.done [#allocation15], 16
        $region192: #{tpu_custom_call.1} parent=155 // pred_fallthru
          _
        // Predicated region
        $region193: #{tpu_custom_call.1} parent=155 // pred_check
          %p1264 = pneg %p451
        $region194: #{tpu_custom_call.1} parent=155 // pred_check_branch
          %1266 = sbr.rel (%p1264) target = $region196
        $region195: #{tpu_custom_call.1} parent=155 // pred_region
          %1267 = dma.done [#allocation18], 16
        $region196: #{tpu_custom_call.1} parent=155 // pred_fallthru
          _
        // Predicated region
        $region197: #{tpu_custom_call.1} parent=155 // pred_check
          %p1268 = pneg %p493
        $region198: #{tpu_custom_call.1} parent=155 // pred_check_branch
          %1270 = sbr.rel (%p1268) target = $region200
        $region199: #{tpu_custom_call.1} parent=155 // pred_region
          %1271 = dma.done [#allocation18], 16
        $region200: #{tpu_custom_call.1} parent=155 // pred_fallthru
          _
        // Predicated region
        $region201: #{tpu_custom_call.1} parent=155 // pred_check
          %p1272 = pneg %p514
        $region202: #{tpu_custom_call.1} parent=155 // pred_check_branch
          %1274 = sbr.rel (%p1272) target = $region204
        $region203: #{tpu_custom_call.1} parent=155 // pred_region
          %1275 = dma.done [#allocation21], 512
        $region204: #{tpu_custom_call.1} parent=155 // pred_fallthru
          _
        // Predicated region
        $region205: #{tpu_custom_call.1} parent=155 // pred_check
          %p1276 = pneg %p535
        $region206: #{tpu_custom_call.1} parent=155 // pred_check_branch
          %1278 = sbr.rel (%p1276) target = $region208
        $region207: #{tpu_custom_call.1} parent=155 // pred_region
          %1279 = dma.done [#allocation21], 16
        $region208: #{tpu_custom_call.1} parent=155 // pred_fallthru
          _
        // Predicated region
        $region209: #{tpu_custom_call.1} parent=155 // pred_check
          %p1280 = pneg %p556
        $region210: #{tpu_custom_call.1} parent=155 // pred_check_branch
          %1282 = sbr.rel (%p1280) target = $region212
        $region211: #{tpu_custom_call.1} parent=155 // pred_region
          %1283 = dma.done [#allocation24], 512
        $region212: #{tpu_custom_call.1} parent=155 // pred_fallthru
          _
        // Predicated region
        $region213: #{tpu_custom_call.1} parent=155 // pred_check
          %p1284 = pneg %p577
        $region214: #{tpu_custom_call.1} parent=155 // pred_check_branch
          %1286 = sbr.rel (%p1284) target = $region216
        $region215: #{tpu_custom_call.1} parent=155 // pred_region
          %1287 = dma.done [#allocation24], 16
        $region216: #{tpu_custom_call.1} parent=155 // pred_fallthru
          _
        // Predicated region
        $region217: #{tpu_custom_call.1} parent=155 // pred_check
          %p1288 = pneg %p598
        $region218: #{tpu_custom_call.1} parent=155 // pred_check_branch
          %1290 = sbr.rel (%p1288) target = $region220
        $region219: #{tpu_custom_call.1} parent=155 // pred_region
          %1291 = dma.done [#allocation27], 512
        $region220: #{tpu_custom_call.1} parent=155 // pred_fallthru
          _
        // Predicated region
        $region221: #{tpu_custom_call.1} parent=155 // pred_check
          %p1292 = pneg %p619
        $region222: #{tpu_custom_call.1} parent=155 // pred_check_branch
          %1294 = sbr.rel (%p1292) target = $region224
        $region223: #{tpu_custom_call.1} parent=155 // pred_region
          %1295 = dma.done [#allocation27], 16
        $region224: #{tpu_custom_call.1} parent=155 // pred_fallthru
          _
        // Predicated region
        $region225: #{tpu_custom_call.1} parent=155 // pred_check
          %p1296 = pneg %p640
        $region226: #{tpu_custom_call.1} parent=155 // pred_check_branch
          %1298 = sbr.rel (%p1296) target = $region228
        $region227: #{tpu_custom_call.1} parent=155 // pred_region
          %1299 = dma.done [#allocation30], 32
        $region228: #{tpu_custom_call.1} parent=155 // pred_fallthru
          _
        // Predicated region
        $region229: #{tpu_custom_call.1} parent=155 // pred_check
          %p1300 = pneg %p661
        $region230: #{tpu_custom_call.1} parent=155 // pred_check_branch
          %1302 = sbr.rel (%p1300) target = $region232
        $region231: #{tpu_custom_call.1} parent=155 // pred_region
          %1303 = dma.done [#allocation30], 512
        $region232: #{tpu_custom_call.1} parent=155 // pred_fallthru
          _
        // Predicated region
        $region233: #{tpu_custom_call.1} parent=155 // pred_check
          %p1304 = pneg %p682
        $region234: #{tpu_custom_call.1} parent=155 // pred_check_branch
          %1306 = sbr.rel (%p1304) target = $region236
        $region235: #{tpu_custom_call.1} parent=155 // pred_region
          %1307 = dma.done [#allocation33], 512
        $region236: #{tpu_custom_call.1} parent=155 // pred_fallthru
          _
        // Predicated region
        $region237: #{tpu_custom_call.1} parent=155 // pred_check
          %p1308 = pneg %p703
        $region238: #{tpu_custom_call.1} parent=155 // pred_check_branch
          %1310 = sbr.rel (%p1308) target = $region240
        $region239: #{tpu_custom_call.1} parent=155 // pred_region
          %1311 = dma.done [#allocation33], 16
        $region240: #{tpu_custom_call.1} parent=155 // pred_fallthru
          _
        // Predicated region
        $region241: #{tpu_custom_call.1} parent=155 // pred_check
          %p1312 = pneg %p724
        $region242: #{tpu_custom_call.1} parent=155 // pred_check_branch
          %1314 = sbr.rel (%p1312) target = $region244
        $region243: #{tpu_custom_call.1} parent=155 // pred_region
          %1315 = dma.done [#allocation36], 512
        $region244: #{tpu_custom_call.1} parent=155 // pred_fallthru
          _
        // Predicated region
        $region245: #{tpu_custom_call.1} parent=155 // pred_check
          %p1316 = pneg %p745
        $region246: #{tpu_custom_call.1} parent=155 // pred_check_branch
          %1318 = sbr.rel (%p1316) target = $region248
        $region247: #{tpu_custom_call.1} parent=155 // pred_region
          %1319 = dma.done [#allocation36], 16
        $region248: #{tpu_custom_call.1} parent=155 // pred_fallthru
          _
        %p1320 = scmp.lt.s32.totalorder %s100, 1
        %s1321 = scalar_select %p1320, %s100, 1
        %s1322 = smul.addr %s1321, 8
        %s1323 = scalar_lea.vmem %s1, %s1322
        %p1324 = pneg %p121
        %p1325 = pneg %p118
        %p1326 = scmp.lt.s32.totalorder %s100, 1
        %s1327 = scalar_select %p1326, %s100, 1
        %s1328 = smul.addr %s1327, 8
        %s1329 = scalar_lea.vmem %s3, %s1328
        %p1330 = pneg %p147
        %p1331 = pneg %p144
        %p1332 = scmp.lt.s32.totalorder %s100, 1
        %s1333 = scalar_select %p1332, %s100, 1
        %s1334 = smul.addr %s1333, 2
        %s1335 = smul.addr %s1334, 8
        %s1336 = scalar_lea.vmem %s5, %s1335
        %p1337 = pneg %p173
        %p1338 = pneg %p170
        %s1339 = sand.u32 %s186, 1
        %s1340 = scalar_lea.sflag [#allocation3], %s1339
        %s1341 = sand.u32 %s186, 1
        %s1342 = scalar_lea.vmem [#allocation2], %s1341
        %p1343 = pneg %p199
        %p1344 = pneg %p196
        %p1345 = pneg %p220
        %p1346 = pneg %p217
        %p1347 = pneg %p241
        %p1348 = pneg %p238
        %p1349 = pneg %p262
        %p1350 = pneg %p259
        %p1351 = pneg %p283
        %p1352 = pneg %p280
        %p1353 = pneg %p304
        %p1354 = pneg %p301
        %p1355 = pneg %p325
        %p1356 = pneg %p322
        %p1357 = pneg %p346
        %p1358 = pneg %p343
        %p1359 = pneg %p367
        %p1360 = pneg %p364
        %p1361 = pneg %p388
        %p1362 = pneg %p385
        %p1363 = pneg %p409
        %p1364 = pneg %p406
        %p1365 = pneg %p430
        %p1366 = pneg %p427
        %p1367 = pneg %p451
        %p1368 = pneg %p448
        %p1369 = pneg %p472
        %p1370 = pneg %p469
        %p1371 = pneg %p493
        %p1372 = pneg %p490
        %p1373 = pneg %p514
        %p1374 = pneg %p511
        %p1375 = pneg %p535
        %p1376 = pneg %p532
        %p1377 = pneg %p556
        %p1378 = pneg %p553
        %p1379 = pneg %p577
        %p1380 = pneg %p574
        %p1381 = pneg %p598
        %p1382 = pneg %p595
        %p1383 = pneg %p619
        %p1384 = pneg %p616
        %p1385 = pneg %p640
        %p1386 = pneg %p637
        %p1387 = pneg %p661
        %p1388 = pneg %p658
        %p1389 = pneg %p682
        %p1390 = pneg %p679
        %p1391 = pneg %p703
        %p1392 = pneg %p700
        %p1393 = pneg %p724
        %p1394 = pneg %p721
        %p1395 = pneg %p745
        %p1396 = pneg %p742
        %p1397 = pneg %p766
        %p1398 = pneg %p763
        %p1399 = pneg %p787
        %p1400 = pneg %p784
        %p1401 = pneg %p808
        %p1402 = pneg %p805
        %p1403 = pneg %p829
        %p1404 = pneg %p826
        %p1405 = pneg %p855
        %p1406 = pneg %p852
        %p1407 = scmp.lt.s32.totalorder %s100, 1
        %s1408 = scalar_select %p1407, %s100, 1
        %s1409 = smul.addr %s1408, 2
        %s1410 = smul.addr %s1409, 8
        %s1411 = scalar_lea.vmem %s69, %s1410
        %p1412 = pneg %p881
        %p1413 = pneg %p878
        %s1414 = sand.u32 %s868, 1
        %s1415 = scalar_lea.sflag [#allocation4], %s1414
        %s1416 = sand.u32 %s868, 1
        %s1417 = scalar_lea.vmem [#allocation38], %s1416
        %p1418 = scmp.lt.s32.totalorder %s100, 1
        %s1419 = scalar_select %p1418, %s100, 1
        %s1420 = smul.addr %s1419, 8
        %s1421 = scalar_lea.vmem %s1, %s1420
        %p1422 = scmp.lt.s32.totalorder %s100, 1
        %s1423 = scalar_select %p1422, %s100, 1
        %s1424 = smul.addr %s1423, 8
        %s1425 = scalar_lea.vmem %s3, %s1424
        %p1426 = scmp.lt.s32.totalorder %s100, 1
        %s1427 = scalar_select %p1426, %s100, 1
        %s1428 = smul.addr %s1427, 2
        %s1429 = smul.addr %s1428, 8
        %s1430 = scalar_lea.vmem %s5, %s1429
        %p1431 = scmp.lt.s32.totalorder %s100, 1
        %s1432 = scalar_select %p1431, %s100, 1
        %s1433 = smul.addr %s1432, 2
        %s1434 = smul.addr %s1433, 8
        %s1435 = scalar_lea.vmem %s69, %s1434
        %v1436 = vld [vmem:[%s1421] sm:$0xff]
        %v1437 = vld [vmem:[%s1425] sm:$0xff]
        %v1438 = vld [vmem:[%s1430] sm:$0xff]
        %v1439 = vld [vmem:[%s1430 + $0x8] sm:$0xff]
        %v1440 = vld [vmem:[%s1227] sm:$0x1]
        %v1441 = vld [vmem:[#allocation5] sm:$0x3]
        %v1442 = vld [vmem:[#allocation7] sm:$0x1]
        %vm1443 = vcmask 7168
        %v1445 = vsel %vm1443, %v1437, 0
        %vm1447 = vcmask 1040384
        %v1449 = vsel %vm1447, %v1442, 0
        %1451 = vmatprep.subr.mxu0 0.0
        %1452 = vmatpush1.msra.mxu0 0.0
        %1453 = vmatprep.subr.mxu0 0.0
        %1454 = vmatpush1.msra.mxu0 0.0
        %1455 = vmatprep.subr.mxu0 0.0
        %1456 = vmatpush1.msra.mxu0 0.0
        %1457 = vmatprep.subr.mxu0 0.0
        %1458 = vmatpush1.msra.mxu0 0.0
        %1459 = vmatprep.subr.mxu0 0.0
        %1460 = vmatpush1.msra.mxu0 0.0
        %1461 = vmatprep.subr.mxu0 0.0
        %1462 = vmatpush1.msra.mxu0 0.0
        %1463 = vmatprep.subr.mxu0 0.0
        %1464 = vmatpush1.msra.mxu0 0.0
        %1465 = vmatprep.subr.mxu0 0.0
        %1466 = vmatpush1.msra.mxu0 0.0
        %1467 = vmatprep.subr.mxu0 0.0
        %1468 = vmatpush1.msra.mxu0 0.0
        %1469 = vmatprep.subr.mxu0 0.0
        %1470 = vmatpush1.msra.mxu0 0.0
        %1471 = vmatprep.subr.mxu0 0.0
        %1472 = vmatpush1.msra.mxu0 0.0
        %1473 = vmatprep.subr.mxu0 0.0
        %1474 = vmatpush1.msra.mxu0 0.0
        %1475 = vmatprep.subr.mxu0 0.0
        %1476 = vmatpush1.msra.mxu0 0.0
        %1477 = vmatprep.subr.mxu0 0.0
        %1478 = vmatpush1.msra.mxu0 0.0
        %1479 = vmatprep.subr.mxu0 0.0
        %1480 = vmatpush1.msra.mxu0 0.0
        %1481 = vmatprep.subr.mxu0 0.0
        %1482 = vmatpush1.msra.mxu0 %v1449
        %1483 = vmatprep.subr.mxu0 0.0
        %1484 = vmatpush2.msra.mxu0 0.0
        %1485 = vmatprep.subr.mxu0 0.0
        %1486 = vmatpush2.msra.mxu0 0.0
        %1487 = vmatprep.subr.mxu0 0.0
        %1488 = vmatpush2.msra.mxu0 0.0
        %1489 = vmatprep.subr.mxu0 0.0
        %1490 = vmatpush2.msra.mxu0 0.0
        %1491 = vmatprep.subr.mxu0 0.0
        %1492 = vmatpush2.msra.mxu0 0.0
        %1493 = vmatprep.subr.mxu0 0.0
        %1494 = vmatpush2.msra.mxu0 0.0
        %1495 = vmatprep.subr.mxu0 0.0
        %1496 = vmatpush2.msra.mxu0 0.0
        %1497 = vmatprep.subr.mxu0 0.0
        %1498 = vmatpush2.msra.mxu0 0.0
        %1499 = vmatprep.subr.mxu0 0.0
        %1500 = vmatpush2.msra.mxu0 0.0
        %1501 = vmatprep.subr.mxu0 0.0
        %1502 = vmatpush2.msra.mxu0 0.0
        %1503 = vmatprep.subr.mxu0 0.0
        %1504 = vmatpush2.msra.mxu0 0.0
        %1505 = vmatprep.subr.mxu0 0.0
        %1506 = vmatpush2.msra.mxu0 0.0
        %1507 = vmatprep.subr.mxu0 0.0
        %1508 = vmatpush2.msra.mxu0 0.0
        %1509 = vmatprep.subr.mxu0 0.0
        %1510 = vmatpush2.msra.mxu0 0.0
        %1511 = vmatprep.subr.mxu0 0.0
        %1512 = vmatpush2.msra.mxu0 0.0
        %1513 = vmatprep.subr.mxu0 0.0
        %1514 = vmatpush2.msra.mxu0 0.0
        %1515 = vmatprep.mubr.f32.mxu0 0.0
        %1516 = vmatmul.mubr.f32.gmra.mxu0 %v1445
        %v1517 = vpop.f32.mrf.mxu0
        %v1518 = vadd.f32 0.0, %v1517
        %v1519 = vpop.f32.mrf.mxu0
        %1520 = vdwg.mxu0
        %vm1521 = vcmask 15360
        %v1523 = vsel %vm1521, %v1436, 0
        %vm1525 = vcmask 1041408
        %v1527 = vsel %vm1525, %v1441, 0
        %1529 = vmatprep.subr.mxu0 0.0
        %1530 = vmatpush1.msra.mxu0 0.0
        %1531 = vmatprep.subr.mxu0 0.0
        %1532 = vmatpush1.msra.mxu0 0.0
        %1533 = vmatprep.subr.mxu0 0.0
        %1534 = vmatpush1.msra.mxu0 0.0
        %1535 = vmatprep.subr.mxu0 0.0
        %1536 = vmatpush1.msra.mxu0 0.0
        %1537 = vmatprep.subr.mxu0 0.0
        %1538 = vmatpush1.msra.mxu0 0.0
        %1539 = vmatprep.subr.mxu0 0.0
        %1540 = vmatpush1.msra.mxu0 0.0
        %1541 = vmatprep.subr.mxu0 0.0
        %1542 = vmatpush1.msra.mxu0 0.0
        %1543 = vmatprep.subr.mxu0 0.0
        %1544 = vmatpush1.msra.mxu0 0.0
        %1545 = vmatprep.subr.mxu0 0.0
        %1546 = vmatpush1.msra.mxu0 0.0
        %1547 = vmatprep.subr.mxu0 0.0
        %1548 = vmatpush1.msra.mxu0 0.0
        %1549 = vmatprep.subr.mxu0 0.0
        %1550 = vmatpush1.msra.mxu0 0.0
        %1551 = vmatprep.subr.mxu0 0.0
        %1552 = vmatpush1.msra.mxu0 0.0
        %1553 = vmatprep.subr.mxu0 0.0
        %1554 = vmatpush1.msra.mxu0 0.0
        %1555 = vmatprep.subr.mxu0 0.0
        %1556 = vmatpush1.msra.mxu0 0.0
        %1557 = vmatprep.subr.mxu0 0.0
        %1558 = vmatpush1.msra.mxu0 0.0
        %1559 = vmatprep.subr.mxu0 0.0
        %1560 = vmatpush1.msra.mxu0 %v1527
        %1561 = vmatprep.subr.mxu0 0.0
        %1562 = vmatpush2.msra.mxu0 0.0
        %1563 = vmatprep.subr.mxu0 0.0
        %1564 = vmatpush2.msra.mxu0 0.0
        %1565 = vmatprep.subr.mxu0 0.0
        %1566 = vmatpush2.msra.mxu0 0.0
        %1567 = vmatprep.subr.mxu0 0.0
        %1568 = vmatpush2.msra.mxu0 0.0
        %1569 = vmatprep.subr.mxu0 0.0
        %1570 = vmatpush2.msra.mxu0 0.0
        %1571 = vmatprep.subr.mxu0 0.0
        %1572 = vmatpush2.msra.mxu0 0.0
        %1573 = vmatprep.subr.mxu0 0.0
        %1574 = vmatpush2.msra.mxu0 0.0
        %1575 = vmatprep.subr.mxu0 0.0
        %1576 = vmatpush2.msra.mxu0 0.0
        %1577 = vmatprep.subr.mxu0 0.0
        %1578 = vmatpush2.msra.mxu0 0.0
        %1579 = vmatprep.subr.mxu0 0.0
        %1580 = vmatpush2.msra.mxu0 0.0
        %1581 = vmatprep.subr.mxu0 0.0
        %1582 = vmatpush2.msra.mxu0 0.0
        %1583 = vmatprep.subr.mxu0 0.0
        %1584 = vmatpush2.msra.mxu0 0.0
        %1585 = vmatprep.subr.mxu0 0.0
        %1586 = vmatpush2.msra.mxu0 0.0
        %1587 = vmatprep.subr.mxu0 0.0
        %1588 = vmatpush2.msra.mxu0 0.0
        %1589 = vmatprep.subr.mxu0 0.0
        %1590 = vmatpush2.msra.mxu0 0.0
        %1591 = vmatprep.subr.mxu0 0.0
        %1592 = vmatpush2.msra.mxu0 0.0
        %1593 = vmatprep.mubr.f32.mxu0 0.0
        %1594 = vmatmul.mubr.f32.gmra.mxu0 %v1523
        %v1595 = vpop.f32.mrf.mxu0
        %v1596 = vadd.f32 %v1518, %v1595
        %v1597 = vpop.f32.mrf.mxu0
        %1598 = vdwg.mxu0
        %v1599 = vld [vmem:[#allocation8] sm:$0x1]
        %v1601 = vlaneseq
        %v1602 = vshrl.u32 %v1601, 7
        %v1603 = vsub.s32 0, %v1602
        %v1604 = vrot.slane %v1599, %v1603
        %v1606 = vadd.f32 %v1596, %v1604
        %v1607 = vmax.f32 %v1606, 0.0
        %v1608 = vld [vmem:[%s15] sm:$0xff]
        %v1609 = vld [vmem:[%s15 + $0x8] sm:$0xff]
        %v1610 = vld [vmem:[%s15 + $0x10] sm:$0xff]
        %v1611 = vld [vmem:[%s15 + $0x18] sm:$0xff]
        %v1612 = vld [vmem:[#allocation10] sm:$0x1]
        %v1614 = vlaneseq
        %v1615 = vshrl.u32 %v1614, 7
        %v1616 = vsub.s32 0, %v1615
        %v1617 = vrot.slane %v1612, %v1616
        %vm1619 = vcmask 261120
        %v1621 = vsel %vm1619, %v1607, 0
        %1623 = vmatprep.subr.mxu0 0.0
        %1624 = vmatpush1.msra.mxu0 0.0
        %1625 = vmatprep.subr.mxu0 0.0
        %1626 = vmatpush1.msra.mxu0 0.0
        %1627 = vmatprep.subr.mxu0 0.0
        %1628 = vmatpush1.msra.mxu0 0.0
        %1629 = vmatprep.subr.mxu0 0.0
        %1630 = vmatpush1.msra.mxu0 0.0
        %1631 = vmatprep.subr.mxu0 0.0
        %1632 = vmatpush1.msra.mxu0 0.0
        %1633 = vmatprep.subr.mxu0 0.0
        %1634 = vmatpush1.msra.mxu0 0.0
        %1635 = vmatprep.subr.mxu0 0.0
        %1636 = vmatpush1.msra.mxu0 0.0
        %1637 = vmatprep.subr.mxu0 0.0
        %1638 = vmatpush1.msra.mxu0 0.0
        %1639 = vmatprep.subr.mxu0 0.0
        %1640 = vmatpush1.msra.mxu0 0.0
        %1641 = vmatprep.subr.mxu0 0.0
        %1642 = vmatpush1.msra.mxu0 0.0
        %1643 = vmatprep.subr.mxu0 0.0
        %1644 = vmatpush1.msra.mxu0 0.0
        %1645 = vmatprep.subr.mxu0 0.0
        %1646 = vmatpush1.msra.mxu0 0.0
        %1647 = vmatprep.subr.mxu0 0.0
        %1648 = vmatpush1.msra.mxu0 %v1611
        %1649 = vmatprep.subr.mxu0 0.0
        %1650 = vmatpush1.msra.mxu0 %v1610
        %1651 = vmatprep.subr.mxu0 0.0
        %1652 = vmatpush1.msra.mxu0 %v1609
        %1653 = vmatprep.subr.mxu0 0.0
        %1654 = vmatpush1.msra.mxu0 %v1608
        %1655 = vmatprep.subr.mxu0 0.0
        %1656 = vmatpush2.msra.mxu0 0.0
        %1657 = vmatprep.subr.mxu0 0.0
        %1658 = vmatpush2.msra.mxu0 0.0
        %1659 = vmatprep.subr.mxu0 0.0
        %1660 = vmatpush2.msra.mxu0 0.0
        %1661 = vmatprep.subr.mxu0 0.0
        %1662 = vmatpush2.msra.mxu0 0.0
        %1663 = vmatprep.subr.mxu0 0.0
        %1664 = vmatpush2.msra.mxu0 0.0
        %1665 = vmatprep.subr.mxu0 0.0
        %1666 = vmatpush2.msra.mxu0 0.0
        %1667 = vmatprep.subr.mxu0 0.0
        %1668 = vmatpush2.msra.mxu0 0.0
        %1669 = vmatprep.subr.mxu0 0.0
        %1670 = vmatpush2.msra.mxu0 0.0
        %1671 = vmatprep.subr.mxu0 0.0
        %1672 = vmatpush2.msra.mxu0 0.0
        %1673 = vmatprep.subr.mxu0 0.0
        %1674 = vmatpush2.msra.mxu0 0.0
        %1675 = vmatprep.subr.mxu0 0.0
        %1676 = vmatpush2.msra.mxu0 0.0
        %1677 = vmatprep.subr.mxu0 0.0
        %1678 = vmatpush2.msra.mxu0 0.0
        %1679 = vmatprep.subr.mxu0 0.0
        %1680 = vmatpush2.msra.mxu0 0.0
        %1681 = vmatprep.subr.mxu0 0.0
        %1682 = vmatpush2.msra.mxu0 0.0
        %1683 = vmatprep.subr.mxu0 0.0
        %1684 = vmatpush2.msra.mxu0 0.0
        %1685 = vmatprep.subr.mxu0 0.0
        %1686 = vmatpush2.msra.mxu0 0.0
        %1687 = vmatprep.mubr.f32.mxu0 0.0
        %1688 = vmatmul.mubr.f32.gmra.mxu0 %v1621
        %v1689 = vpop.f32.mrf.mxu0
        %v1690 = vadd.f32 %v1617, %v1689
        %v1691 = vpop.f32.mrf.mxu0
        %1692 = vdwg.mxu0
        %v1693 = vmax.f32 %v1690, 0.0
        %v1694 = vld [vmem:[%s19] sm:$0xff]
        %v1695 = vld [vmem:[%s19 + $0x8] sm:$0xff]
        %v1696 = vld [vmem:[%s19 + $0x10] sm:$0xff]
        %v1697 = vld [vmem:[%s19 + $0x18] sm:$0xff]
        %v1698 = vld [vmem:[#allocation11] sm:$0x1]
        %v1700 = vlaneseq
        %v1701 = vshrl.u32 %v1700, 7
        %v1702 = vsub.s32 0, %v1701
        %v1703 = vrot.slane %v1698, %v1702
        %v1706 = vsel %vm1619, %v1693, 0
        %1708 = vmatprep.subr.mxu0 0.0
        %1709 = vmatpush1.msra.mxu0 0.0
        %1710 = vmatprep.subr.mxu0 0.0
        %1711 = vmatpush1.msra.mxu0 0.0
        %1712 = vmatprep.subr.mxu0 0.0
        %1713 = vmatpush1.msra.mxu0 0.0
        %1714 = vmatprep.subr.mxu0 0.0
        %1715 = vmatpush1.msra.mxu0 0.0
        %1716 = vmatprep.subr.mxu0 0.0
        %1717 = vmatpush1.msra.mxu0 0.0
        %1718 = vmatprep.subr.mxu0 0.0
        %1719 = vmatpush1.msra.mxu0 0.0
        %1720 = vmatprep.subr.mxu0 0.0
        %1721 = vmatpush1.msra.mxu0 0.0
        %1722 = vmatprep.subr.mxu0 0.0
        %1723 = vmatpush1.msra.mxu0 0.0
        %1724 = vmatprep.subr.mxu0 0.0
        %1725 = vmatpush1.msra.mxu0 0.0
        %1726 = vmatprep.subr.mxu0 0.0
        %1727 = vmatpush1.msra.mxu0 0.0
        %1728 = vmatprep.subr.mxu0 0.0
        %1729 = vmatpush1.msra.mxu0 0.0
        %1730 = vmatprep.subr.mxu0 0.0
        %1731 = vmatpush1.msra.mxu0 0.0
        %1732 = vmatprep.subr.mxu0 0.0
        %1733 = vmatpush1.msra.mxu0 %v1697
        %1734 = vmatprep.subr.mxu0 0.0
        %1735 = vmatpush1.msra.mxu0 %v1696
        %1736 = vmatprep.subr.mxu0 0.0
        %1737 = vmatpush1.msra.mxu0 %v1695
        %1738 = vmatprep.subr.mxu0 0.0
        %1739 = vmatpush1.msra.mxu0 %v1694
        %1740 = vmatprep.subr.mxu0 0.0
        %1741 = vmatpush2.msra.mxu0 0.0
        %1742 = vmatprep.subr.mxu0 0.0
        %1743 = vmatpush2.msra.mxu0 0.0
        %1744 = vmatprep.subr.mxu0 0.0
        %1745 = vmatpush2.msra.mxu0 0.0
        %1746 = vmatprep.subr.mxu0 0.0
        %1747 = vmatpush2.msra.mxu0 0.0
        %1748 = vmatprep.subr.mxu0 0.0
        %1749 = vmatpush2.msra.mxu0 0.0
        %1750 = vmatprep.subr.mxu0 0.0
        %1751 = vmatpush2.msra.mxu0 0.0
        %1752 = vmatprep.subr.mxu0 0.0
        %1753 = vmatpush2.msra.mxu0 0.0
        %1754 = vmatprep.subr.mxu0 0.0
        %1755 = vmatpush2.msra.mxu0 0.0
        %1756 = vmatprep.subr.mxu0 0.0
        %1757 = vmatpush2.msra.mxu0 0.0
        %1758 = vmatprep.subr.mxu0 0.0
        %1759 = vmatpush2.msra.mxu0 0.0
        %1760 = vmatprep.subr.mxu0 0.0
        %1761 = vmatpush2.msra.mxu0 0.0
        %1762 = vmatprep.subr.mxu0 0.0
        %1763 = vmatpush2.msra.mxu0 0.0
        %1764 = vmatprep.subr.mxu0 0.0
        %1765 = vmatpush2.msra.mxu0 0.0
        %1766 = vmatprep.subr.mxu0 0.0
        %1767 = vmatpush2.msra.mxu0 0.0
        %1768 = vmatprep.subr.mxu0 0.0
        %1769 = vmatpush2.msra.mxu0 0.0
        %1770 = vmatprep.subr.mxu0 0.0
        %1771 = vmatpush2.msra.mxu0 0.0
        %1772 = vmatprep.mubr.f32.mxu0 0.0
        %1773 = vmatmul.mubr.f32.gmra.mxu0 %v1706
        %v1774 = vpop.f32.mrf.mxu0
        %v1775 = vadd.f32 %v1703, %v1774
        %v1776 = vpop.f32.mrf.mxu0
        %1777 = vdwg.mxu0
        %v1779 = vsel %vm1521, %v1438, 0
        %v1782 = vsel %vm1521, %v1439, 0
        %1784 = vmatprep.subr.mxu0 0.0
        %1785 = vmatpush1.xpose.msra.mxu0 0.0
        %1786 = vmatprep.subr.mxu0 0.0
        %1787 = vmatpush1.xpose.msra.mxu0 0.0
        %1788 = vmatprep.subr.mxu0 0.0
        %1789 = vmatpush1.xpose.msra.mxu0 0.0
        %1790 = vmatprep.subr.mxu0 0.0
        %1791 = vmatpush1.xpose.msra.mxu0 0.0
        %1792 = vmatprep.subr.mxu0 0.0
        %1793 = vmatpush1.xpose.msra.mxu0 0.0
        %1794 = vmatprep.subr.mxu0 0.0
        %1795 = vmatpush1.xpose.msra.mxu0 0.0
        %1796 = vmatprep.subr.mxu0 0.0
        %1797 = vmatpush1.xpose.msra.mxu0 0.0
        %1798 = vmatprep.subr.mxu0 0.0
        %1799 = vmatpush1.xpose.msra.mxu0 0.0
        %1800 = vmatprep.subr.mxu0 0.0
        %1801 = vmatpush1.xpose.msra.mxu0 0.0
        %1802 = vmatprep.subr.mxu0 0.0
        %1803 = vmatpush1.xpose.msra.mxu0 0.0
        %1804 = vmatprep.subr.mxu0 0.0
        %1805 = vmatpush1.xpose.msra.mxu0 0.0
        %1806 = vmatprep.subr.mxu0 0.0
        %1807 = vmatpush1.xpose.msra.mxu0 0.0
        %1808 = vmatprep.subr.mxu0 0.0
        %1809 = vmatpush1.xpose.msra.mxu0 0.0
        %1810 = vmatprep.subr.mxu0 0.0
        %1811 = vmatpush1.xpose.msra.mxu0 0.0
        %1812 = vmatprep.subr.mxu0 0.0
        %1813 = vmatpush1.xpose.msra.mxu0 0.0
        %1814 = vmatprep.subr.mxu0 0.0
        %1815 = vmatpush1.xpose.msra.mxu0 %v1523
        %1816 = vmatprep.subr.mxu0 0.0
        %1817 = vmatpush2.xpose.msra.mxu0 0.0
        %1818 = vmatprep.subr.mxu0 0.0
        %1819 = vmatpush2.xpose.msra.mxu0 0.0
        %1820 = vmatprep.subr.mxu0 0.0
        %1821 = vmatpush2.xpose.msra.mxu0 0.0
        %1822 = vmatprep.subr.mxu0 0.0
        %1823 = vmatpush2.xpose.msra.mxu0 0.0
        %1824 = vmatprep.subr.mxu0 0.0
        %1825 = vmatpush2.xpose.msra.mxu0 0.0
        %1826 = vmatprep.subr.mxu0 0.0
        %1827 = vmatpush2.xpose.msra.mxu0 0.0
        %1828 = vmatprep.subr.mxu0 0.0
        %1829 = vmatpush2.xpose.msra.mxu0 0.0
        %1830 = vmatprep.subr.mxu0 0.0
        %1831 = vmatpush2.xpose.msra.mxu0 0.0
        %1832 = vmatprep.subr.mxu0 0.0
        %1833 = vmatpush2.xpose.msra.mxu0 0.0
        %1834 = vmatprep.subr.mxu0 0.0
        %1835 = vmatpush2.xpose.msra.mxu0 0.0
        %1836 = vmatprep.subr.mxu0 0.0
        %1837 = vmatpush2.xpose.msra.mxu0 0.0
        %1838 = vmatprep.subr.mxu0 0.0
        %1839 = vmatpush2.xpose.msra.mxu0 0.0
        %1840 = vmatprep.subr.mxu0 0.0
        %1841 = vmatpush2.xpose.msra.mxu0 0.0
        %1842 = vmatprep.subr.mxu0 0.0
        %1843 = vmatpush2.xpose.msra.mxu0 0.0
        %1844 = vmatprep.subr.mxu0 0.0
        %1845 = vmatpush2.xpose.msra.mxu0 0.0
        %1846 = vmatprep.subr.mxu0 0.0
        %1847 = vmatpush2.xpose.msra.mxu0 0.0
        %1848 = vmatprep.mubr.f32.mxu0 0.0
        %1849 = vmatmul.mubr.f32.gmra.mxu0 %v1779
        %v1850 = vpop.f32.mrf.mxu0
        %v1851 = vadd.f32 0.0, %v1850
        %v1852 = vpop.f32.mrf.mxu0
        %1853 = vmatprep.mubr.f32.mxu0 0.0
        %1854 = vmatmul.mubr.f32.gmra.mxu0 %v1782
        %v1855 = vpop.f32.mrf.mxu0
        %v1856 = vadd.f32 0.0, %v1855
        %v1857 = vpop.f32.mrf.mxu0
        %1858 = vdwg.mxu0
        %v1859 = vmul.f32 %v1851, 0.70710677
        %v1860 = vmul.f32 %v1856, 0.70710677
        %vm1861 = vcmask 64512
        %v1862 = vsel %vm1861, %v1859, -inf
        %1863 = vmax.xlane.f32.xlu0 %v1862
        %v1864 = vpop.xlane.xlu0 %1863
        %v1865 = vsel %vm1861, %v1860, -inf
        %1866 = vmax.xlane.f32.xlu0 %v1865
        %v1867 = vpop.xlane.xlu0 %1866
        %v1868 = vsub.f32 %v1859, %v1864
        %v1869 = vsub.f32 %v1860, %v1867
        %v1870 = vmul.f32 %v1868, 1.442695
        %v1871 = vpow.pop %v1870
        %v1872 = vmul.f32 %v1869, 1.442695
        %v1873 = vpow.pop %v1872
        %v1874 = vsel %vm1861, %v1871, 0.0
        %1875 = vadd.xlane.f32.xlu0 %v1874
        %v1876 = vpop.xlane.xlu0 %1875
        %v1877 = vsel %vm1861, %v1873, 0.0
        %1878 = vadd.xlane.f32.xlu0 %v1877
        %v1879 = vpop.xlane.xlu0 %1878
        %v1880 = vrcp.pop %v1876
        %v1881 = vrcp.pop %v1879
        %v1882 = vmul.f32 %v1871, %v1880
        %v1883 = vmul.f32 %v1873, %v1881
        %v1885 = vsel %vm1861, %v1882, 0
        %v1888 = vsel %vm1861, %v1883, 0
        %1890 = vmatprep.subr.mxu0 0.0
        %1891 = vmatpush1.msra.mxu0 0.0
        %1892 = vmatprep.subr.mxu0 0.0
        %1893 = vmatpush1.msra.mxu0 0.0
        %1894 = vmatprep.subr.mxu0 0.0
        %1895 = vmatpush1.msra.mxu0 0.0
        %1896 = vmatprep.subr.mxu0 0.0
        %1897 = vmatpush1.msra.mxu0 0.0
        %1898 = vmatprep.subr.mxu0 0.0
        %1899 = vmatpush1.msra.mxu0 0.0
        %1900 = vmatprep.subr.mxu0 0.0
        %1901 = vmatpush1.msra.mxu0 0.0
        %1902 = vmatprep.subr.mxu0 0.0
        %1903 = vmatpush1.msra.mxu0 0.0
        %1904 = vmatprep.subr.mxu0 0.0
        %1905 = vmatpush1.msra.mxu0 0.0
        %1906 = vmatprep.subr.mxu0 0.0
        %1907 = vmatpush1.msra.mxu0 0.0
        %1908 = vmatprep.subr.mxu0 0.0
        %1909 = vmatpush1.msra.mxu0 0.0
        %1910 = vmatprep.subr.mxu0 0.0
        %1911 = vmatpush1.msra.mxu0 0.0
        %1912 = vmatprep.subr.mxu0 0.0
        %1913 = vmatpush1.msra.mxu0 0.0
        %1914 = vmatprep.subr.mxu0 0.0
        %1915 = vmatpush1.msra.mxu0 0.0
        %1916 = vmatprep.subr.mxu0 0.0
        %1917 = vmatpush1.msra.mxu0 0.0
        %1918 = vmatprep.subr.mxu0 0.0
        %1919 = vmatpush1.msra.mxu0 0.0
        %1920 = vmatprep.subr.mxu0 0.0
        %1921 = vmatpush1.msra.mxu0 %v1775
        %1922 = vmatprep.subr.mxu0 0.0
        %1923 = vmatpush2.msra.mxu0 0.0
        %1924 = vmatprep.subr.mxu0 0.0
        %1925 = vmatpush2.msra.mxu0 0.0
        %1926 = vmatprep.subr.mxu0 0.0
        %1927 = vmatpush2.msra.mxu0 0.0
        %1928 = vmatprep.subr.mxu0 0.0
        %1929 = vmatpush2.msra.mxu0 0.0
        %1930 = vmatprep.subr.mxu0 0.0
        %1931 = vmatpush2.msra.mxu0 0.0
        %1932 = vmatprep.subr.mxu0 0.0
        %1933 = vmatpush2.msra.mxu0 0.0
        %1934 = vmatprep.subr.mxu0 0.0
        %1935 = vmatpush2.msra.mxu0 0.0
        %1936 = vmatprep.subr.mxu0 0.0
        %1937 = vmatpush2.msra.mxu0 0.0
        %1938 = vmatprep.subr.mxu0 0.0
        %1939 = vmatpush2.msra.mxu0 0.0
        %1940 = vmatprep.subr.mxu0 0.0
        %1941 = vmatpush2.msra.mxu0 0.0
        %1942 = vmatprep.subr.mxu0 0.0
        %1943 = vmatpush2.msra.mxu0 0.0
        %1944 = vmatprep.subr.mxu0 0.0
        %1945 = vmatpush2.msra.mxu0 0.0
        %1946 = vmatprep.subr.mxu0 0.0
        %1947 = vmatpush2.msra.mxu0 0.0
        %1948 = vmatprep.subr.mxu0 0.0
        %1949 = vmatpush2.msra.mxu0 0.0
        %1950 = vmatprep.subr.mxu0 0.0
        %1951 = vmatpush2.msra.mxu0 0.0
        %1952 = vmatprep.subr.mxu0 0.0
        %1953 = vmatpush2.msra.mxu0 0.0
        %1954 = vmatprep.mubr.f32.mxu0 0.0
        %1955 = vmatmul.mubr.f32.gmra.mxu0 %v1885
        %v1956 = vpop.f32.mrf.mxu0
        %v1957 = vadd.f32 0.0, %v1956
        %v1958 = vpop.f32.mrf.mxu0
        %1959 = vmatprep.mubr.f32.mxu0 0.0
        %1960 = vmatmul.mubr.f32.gmra.mxu0 %v1888
        %v1961 = vpop.f32.mrf.mxu0
        %v1962 = vadd.f32 0.0, %v1961
        %v1963 = vpop.f32.mrf.mxu0
        %1964 = vdwg.mxu0
        %v1965 = vld [vmem:[#allocation13] sm:$0x3]
        %v1966 = vld [vmem:[#allocation14] sm:$0x1]
        %v1968 = vsel %vm1447, %v1966, 0
        %1970 = vmatprep.subr.mxu0 0.0
        %1971 = vmatpush1.msra.mxu0 0.0
        %1972 = vmatprep.subr.mxu0 0.0
        %1973 = vmatpush1.msra.mxu0 0.0
        %1974 = vmatprep.subr.mxu0 0.0
        %1975 = vmatpush1.msra.mxu0 0.0
        %1976 = vmatprep.subr.mxu0 0.0
        %1977 = vmatpush1.msra.mxu0 0.0
        %1978 = vmatprep.subr.mxu0 0.0
        %1979 = vmatpush1.msra.mxu0 0.0
        %1980 = vmatprep.subr.mxu0 0.0
        %1981 = vmatpush1.msra.mxu0 0.0
        %1982 = vmatprep.subr.mxu0 0.0
        %1983 = vmatpush1.msra.mxu0 0.0
        %1984 = vmatprep.subr.mxu0 0.0
        %1985 = vmatpush1.msra.mxu0 0.0
        %1986 = vmatprep.subr.mxu0 0.0
        %1987 = vmatpush1.msra.mxu0 0.0
        %1988 = vmatprep.subr.mxu0 0.0
        %1989 = vmatpush1.msra.mxu0 0.0
        %1990 = vmatprep.subr.mxu0 0.0
        %1991 = vmatpush1.msra.mxu0 0.0
        %1992 = vmatprep.subr.mxu0 0.0
        %1993 = vmatpush1.msra.mxu0 0.0
        %1994 = vmatprep.subr.mxu0 0.0
        %1995 = vmatpush1.msra.mxu0 0.0
        %1996 = vmatprep.subr.mxu0 0.0
        %1997 = vmatpush1.msra.mxu0 0.0
        %1998 = vmatprep.subr.mxu0 0.0
        %1999 = vmatpush1.msra.mxu0 0.0
        %2000 = vmatprep.subr.mxu0 0.0
        %2001 = vmatpush1.msra.mxu0 %v1968
        %2002 = vmatprep.subr.mxu0 0.0
        %2003 = vmatpush2.msra.mxu0 0.0
        %2004 = vmatprep.subr.mxu0 0.0
        %2005 = vmatpush2.msra.mxu0 0.0
        %2006 = vmatprep.subr.mxu0 0.0
        %2007 = vmatpush2.msra.mxu0 0.0
        %2008 = vmatprep.subr.mxu0 0.0
        %2009 = vmatpush2.msra.mxu0 0.0
        %2010 = vmatprep.subr.mxu0 0.0
        %2011 = vmatpush2.msra.mxu0 0.0
        %2012 = vmatprep.subr.mxu0 0.0
        %2013 = vmatpush2.msra.mxu0 0.0
        %2014 = vmatprep.subr.mxu0 0.0
        %2015 = vmatpush2.msra.mxu0 0.0
        %2016 = vmatprep.subr.mxu0 0.0
        %2017 = vmatpush2.msra.mxu0 0.0
        %2018 = vmatprep.subr.mxu0 0.0
        %2019 = vmatpush2.msra.mxu0 0.0
        %2020 = vmatprep.subr.mxu0 0.0
        %2021 = vmatpush2.msra.mxu0 0.0
        %2022 = vmatprep.subr.mxu0 0.0
        %2023 = vmatpush2.msra.mxu0 0.0
        %2024 = vmatprep.subr.mxu0 0.0
        %2025 = vmatpush2.msra.mxu0 0.0
        %2026 = vmatprep.subr.mxu0 0.0
        %2027 = vmatpush2.msra.mxu0 0.0
        %2028 = vmatprep.subr.mxu0 0.0
        %2029 = vmatpush2.msra.mxu0 0.0
        %2030 = vmatprep.subr.mxu0 0.0
        %2031 = vmatpush2.msra.mxu0 0.0
        %2032 = vmatprep.subr.mxu0 0.0
        %2033 = vmatpush2.msra.mxu0 0.0
        %2034 = vmatprep.mubr.f32.mxu0 0.0
        %2035 = vmatmul.mubr.f32.gmra.mxu0 %v1445
        %v2036 = vpop.f32.mrf.mxu0
        %v2037 = vadd.f32 0.0, %v2036
        %v2038 = vpop.f32.mrf.mxu0
        %2039 = vdwg.mxu0
        %v2041 = vsel %vm1525, %v1965, 0
        %2043 = vmatprep.subr.mxu0 0.0
        %2044 = vmatpush1.msra.mxu0 0.0
        %2045 = vmatprep.subr.mxu0 0.0
        %2046 = vmatpush1.msra.mxu0 0.0
        %2047 = vmatprep.subr.mxu0 0.0
        %2048 = vmatpush1.msra.mxu0 0.0
        %2049 = vmatprep.subr.mxu0 0.0
        %2050 = vmatpush1.msra.mxu0 0.0
        %2051 = vmatprep.subr.mxu0 0.0
        %2052 = vmatpush1.msra.mxu0 0.0
        %2053 = vmatprep.subr.mxu0 0.0
        %2054 = vmatpush1.msra.mxu0 0.0
        %2055 = vmatprep.subr.mxu0 0.0
        %2056 = vmatpush1.msra.mxu0 0.0
        %2057 = vmatprep.subr.mxu0 0.0
        %2058 = vmatpush1.msra.mxu0 0.0
        %2059 = vmatprep.subr.mxu0 0.0
        %2060 = vmatpush1.msra.mxu0 0.0
        %2061 = vmatprep.subr.mxu0 0.0
        %2062 = vmatpush1.msra.mxu0 0.0
        %2063 = vmatprep.subr.mxu0 0.0
        %2064 = vmatpush1.msra.mxu0 0.0
        %2065 = vmatprep.subr.mxu0 0.0
        %2066 = vmatpush1.msra.mxu0 0.0
        %2067 = vmatprep.subr.mxu0 0.0
        %2068 = vmatpush1.msra.mxu0 0.0
        %2069 = vmatprep.subr.mxu0 0.0
        %2070 = vmatpush1.msra.mxu0 0.0
        %2071 = vmatprep.subr.mxu0 0.0
        %2072 = vmatpush1.msra.mxu0 0.0
        %2073 = vmatprep.subr.mxu0 0.0
        %2074 = vmatpush1.msra.mxu0 %v2041
        %2075 = vmatprep.subr.mxu0 0.0
        %2076 = vmatpush2.msra.mxu0 0.0
        %2077 = vmatprep.subr.mxu0 0.0
        %2078 = vmatpush2.msra.mxu0 0.0
        %2079 = vmatprep.subr.mxu0 0.0
        %2080 = vmatpush2.msra.mxu0 0.0
        %2081 = vmatprep.subr.mxu0 0.0
        %2082 = vmatpush2.msra.mxu0 0.0
        %2083 = vmatprep.subr.mxu0 0.0
        %2084 = vmatpush2.msra.mxu0 0.0
        %2085 = vmatprep.subr.mxu0 0.0
        %2086 = vmatpush2.msra.mxu0 0.0
        %2087 = vmatprep.subr.mxu0 0.0
        %2088 = vmatpush2.msra.mxu0 0.0
        %2089 = vmatprep.subr.mxu0 0.0
        %2090 = vmatpush2.msra.mxu0 0.0
        %2091 = vmatprep.subr.mxu0 0.0
        %2092 = vmatpush2.msra.mxu0 0.0
        %2093 = vmatprep.subr.mxu0 0.0
        %2094 = vmatpush2.msra.mxu0 0.0
        %2095 = vmatprep.subr.mxu0 0.0
        %2096 = vmatpush2.msra.mxu0 0.0
        %2097 = vmatprep.subr.mxu0 0.0
        %2098 = vmatpush2.msra.mxu0 0.0
        %2099 = vmatprep.subr.mxu0 0.0
        %2100 = vmatpush2.msra.mxu0 0.0
        %2101 = vmatprep.subr.mxu0 0.0
        %2102 = vmatpush2.msra.mxu0 0.0
        %2103 = vmatprep.subr.mxu0 0.0
        %2104 = vmatpush2.msra.mxu0 0.0
        %2105 = vmatprep.subr.mxu0 0.0
        %2106 = vmatpush2.msra.mxu0 0.0
        %2107 = vmatprep.mubr.f32.mxu0 0.0
        %2108 = vmatmul.mubr.f32.gmra.mxu0 %v1523
        %v2109 = vpop.f32.mrf.mxu0
        %v2110 = vadd.f32 %v2037, %v2109
        %v2111 = vpop.f32.mrf.mxu0
        %2112 = vdwg.mxu0
        %v2113 = vld [vmem:[#allocation16] sm:$0x1]
        %v2115 = vlaneseq
        %v2116 = vshrl.u32 %v2115, 7
        %v2117 = vsub.s32 0, %v2116
        %v2118 = vrot.slane %v2113, %v2117
        %v2120 = vadd.f32 %v2110, %v2118
        %v2121 = vmax.f32 %v2120, 0.0
        %v2122 = vld [vmem:[%s29] sm:$0xff]
        %v2123 = vld [vmem:[%s29 + $0x8] sm:$0xff]
        %v2124 = vld [vmem:[%s29 + $0x10] sm:$0xff]
        %v2125 = vld [vmem:[%s29 + $0x18] sm:$0xff]
        %v2126 = vld [vmem:[#allocation17] sm:$0x1]
        %v2128 = vlaneseq
        %v2129 = vshrl.u32 %v2128, 7
        %v2130 = vsub.s32 0, %v2129
        %v2131 = vrot.slane %v2126, %v2130
        %v2134 = vsel %vm1619, %v2121, 0
        %2136 = vmatprep.subr.mxu0 0.0
        %2137 = vmatpush1.msra.mxu0 0.0
        %2138 = vmatprep.subr.mxu0 0.0
        %2139 = vmatpush1.msra.mxu0 0.0
        %2140 = vmatprep.subr.mxu0 0.0
        %2141 = vmatpush1.msra.mxu0 0.0
        %2142 = vmatprep.subr.mxu0 0.0
        %2143 = vmatpush1.msra.mxu0 0.0
        %2144 = vmatprep.subr.mxu0 0.0
        %2145 = vmatpush1.msra.mxu0 0.0
        %2146 = vmatprep.subr.mxu0 0.0
        %2147 = vmatpush1.msra.mxu0 0.0
        %2148 = vmatprep.subr.mxu0 0.0
        %2149 = vmatpush1.msra.mxu0 0.0
        %2150 = vmatprep.subr.mxu0 0.0
        %2151 = vmatpush1.msra.mxu0 0.0
        %2152 = vmatprep.subr.mxu0 0.0
        %2153 = vmatpush1.msra.mxu0 0.0
        %2154 = vmatprep.subr.mxu0 0.0
        %2155 = vmatpush1.msra.mxu0 0.0
        %2156 = vmatprep.subr.mxu0 0.0
        %2157 = vmatpush1.msra.mxu0 0.0
        %2158 = vmatprep.subr.mxu0 0.0
        %2159 = vmatpush1.msra.mxu0 0.0
        %2160 = vmatprep.subr.mxu0 0.0
        %2161 = vmatpush1.msra.mxu0 %v2125
        %2162 = vmatprep.subr.mxu0 0.0
        %2163 = vmatpush1.msra.mxu0 %v2124
        %2164 = vmatprep.subr.mxu0 0.0
        %2165 = vmatpush1.msra.mxu0 %v2123
        %2166 = vmatprep.subr.mxu0 0.0
        %2167 = vmatpush1.msra.mxu0 %v2122
        %2168 = vmatprep.subr.mxu0 0.0
        %2169 = vmatpush2.msra.mxu0 0.0
        %2170 = vmatprep.subr.mxu0 0.0
        %2171 = vmatpush2.msra.mxu0 0.0
        %2172 = vmatprep.subr.mxu0 0.0
        %2173 = vmatpush2.msra.mxu0 0.0
        %2174 = vmatprep.subr.mxu0 0.0
        %2175 = vmatpush2.msra.mxu0 0.0
        %2176 = vmatprep.subr.mxu0 0.0
        %2177 = vmatpush2.msra.mxu0 0.0
        %2178 = vmatprep.subr.mxu0 0.0
        %2179 = vmatpush2.msra.mxu0 0.0
        %2180 = vmatprep.subr.mxu0 0.0
        %2181 = vmatpush2.msra.mxu0 0.0
        %2182 = vmatprep.subr.mxu0 0.0
        %2183 = vmatpush2.msra.mxu0 0.0
        %2184 = vmatprep.subr.mxu0 0.0
        %2185 = vmatpush2.msra.mxu0 0.0
        %2186 = vmatprep.subr.mxu0 0.0
        %2187 = vmatpush2.msra.mxu0 0.0
        %2188 = vmatprep.subr.mxu0 0.0
        %2189 = vmatpush2.msra.mxu0 0.0
        %2190 = vmatprep.subr.mxu0 0.0
        %2191 = vmatpush2.msra.mxu0 0.0
        %2192 = vmatprep.subr.mxu0 0.0
        %2193 = vmatpush2.msra.mxu0 0.0
        %2194 = vmatprep.subr.mxu0 0.0
        %2195 = vmatpush2.msra.mxu0 0.0
        %2196 = vmatprep.subr.mxu0 0.0
        %2197 = vmatpush2.msra.mxu0 0.0
        %2198 = vmatprep.subr.mxu0 0.0
        %2199 = vmatpush2.msra.mxu0 0.0
        %2200 = vmatprep.mubr.f32.mxu0 0.0
        %2201 = vmatmul.mubr.f32.gmra.mxu0 %v2134
        %v2202 = vpop.f32.mrf.mxu0
        %v2203 = vadd.f32 %v2131, %v2202
        %v2204 = vpop.f32.mrf.mxu0
        %2205 = vdwg.mxu0
        %v2206 = vmax.f32 %v2203, 0.0
        %v2207 = vld [vmem:[%s33] sm:$0xff]
        %v2208 = vld [vmem:[%s33 + $0x8] sm:$0xff]
        %v2209 = vld [vmem:[%s33 + $0x10] sm:$0xff]
        %v2210 = vld [vmem:[%s33 + $0x18] sm:$0xff]
        %v2211 = vld [vmem:[#allocation19] sm:$0x1]
        %v2213 = vlaneseq
        %v2214 = vshrl.u32 %v2213, 7
        %v2215 = vsub.s32 0, %v2214
        %v2216 = vrot.slane %v2211, %v2215
        %v2219 = vsel %vm1619, %v2206, 0
        %2221 = vmatprep.subr.mxu0 0.0
        %2222 = vmatpush1.msra.mxu0 0.0
        %2223 = vmatprep.subr.mxu0 0.0
        %2224 = vmatpush1.msra.mxu0 0.0
        %2225 = vmatprep.subr.mxu0 0.0
        %2226 = vmatpush1.msra.mxu0 0.0
        %2227 = vmatprep.subr.mxu0 0.0
        %2228 = vmatpush1.msra.mxu0 0.0
        %2229 = vmatprep.subr.mxu0 0.0
        %2230 = vmatpush1.msra.mxu0 0.0
        %2231 = vmatprep.subr.mxu0 0.0
        %2232 = vmatpush1.msra.mxu0 0.0
        %2233 = vmatprep.subr.mxu0 0.0
        %2234 = vmatpush1.msra.mxu0 0.0
        %2235 = vmatprep.subr.mxu0 0.0
        %2236 = vmatpush1.msra.mxu0 0.0
        %2237 = vmatprep.subr.mxu0 0.0
        %2238 = vmatpush1.msra.mxu0 0.0
        %2239 = vmatprep.subr.mxu0 0.0
        %2240 = vmatpush1.msra.mxu0 0.0
        %2241 = vmatprep.subr.mxu0 0.0
        %2242 = vmatpush1.msra.mxu0 0.0
        %2243 = vmatprep.subr.mxu0 0.0
        %2244 = vmatpush1.msra.mxu0 0.0
        %2245 = vmatprep.subr.mxu0 0.0
        %2246 = vmatpush1.msra.mxu0 %v2210
        %2247 = vmatprep.subr.mxu0 0.0
        %2248 = vmatpush1.msra.mxu0 %v2209
        %2249 = vmatprep.subr.mxu0 0.0
        %2250 = vmatpush1.msra.mxu0 %v2208
        %2251 = vmatprep.subr.mxu0 0.0
        %2252 = vmatpush1.msra.mxu0 %v2207
        %2253 = vmatprep.subr.mxu0 0.0
        %2254 = vmatpush2.msra.mxu0 0.0
        %2255 = vmatprep.subr.mxu0 0.0
        %2256 = vmatpush2.msra.mxu0 0.0
        %2257 = vmatprep.subr.mxu0 0.0
        %2258 = vmatpush2.msra.mxu0 0.0
        %2259 = vmatprep.subr.mxu0 0.0
        %2260 = vmatpush2.msra.mxu0 0.0
        %2261 = vmatprep.subr.mxu0 0.0
        %2262 = vmatpush2.msra.mxu0 0.0
        %2263 = vmatprep.subr.mxu0 0.0
        %2264 = vmatpush2.msra.mxu0 0.0
        %2265 = vmatprep.subr.mxu0 0.0
        %2266 = vmatpush2.msra.mxu0 0.0
        %2267 = vmatprep.subr.mxu0 0.0
        %2268 = vmatpush2.msra.mxu0 0.0
        %2269 = vmatprep.subr.mxu0 0.0
        %2270 = vmatpush2.msra.mxu0 0.0
        %2271 = vmatprep.subr.mxu0 0.0
        %2272 = vmatpush2.msra.mxu0 0.0
        %2273 = vmatprep.subr.mxu0 0.0
        %2274 = vmatpush2.msra.mxu0 0.0
        %2275 = vmatprep.subr.mxu0 0.0
        %2276 = vmatpush2.msra.mxu0 0.0
        %2277 = vmatprep.subr.mxu0 0.0
        %2278 = vmatpush2.msra.mxu0 0.0
        %2279 = vmatprep.subr.mxu0 0.0
        %2280 = vmatpush2.msra.mxu0 0.0
        %2281 = vmatprep.subr.mxu0 0.0
        %2282 = vmatpush2.msra.mxu0 0.0
        %2283 = vmatprep.subr.mxu0 0.0
        %2284 = vmatpush2.msra.mxu0 0.0
        %2285 = vmatprep.mubr.f32.mxu0 0.0
        %2286 = vmatmul.mubr.f32.gmra.mxu0 %v2219
        %v2287 = vpop.f32.mrf.mxu0
        %v2288 = vadd.f32 %v2216, %v2287
        %v2289 = vpop.f32.mrf.mxu0
        %2290 = vdwg.mxu0
        %v2291 = vsel %vm1619, %v2288, 0.0
        %v2292 = vrot.slane %v2291, 4
        %v2293 = vadd.f32 %v2291, %v2292
        %v2294 = vrot.slane %v2293, 2
        %v2295 = vadd.f32 %v2293, %v2294
        %v2296 = vrot.slane %v2295, 1
        %v2297 = vadd.f32 %v2295, %v2296
        %v2298 = vrcp.pop 8.0
        %v2299 = vmul.f32 %v2297, %v2298
        %v2300 = vld [vmem:[#allocation20] sm:$0xff]
        %v2301 = vld [vmem:[#allocation20 + $0x8] sm:$0xff]
        %v2302 = vld [vmem:[#allocation20 + $0x10] sm:$0xff]
        %v2303 = vld [vmem:[#allocation20 + $0x18] sm:$0xff]
        %v2304 = vld [vmem:[#allocation22] sm:$0x1]
        %v2306 = vsel %vm1619, %v2299, 0
        %2308 = vmatprep.subr.mxu0 0.0
        %2309 = vmatpush1.msra.mxu0 0.0
        %2310 = vmatprep.subr.mxu0 0.0
        %2311 = vmatpush1.msra.mxu0 0.0
        %2312 = vmatprep.subr.mxu0 0.0
        %2313 = vmatpush1.msra.mxu0 0.0
        %2314 = vmatprep.subr.mxu0 0.0
        %2315 = vmatpush1.msra.mxu0 0.0
        %2316 = vmatprep.subr.mxu0 0.0
        %2317 = vmatpush1.msra.mxu0 0.0
        %2318 = vmatprep.subr.mxu0 0.0
        %2319 = vmatpush1.msra.mxu0 0.0
        %2320 = vmatprep.subr.mxu0 0.0
        %2321 = vmatpush1.msra.mxu0 0.0
        %2322 = vmatprep.subr.mxu0 0.0
        %2323 = vmatpush1.msra.mxu0 0.0
        %2324 = vmatprep.subr.mxu0 0.0
        %2325 = vmatpush1.msra.mxu0 0.0
        %2326 = vmatprep.subr.mxu0 0.0
        %2327 = vmatpush1.msra.mxu0 0.0
        %2328 = vmatprep.subr.mxu0 0.0
        %2329 = vmatpush1.msra.mxu0 0.0
        %2330 = vmatprep.subr.mxu0 0.0
        %2331 = vmatpush1.msra.mxu0 0.0
        %2332 = vmatprep.subr.mxu0 0.0
        %2333 = vmatpush1.msra.mxu0 %v2303
        %2334 = vmatprep.subr.mxu0 0.0
        %2335 = vmatpush1.msra.mxu0 %v2302
        %2336 = vmatprep.subr.mxu0 0.0
        %2337 = vmatpush1.msra.mxu0 %v2301
        %2338 = vmatprep.subr.mxu0 0.0
        %2339 = vmatpush1.msra.mxu0 %v2300
        %2340 = vmatprep.subr.mxu0 0.0
        %2341 = vmatpush2.msra.mxu0 0.0
        %2342 = vmatprep.subr.mxu0 0.0
        %2343 = vmatpush2.msra.mxu0 0.0
        %2344 = vmatprep.subr.mxu0 0.0
        %2345 = vmatpush2.msra.mxu0 0.0
        %2346 = vmatprep.subr.mxu0 0.0
        %2347 = vmatpush2.msra.mxu0 0.0
        %2348 = vmatprep.subr.mxu0 0.0
        %2349 = vmatpush2.msra.mxu0 0.0
        %2350 = vmatprep.subr.mxu0 0.0
        %2351 = vmatpush2.msra.mxu0 0.0
        %2352 = vmatprep.subr.mxu0 0.0
        %2353 = vmatpush2.msra.mxu0 0.0
        %2354 = vmatprep.subr.mxu0 0.0
        %2355 = vmatpush2.msra.mxu0 0.0
        %2356 = vmatprep.subr.mxu0 0.0
        %2357 = vmatpush2.msra.mxu0 0.0
        %2358 = vmatprep.subr.mxu0 0.0
        %2359 = vmatpush2.msra.mxu0 0.0
        %2360 = vmatprep.subr.mxu0 0.0
        %2361 = vmatpush2.msra.mxu0 0.0
        %2362 = vmatprep.subr.mxu0 0.0
        %2363 = vmatpush2.msra.mxu0 0.0
        %2364 = vmatprep.subr.mxu0 0.0
        %2365 = vmatpush2.msra.mxu0 0.0
        %2366 = vmatprep.subr.mxu0 0.0
        %2367 = vmatpush2.msra.mxu0 0.0
        %2368 = vmatprep.subr.mxu0 0.0
        %2369 = vmatpush2.msra.mxu0 0.0
        %2370 = vmatprep.subr.mxu0 0.0
        %2371 = vmatpush2.msra.mxu0 0.0
        %2372 = vmatprep.mubr.f32.mxu0 0.0
        %2373 = vmatmul.mubr.f32.gmra.mxu0 %v2306
        %v2374 = vpop.f32.mrf.mxu0
        %v2375 = vadd.f32 %v2304, %v2374
        %v2376 = vpop.f32.mrf.mxu0
        %2377 = vdwg.mxu0
        %v2378 = vmax.f32 %v2375, 0.0
        %v2379 = vld [vmem:[#allocation23] sm:$0xff]
        %v2380 = vld [vmem:[#allocation23 + $0x8] sm:$0xff]
        %v2381 = vld [vmem:[#allocation23 + $0x10] sm:$0xff]
        %v2382 = vld [vmem:[#allocation23 + $0x18] sm:$0xff]
        %v2383 = vld [vmem:[#allocation25] sm:$0x1]
        %v2385 = vsel %vm1619, %v2378, 0
        %2387 = vmatprep.subr.mxu0 0.0
        %2388 = vmatpush1.msra.mxu0 0.0
        %2389 = vmatprep.subr.mxu0 0.0
        %2390 = vmatpush1.msra.mxu0 0.0
        %2391 = vmatprep.subr.mxu0 0.0
        %2392 = vmatpush1.msra.mxu0 0.0
        %2393 = vmatprep.subr.mxu0 0.0
        %2394 = vmatpush1.msra.mxu0 0.0
        %2395 = vmatprep.subr.mxu0 0.0
        %2396 = vmatpush1.msra.mxu0 0.0
        %2397 = vmatprep.subr.mxu0 0.0
        %2398 = vmatpush1.msra.mxu0 0.0
        %2399 = vmatprep.subr.mxu0 0.0
        %2400 = vmatpush1.msra.mxu0 0.0
        %2401 = vmatprep.subr.mxu0 0.0
        %2402 = vmatpush1.msra.mxu0 0.0
        %2403 = vmatprep.subr.mxu0 0.0
        %2404 = vmatpush1.msra.mxu0 0.0
        %2405 = vmatprep.subr.mxu0 0.0
        %2406 = vmatpush1.msra.mxu0 0.0
        %2407 = vmatprep.subr.mxu0 0.0
        %2408 = vmatpush1.msra.mxu0 0.0
        %2409 = vmatprep.subr.mxu0 0.0
        %2410 = vmatpush1.msra.mxu0 0.0
        %2411 = vmatprep.subr.mxu0 0.0
        %2412 = vmatpush1.msra.mxu0 %v2382
        %2413 = vmatprep.subr.mxu0 0.0
        %2414 = vmatpush1.msra.mxu0 %v2381
        %2415 = vmatprep.subr.mxu0 0.0
        %2416 = vmatpush1.msra.mxu0 %v2380
        %2417 = vmatprep.subr.mxu0 0.0
        %2418 = vmatpush1.msra.mxu0 %v2379
        %2419 = vmatprep.subr.mxu0 0.0
        %2420 = vmatpush2.msra.mxu0 0.0
        %2421 = vmatprep.subr.mxu0 0.0
        %2422 = vmatpush2.msra.mxu0 0.0
        %2423 = vmatprep.subr.mxu0 0.0
        %2424 = vmatpush2.msra.mxu0 0.0
        %2425 = vmatprep.subr.mxu0 0.0
        %2426 = vmatpush2.msra.mxu0 0.0
        %2427 = vmatprep.subr.mxu0 0.0
        %2428 = vmatpush2.msra.mxu0 0.0
        %2429 = vmatprep.subr.mxu0 0.0
        %2430 = vmatpush2.msra.mxu0 0.0
        %2431 = vmatprep.subr.mxu0 0.0
        %2432 = vmatpush2.msra.mxu0 0.0
        %2433 = vmatprep.subr.mxu0 0.0
        %2434 = vmatpush2.msra.mxu0 0.0
        %2435 = vmatprep.subr.mxu0 0.0
        %2436 = vmatpush2.msra.mxu0 0.0
        %2437 = vmatprep.subr.mxu0 0.0
        %2438 = vmatpush2.msra.mxu0 0.0
        %2439 = vmatprep.subr.mxu0 0.0
        %2440 = vmatpush2.msra.mxu0 0.0
        %2441 = vmatprep.subr.mxu0 0.0
        %2442 = vmatpush2.msra.mxu0 0.0
        %2443 = vmatprep.subr.mxu0 0.0
        %2444 = vmatpush2.msra.mxu0 0.0
        %2445 = vmatprep.subr.mxu0 0.0
        %2446 = vmatpush2.msra.mxu0 0.0
        %2447 = vmatprep.subr.mxu0 0.0
        %2448 = vmatpush2.msra.mxu0 0.0
        %2449 = vmatprep.subr.mxu0 0.0
        %2450 = vmatpush2.msra.mxu0 0.0
        %2451 = vmatprep.mubr.f32.mxu0 0.0
        %2452 = vmatmul.mubr.f32.gmra.mxu0 %v2385
        %v2453 = vpop.f32.mrf.mxu0
        %v2454 = vadd.f32 %v2383, %v2453
        %v2455 = vpop.f32.mrf.mxu0
        %2456 = vdwg.mxu0
        %v2457 = vld [vmem:[#allocation26] sm:$0xff]
        %v2458 = vld [vmem:[#allocation26 + $0x8] sm:$0xff]
        %v2459 = vld [vmem:[#allocation26 + $0x10] sm:$0xff]
        %v2460 = vld [vmem:[#allocation26 + $0x18] sm:$0xff]
        %v2461 = vld [vmem:[#allocation28] sm:$0x1]
        %2462 = vmatprep.subr.mxu0 0.0
        %2463 = vmatpush1.msra.mxu0 0.0
        %2464 = vmatprep.subr.mxu0 0.0
        %2465 = vmatpush1.msra.mxu0 0.0
        %2466 = vmatprep.subr.mxu0 0.0
        %2467 = vmatpush1.msra.mxu0 0.0
        %2468 = vmatprep.subr.mxu0 0.0
        %2469 = vmatpush1.msra.mxu0 0.0
        %2470 = vmatprep.subr.mxu0 0.0
        %2471 = vmatpush1.msra.mxu0 0.0
        %2472 = vmatprep.subr.mxu0 0.0
        %2473 = vmatpush1.msra.mxu0 0.0
        %2474 = vmatprep.subr.mxu0 0.0
        %2475 = vmatpush1.msra.mxu0 0.0
        %2476 = vmatprep.subr.mxu0 0.0
        %2477 = vmatpush1.msra.mxu0 0.0
        %2478 = vmatprep.subr.mxu0 0.0
        %2479 = vmatpush1.msra.mxu0 0.0
        %2480 = vmatprep.subr.mxu0 0.0
        %2481 = vmatpush1.msra.mxu0 0.0
        %2482 = vmatprep.subr.mxu0 0.0
        %2483 = vmatpush1.msra.mxu0 0.0
        %2484 = vmatprep.subr.mxu0 0.0
        %2485 = vmatpush1.msra.mxu0 0.0
        %2486 = vmatprep.subr.mxu0 0.0
        %2487 = vmatpush1.msra.mxu0 %v2460
        %2488 = vmatprep.subr.mxu0 0.0
        %2489 = vmatpush1.msra.mxu0 %v2459
        %2490 = vmatprep.subr.mxu0 0.0
        %2491 = vmatpush1.msra.mxu0 %v2458
        %2492 = vmatprep.subr.mxu0 0.0
        %2493 = vmatpush1.msra.mxu0 %v2457
        %2494 = vmatprep.subr.mxu0 0.0
        %2495 = vmatpush2.msra.mxu0 0.0
        %2496 = vmatprep.subr.mxu0 0.0
        %2497 = vmatpush2.msra.mxu0 0.0
        %2498 = vmatprep.subr.mxu0 0.0
        %2499 = vmatpush2.msra.mxu0 0.0
        %2500 = vmatprep.subr.mxu0 0.0
        %2501 = vmatpush2.msra.mxu0 0.0
        %2502 = vmatprep.subr.mxu0 0.0
        %2503 = vmatpush2.msra.mxu0 0.0
        %2504 = vmatprep.subr.mxu0 0.0
        %2505 = vmatpush2.msra.mxu0 0.0
        %2506 = vmatprep.subr.mxu0 0.0
        %2507 = vmatpush2.msra.mxu0 0.0
        %2508 = vmatprep.subr.mxu0 0.0
        %2509 = vmatpush2.msra.mxu0 0.0
        %2510 = vmatprep.subr.mxu0 0.0
        %2511 = vmatpush2.msra.mxu0 0.0
        %2512 = vmatprep.subr.mxu0 0.0
        %2513 = vmatpush2.msra.mxu0 0.0
        %2514 = vmatprep.subr.mxu0 0.0
        %2515 = vmatpush2.msra.mxu0 0.0
        %2516 = vmatprep.subr.mxu0 0.0
        %2517 = vmatpush2.msra.mxu0 0.0
        %2518 = vmatprep.subr.mxu0 0.0
        %2519 = vmatpush2.msra.mxu0 0.0
        %2520 = vmatprep.subr.mxu0 0.0
        %2521 = vmatpush2.msra.mxu0 0.0
        %2522 = vmatprep.subr.mxu0 0.0
        %2523 = vmatpush2.msra.mxu0 0.0
        %2524 = vmatprep.subr.mxu0 0.0
        %2525 = vmatpush2.msra.mxu0 0.0
        %2526 = vmatprep.mubr.f32.mxu0 0.0
        %2527 = vmatmul.mubr.f32.gmra.mxu0 %v2385
        %v2528 = vpop.f32.mrf.mxu0
        %v2529 = vadd.f32 %v2461, %v2528
        %v2530 = vpop.f32.mrf.mxu0
        %2531 = vdwg.mxu0
        %v2532 = vxor.u32 %v2529, 2147483648
        %v2533 = vmul.f32 %v2532, 1.442695
        %v2534 = vpow.pop %v2533
        %v2535 = vadd.f32 %v2534, 1.0
        %v2536 = vrcp.pop %v2535
        %v2537 = vmul.f32 1.0, %v2536
        %v2538 = vmul.f32 %v2537, 0.9
        %v2539 = vadd.f32 %v2538, 0.1
        %v2540 = vmul.f32 %v2539, %v1440
        %v2541 = vadd.f32 %v2454, %v2540
        %2543 = vrot.lane.b32.xlu0 %v2539, 32
        %v2544 = vpop.permute.xlu0 %2543
        %v2546 = vsel %vm1619, %v2454, %v2544
        %vm2547 = vcmask 516096
        %2548 = vst.msk [vmem:[%s1417] sm:$0x1] %vm2547, %v2546
        %v2549 = vld [vmem:[#allocation29] sm:$0x3]
        %v2550 = vld [vmem:[#allocation31] sm:$0xff]
        %v2551 = vld [vmem:[#allocation31 + $0x8] sm:$0xff]
        %v2552 = vld [vmem:[#allocation31 + $0x10] sm:$0xff]
        %v2553 = vld [vmem:[#allocation31 + $0x18] sm:$0xff]
        %v2555 = vsel %vm1619, %v1957, 0
        %v2558 = vsel %vm1619, %v1962, 0
        %2560 = vmatprep.subr.mxu0 0.0
        %2561 = vmatpush1.msra.mxu0 0.0
        %2562 = vmatprep.subr.mxu0 0.0
        %2563 = vmatpush1.msra.mxu0 0.0
        %2564 = vmatprep.subr.mxu0 0.0
        %2565 = vmatpush1.msra.mxu0 0.0
        %2566 = vmatprep.subr.mxu0 0.0
        %2567 = vmatpush1.msra.mxu0 0.0
        %2568 = vmatprep.subr.mxu0 0.0
        %2569 = vmatpush1.msra.mxu0 0.0
        %2570 = vmatprep.subr.mxu0 0.0
        %2571 = vmatpush1.msra.mxu0 0.0
        %2572 = vmatprep.subr.mxu0 0.0
        %2573 = vmatpush1.msra.mxu0 0.0
        %2574 = vmatprep.subr.mxu0 0.0
        %2575 = vmatpush1.msra.mxu0 0.0
        %2576 = vmatprep.subr.mxu0 0.0
        %2577 = vmatpush1.msra.mxu0 0.0
        %2578 = vmatprep.subr.mxu0 0.0
        %2579 = vmatpush1.msra.mxu0 0.0
        %2580 = vmatprep.subr.mxu0 0.0
        %2581 = vmatpush1.msra.mxu0 0.0
        %2582 = vmatprep.subr.mxu0 0.0
        %2583 = vmatpush1.msra.mxu0 0.0
        %2584 = vmatprep.subr.mxu0 0.0
        %2585 = vmatpush1.msra.mxu0 %v2553
        %2586 = vmatprep.subr.mxu0 0.0
        %2587 = vmatpush1.msra.mxu0 %v2552
        %2588 = vmatprep.subr.mxu0 0.0
        %2589 = vmatpush1.msra.mxu0 %v2551
        %2590 = vmatprep.subr.mxu0 0.0
        %2591 = vmatpush1.msra.mxu0 %v2550
        %2592 = vmatprep.subr.mxu0 0.0
        %2593 = vmatpush2.msra.mxu0 0.0
        %2594 = vmatprep.subr.mxu0 0.0
        %2595 = vmatpush2.msra.mxu0 0.0
        %2596 = vmatprep.subr.mxu0 0.0
        %2597 = vmatpush2.msra.mxu0 0.0
        %2598 = vmatprep.subr.mxu0 0.0
        %2599 = vmatpush2.msra.mxu0 0.0
        %2600 = vmatprep.subr.mxu0 0.0
        %2601 = vmatpush2.msra.mxu0 0.0
        %2602 = vmatprep.subr.mxu0 0.0
        %2603 = vmatpush2.msra.mxu0 0.0
        %2604 = vmatprep.subr.mxu0 0.0
        %2605 = vmatpush2.msra.mxu0 0.0
        %2606 = vmatprep.subr.mxu0 0.0
        %2607 = vmatpush2.msra.mxu0 0.0
        %2608 = vmatprep.subr.mxu0 0.0
        %2609 = vmatpush2.msra.mxu0 0.0
        %2610 = vmatprep.subr.mxu0 0.0
        %2611 = vmatpush2.msra.mxu0 0.0
        %2612 = vmatprep.subr.mxu0 0.0
        %2613 = vmatpush2.msra.mxu0 0.0
        %2614 = vmatprep.subr.mxu0 0.0
        %2615 = vmatpush2.msra.mxu0 0.0
        %2616 = vmatprep.subr.mxu0 0.0
        %2617 = vmatpush2.msra.mxu0 0.0
        %2618 = vmatprep.subr.mxu0 0.0
        %2619 = vmatpush2.msra.mxu0 0.0
        %2620 = vmatprep.subr.mxu0 0.0
        %2621 = vmatpush2.msra.mxu0 0.0
        %2622 = vmatprep.subr.mxu0 0.0
        %2623 = vmatpush2.msra.mxu0 0.0
        %2624 = vmatprep.mubr.f32.mxu0 0.0
        %2625 = vmatmul.mubr.f32.gmra.mxu0 %v2555
        %v2626 = vpop.f32.mrf.mxu0
        %v2627 = vadd.f32 0.0, %v2626
        %v2628 = vpop.f32.mrf.mxu0
        %2629 = vmatprep.mubr.f32.mxu0 0.0
        %2630 = vmatmul.mubr.f32.gmra.mxu0 %v2558
        %v2631 = vpop.f32.mrf.mxu0
        %v2632 = vadd.f32 0.0, %v2631
        %v2633 = vpop.f32.mrf.mxu0
        %2634 = vdwg.mxu0
        %v2636 = vsel %vm1525, %v2549, 0
        %2638 = vmatprep.subr.mxu0 0.0
        %2639 = vmatpush1.msra.mxu0 0.0
        %2640 = vmatprep.subr.mxu0 0.0
        %2641 = vmatpush1.msra.mxu0 0.0
        %2642 = vmatprep.subr.mxu0 0.0
        %2643 = vmatpush1.msra.mxu0 0.0
        %2644 = vmatprep.subr.mxu0 0.0
        %2645 = vmatpush1.msra.mxu0 0.0
        %2646 = vmatprep.subr.mxu0 0.0
        %2647 = vmatpush1.msra.mxu0 0.0
        %2648 = vmatprep.subr.mxu0 0.0
        %2649 = vmatpush1.msra.mxu0 0.0
        %2650 = vmatprep.subr.mxu0 0.0
        %2651 = vmatpush1.msra.mxu0 0.0
        %2652 = vmatprep.subr.mxu0 0.0
        %2653 = vmatpush1.msra.mxu0 0.0
        %2654 = vmatprep.subr.mxu0 0.0
        %2655 = vmatpush1.msra.mxu0 0.0
        %2656 = vmatprep.subr.mxu0 0.0
        %2657 = vmatpush1.msra.mxu0 0.0
        %2658 = vmatprep.subr.mxu0 0.0
        %2659 = vmatpush1.msra.mxu0 0.0
        %2660 = vmatprep.subr.mxu0 0.0
        %2661 = vmatpush1.msra.mxu0 0.0
        %2662 = vmatprep.subr.mxu0 0.0
        %2663 = vmatpush1.msra.mxu0 0.0
        %2664 = vmatprep.subr.mxu0 0.0
        %2665 = vmatpush1.msra.mxu0 0.0
        %2666 = vmatprep.subr.mxu0 0.0
        %2667 = vmatpush1.msra.mxu0 0.0
        %2668 = vmatprep.subr.mxu0 0.0
        %2669 = vmatpush1.msra.mxu0 %v2636
        %2670 = vmatprep.subr.mxu0 0.0
        %2671 = vmatpush2.msra.mxu0 0.0
        %2672 = vmatprep.subr.mxu0 0.0
        %2673 = vmatpush2.msra.mxu0 0.0
        %2674 = vmatprep.subr.mxu0 0.0
        %2675 = vmatpush2.msra.mxu0 0.0
        %2676 = vmatprep.subr.mxu0 0.0
        %2677 = vmatpush2.msra.mxu0 0.0
        %2678 = vmatprep.subr.mxu0 0.0
        %2679 = vmatpush2.msra.mxu0 0.0
        %2680 = vmatprep.subr.mxu0 0.0
        %2681 = vmatpush2.msra.mxu0 0.0
        %2682 = vmatprep.subr.mxu0 0.0
        %2683 = vmatpush2.msra.mxu0 0.0
        %2684 = vmatprep.subr.mxu0 0.0
        %2685 = vmatpush2.msra.mxu0 0.0
        %2686 = vmatprep.subr.mxu0 0.0
        %2687 = vmatpush2.msra.mxu0 0.0
        %2688 = vmatprep.subr.mxu0 0.0
        %2689 = vmatpush2.msra.mxu0 0.0
        %2690 = vmatprep.subr.mxu0 0.0
        %2691 = vmatpush2.msra.mxu0 0.0
        %2692 = vmatprep.subr.mxu0 0.0
        %2693 = vmatpush2.msra.mxu0 0.0
        %2694 = vmatprep.subr.mxu0 0.0
        %2695 = vmatpush2.msra.mxu0 0.0
        %2696 = vmatprep.subr.mxu0 0.0
        %2697 = vmatpush2.msra.mxu0 0.0
        %2698 = vmatprep.subr.mxu0 0.0
        %2699 = vmatpush2.msra.mxu0 0.0
        %2700 = vmatprep.subr.mxu0 0.0
        %2701 = vmatpush2.msra.mxu0 0.0
        %2702 = vmatprep.mubr.f32.mxu0 0.0
        %2703 = vmatmul.mubr.f32.gmra.mxu0 %v1779
        %v2704 = vpop.f32.mrf.mxu0
        %v2705 = vadd.f32 %v2627, %v2704
        %v2706 = vpop.f32.mrf.mxu0
        %2707 = vmatprep.mubr.f32.mxu0 0.0
        %2708 = vmatmul.mubr.f32.gmra.mxu0 %v1782
        %v2709 = vpop.f32.mrf.mxu0
        %v2710 = vadd.f32 %v2632, %v2709
        %v2711 = vpop.f32.mrf.mxu0
        %2712 = vdwg.mxu0
        %v2713 = vld [vmem:[#allocation32] sm:$0xff]
        %v2714 = vld [vmem:[#allocation32 + $0x8] sm:$0xff]
        %v2715 = vld [vmem:[#allocation32 + $0x10] sm:$0xff]
        %v2716 = vld [vmem:[#allocation32 + $0x18] sm:$0xff]
        %v2718 = vsel %vm1619, %v2541, 0
        %2720 = vmatprep.subr.mxu0 0.0
        %2721 = vmatpush1.msra.mxu0 0.0
        %2722 = vmatprep.subr.mxu0 0.0
        %2723 = vmatpush1.msra.mxu0 0.0
        %2724 = vmatprep.subr.mxu0 0.0
        %2725 = vmatpush1.msra.mxu0 0.0
        %2726 = vmatprep.subr.mxu0 0.0
        %2727 = vmatpush1.msra.mxu0 0.0
        %2728 = vmatprep.subr.mxu0 0.0
        %2729 = vmatpush1.msra.mxu0 0.0
        %2730 = vmatprep.subr.mxu0 0.0
        %2731 = vmatpush1.msra.mxu0 0.0
        %2732 = vmatprep.subr.mxu0 0.0
        %2733 = vmatpush1.msra.mxu0 0.0
        %2734 = vmatprep.subr.mxu0 0.0
        %2735 = vmatpush1.msra.mxu0 0.0
        %2736 = vmatprep.subr.mxu0 0.0
        %2737 = vmatpush1.msra.mxu0 0.0
        %2738 = vmatprep.subr.mxu0 0.0
        %2739 = vmatpush1.msra.mxu0 0.0
        %2740 = vmatprep.subr.mxu0 0.0
        %2741 = vmatpush1.msra.mxu0 0.0
        %2742 = vmatprep.subr.mxu0 0.0
        %2743 = vmatpush1.msra.mxu0 0.0
        %2744 = vmatprep.subr.mxu0 0.0
        %2745 = vmatpush1.msra.mxu0 %v2716
        %2746 = vmatprep.subr.mxu0 0.0
        %2747 = vmatpush1.msra.mxu0 %v2715
        %2748 = vmatprep.subr.mxu0 0.0
        %2749 = vmatpush1.msra.mxu0 %v2714
        %2750 = vmatprep.subr.mxu0 0.0
        %2751 = vmatpush1.msra.mxu0 %v2713
        %2752 = vmatprep.subr.mxu0 0.0
        %2753 = vmatpush2.msra.mxu0 0.0
        %2754 = vmatprep.subr.mxu0 0.0
        %2755 = vmatpush2.msra.mxu0 0.0
        %2756 = vmatprep.subr.mxu0 0.0
        %2757 = vmatpush2.msra.mxu0 0.0
        %2758 = vmatprep.subr.mxu0 0.0
        %2759 = vmatpush2.msra.mxu0 0.0
        %2760 = vmatprep.subr.mxu0 0.0
        %2761 = vmatpush2.msra.mxu0 0.0
        %2762 = vmatprep.subr.mxu0 0.0
        %2763 = vmatpush2.msra.mxu0 0.0
        %2764 = vmatprep.subr.mxu0 0.0
        %2765 = vmatpush2.msra.mxu0 0.0
        %2766 = vmatprep.subr.mxu0 0.0
        %2767 = vmatpush2.msra.mxu0 0.0
        %2768 = vmatprep.subr.mxu0 0.0
        %2769 = vmatpush2.msra.mxu0 0.0
        %2770 = vmatprep.subr.mxu0 0.0
        %2771 = vmatpush2.msra.mxu0 0.0
        %2772 = vmatprep.subr.mxu0 0.0
        %2773 = vmatpush2.msra.mxu0 0.0
        %2774 = vmatprep.subr.mxu0 0.0
        %2775 = vmatpush2.msra.mxu0 0.0
        %2776 = vmatprep.subr.mxu0 0.0
        %2777 = vmatpush2.msra.mxu0 0.0
        %2778 = vmatprep.subr.mxu0 0.0
        %2779 = vmatpush2.msra.mxu0 0.0
        %2780 = vmatprep.subr.mxu0 0.0
        %2781 = vmatpush2.msra.mxu0 0.0
        %2782 = vmatprep.subr.mxu0 0.0
        %2783 = vmatpush2.msra.mxu0 0.0
        %2784 = vmatprep.mubr.f32.mxu0 0.0
        %2785 = vmatmul.mubr.f32.gmra.mxu0 %v2718
        %v2786 = vpop.f32.mrf.mxu0
        %v2787 = vadd.f32 0.0, %v2786
        %v2788 = vpop.f32.mrf.mxu0
        %2789 = vdwg.mxu0
        %v2790 = vlaneseq
        %v2791 = vshrl.u32 %v2790, 7
        %v2792 = vsub.s32 0, %v2791
        %v2793 = vrot.slane %v2787, %v2792
        %v2794 = vadd.f32 %v2705, %v2793
        %v2795 = vadd.f32 %v2710, %v2793
        %v2796 = vld [vmem:[#allocation34] sm:$0x1]
        %v2798 = vlaneseq
        %v2799 = vshrl.u32 %v2798, 7
        %v2800 = vsub.s32 0, %v2799
        %v2801 = vrot.slane %v2796, %v2800
        %v2803 = vadd.f32 %v2794, %v2801
        %v2804 = vadd.f32 %v2795, %v2801
        %v2805 = vmax.f32 %v2803, 0.0
        %v2806 = vmax.f32 %v2804, 0.0
        %v2807 = vld [vmem:[#allocation35] sm:$0xff]
        %v2808 = vld [vmem:[#allocation35 + $0x8] sm:$0xff]
        %v2809 = vld [vmem:[#allocation35 + $0x10] sm:$0xff]
        %v2810 = vld [vmem:[#allocation35 + $0x18] sm:$0xff]
        %v2811 = vld [vmem:[#allocation37] sm:$0x1]
        %v2813 = vlaneseq
        %v2814 = vshrl.u32 %v2813, 7
        %v2815 = vsub.s32 0, %v2814
        %v2816 = vrot.slane %v2811, %v2815
        %v2819 = vsel %vm1619, %v2805, 0
        %v2822 = vsel %vm1619, %v2806, 0
        %2824 = vmatprep.subr.mxu0 0.0
        %2825 = vmatpush1.msra.mxu0 0.0
        %2826 = vmatprep.subr.mxu0 0.0
        %2827 = vmatpush1.msra.mxu0 0.0
        %2828 = vmatprep.subr.mxu0 0.0
        %2829 = vmatpush1.msra.mxu0 0.0
        %2830 = vmatprep.subr.mxu0 0.0
        %2831 = vmatpush1.msra.mxu0 0.0
        %2832 = vmatprep.subr.mxu0 0.0
        %2833 = vmatpush1.msra.mxu0 0.0
        %2834 = vmatprep.subr.mxu0 0.0
        %2835 = vmatpush1.msra.mxu0 0.0
        %2836 = vmatprep.subr.mxu0 0.0
        %2837 = vmatpush1.msra.mxu0 0.0
        %2838 = vmatprep.subr.mxu0 0.0
        %2839 = vmatpush1.msra.mxu0 0.0
        %2840 = vmatprep.subr.mxu0 0.0
        %2841 = vmatpush1.msra.mxu0 0.0
        %2842 = vmatprep.subr.mxu0 0.0
        %2843 = vmatpush1.msra.mxu0 0.0
        %2844 = vmatprep.subr.mxu0 0.0
        %2845 = vmatpush1.msra.mxu0 0.0
        %2846 = vmatprep.subr.mxu0 0.0
        %2847 = vmatpush1.msra.mxu0 0.0
        %2848 = vmatprep.subr.mxu0 0.0
        %2849 = vmatpush1.msra.mxu0 %v2810
        %2850 = vmatprep.subr.mxu0 0.0
        %2851 = vmatpush1.msra.mxu0 %v2809
        %2852 = vmatprep.subr.mxu0 0.0
        %2853 = vmatpush1.msra.mxu0 %v2808
        %2854 = vmatprep.subr.mxu0 0.0
        %2855 = vmatpush1.msra.mxu0 %v2807
        %2856 = vmatprep.subr.mxu0 0.0
        %2857 = vmatpush2.msra.mxu0 0.0
        %2858 = vmatprep.subr.mxu0 0.0
        %2859 = vmatpush2.msra.mxu0 0.0
        %2860 = vmatprep.subr.mxu0 0.0
        %2861 = vmatpush2.msra.mxu0 0.0
        %2862 = vmatprep.subr.mxu0 0.0
        %2863 = vmatpush2.msra.mxu0 0.0
        %2864 = vmatprep.subr.mxu0 0.0
        %2865 = vmatpush2.msra.mxu0 0.0
        %2866 = vmatprep.subr.mxu0 0.0
        %2867 = vmatpush2.msra.mxu0 0.0
        %2868 = vmatprep.subr.mxu0 0.0
        %2869 = vmatpush2.msra.mxu0 0.0
        %2870 = vmatprep.subr.mxu0 0.0
        %2871 = vmatpush2.msra.mxu0 0.0
        %2872 = vmatprep.subr.mxu0 0.0
        %2873 = vmatpush2.msra.mxu0 0.0
        %2874 = vmatprep.subr.mxu0 0.0
        %2875 = vmatpush2.msra.mxu0 0.0
        %2876 = vmatprep.subr.mxu0 0.0
        %2877 = vmatpush2.msra.mxu0 0.0
        %2878 = vmatprep.subr.mxu0 0.0
        %2879 = vmatpush2.msra.mxu0 0.0
        %2880 = vmatprep.subr.mxu0 0.0
        %2881 = vmatpush2.msra.mxu0 0.0
        %2882 = vmatprep.subr.mxu0 0.0
        %2883 = vmatpush2.msra.mxu0 0.0
        %2884 = vmatprep.subr.mxu0 0.0
        %2885 = vmatpush2.msra.mxu0 0.0
        %2886 = vmatprep.subr.mxu0 0.0
        %2887 = vmatpush2.msra.mxu0 0.0
        %2888 = vmatprep.mubr.f32.mxu0 0.0
        %2889 = vmatmul.mubr.f32.gmra.mxu0 %v2819
        %v2890 = vpop.f32.mrf.mxu0
        %v2891 = vadd.f32 %v2816, %v2890
        %v2892 = vpop.f32.mrf.mxu0
        %2893 = vmatprep.mubr.f32.mxu0 0.0
        %2894 = vmatmul.mubr.f32.gmra.mxu0 %v2822
        %v2895 = vpop.f32.mrf.mxu0
        %v2896 = vadd.f32 %v2816, %v2895
        %v2897 = vpop.f32.mrf.mxu0
        %2898 = vdwg.mxu0
        %v2899 = vmax.f32 %v2891, 0.0
        %v2900 = vmax.f32 %v2896, 0.0
        %v2901 = vld [vmem:[%s61] sm:$0xff]
        %v2902 = vld [vmem:[%s61 + $0x8] sm:$0xff]
        %v2903 = vld [vmem:[%s61 + $0x10] sm:$0xff]
        %v2904 = vld [vmem:[%s61 + $0x18] sm:$0xff]
        %v2905 = vld [vmem:[%s63] sm:$0x1]
        %v2907 = vlaneseq
        %v2908 = vshrl.u32 %v2907, 7
        %v2909 = vsub.s32 0, %v2908
        %v2910 = vrot.slane %v2905, %v2909
        %v2913 = vsel %vm1619, %v2899, 0
        %v2916 = vsel %vm1619, %v2900, 0
        %2918 = vmatprep.subr.mxu0 0.0
        %2919 = vmatpush1.msra.mxu0 0.0
        %2920 = vmatprep.subr.mxu0 0.0
        %2921 = vmatpush1.msra.mxu0 0.0
        %2922 = vmatprep.subr.mxu0 0.0
        %2923 = vmatpush1.msra.mxu0 0.0
        %2924 = vmatprep.subr.mxu0 0.0
        %2925 = vmatpush1.msra.mxu0 0.0
        %2926 = vmatprep.subr.mxu0 0.0
        %2927 = vmatpush1.msra.mxu0 0.0
        %2928 = vmatprep.subr.mxu0 0.0
        %2929 = vmatpush1.msra.mxu0 0.0
        %2930 = vmatprep.subr.mxu0 0.0
        %2931 = vmatpush1.msra.mxu0 0.0
        %2932 = vmatprep.subr.mxu0 0.0
        %2933 = vmatpush1.msra.mxu0 0.0
        %2934 = vmatprep.subr.mxu0 0.0
        %2935 = vmatpush1.msra.mxu0 0.0
        %2936 = vmatprep.subr.mxu0 0.0
        %2937 = vmatpush1.msra.mxu0 0.0
        %2938 = vmatprep.subr.mxu0 0.0
        %2939 = vmatpush1.msra.mxu0 0.0
        %2940 = vmatprep.subr.mxu0 0.0
        %2941 = vmatpush1.msra.mxu0 0.0
        %2942 = vmatprep.subr.mxu0 0.0
        %2943 = vmatpush1.msra.mxu0 %v2904
        %2944 = vmatprep.subr.mxu0 0.0
        %2945 = vmatpush1.msra.mxu0 %v2903
        %2946 = vmatprep.subr.mxu0 0.0
        %2947 = vmatpush1.msra.mxu0 %v2902
        %2948 = vmatprep.subr.mxu0 0.0
        %2949 = vmatpush1.msra.mxu0 %v2901
        %2950 = vmatprep.subr.mxu0 0.0
        %2951 = vmatpush2.msra.mxu0 0.0
        %2952 = vmatprep.subr.mxu0 0.0
        %2953 = vmatpush2.msra.mxu0 0.0
        %2954 = vmatprep.subr.mxu0 0.0
        %2955 = vmatpush2.msra.mxu0 0.0
        %2956 = vmatprep.subr.mxu0 0.0
        %2957 = vmatpush2.msra.mxu0 0.0
        %2958 = vmatprep.subr.mxu0 0.0
        %2959 = vmatpush2.msra.mxu0 0.0
        %2960 = vmatprep.subr.mxu0 0.0
        %2961 = vmatpush2.msra.mxu0 0.0
        %2962 = vmatprep.subr.mxu0 0.0
        %2963 = vmatpush2.msra.mxu0 0.0
        %2964 = vmatprep.subr.mxu0 0.0
        %2965 = vmatpush2.msra.mxu0 0.0
        %2966 = vmatprep.subr.mxu0 0.0
        %2967 = vmatpush2.msra.mxu0 0.0
        %2968 = vmatprep.subr.mxu0 0.0
        %2969 = vmatpush2.msra.mxu0 0.0
        %2970 = vmatprep.subr.mxu0 0.0
        %2971 = vmatpush2.msra.mxu0 0.0
        %2972 = vmatprep.subr.mxu0 0.0
        %2973 = vmatpush2.msra.mxu0 0.0
        %2974 = vmatprep.subr.mxu0 0.0
        %2975 = vmatpush2.msra.mxu0 0.0
        %2976 = vmatprep.subr.mxu0 0.0
        %2977 = vmatpush2.msra.mxu0 0.0
        %2978 = vmatprep.subr.mxu0 0.0
        %2979 = vmatpush2.msra.mxu0 0.0
        %2980 = vmatprep.subr.mxu0 0.0
        %2981 = vmatpush2.msra.mxu0 0.0
        %2982 = vmatprep.mubr.f32.mxu0 0.0
        %2983 = vmatmul.mubr.f32.gmra.mxu0 %v2913
        %v2984 = vpop.f32.mrf.mxu0
        %v2985 = vadd.f32 %v2910, %v2984
        %v2986 = vpop.f32.mrf.mxu0
        %2987 = vmatprep.mubr.f32.mxu0 0.0
        %2988 = vmatmul.mubr.f32.gmra.mxu0 %v2916
        %v2989 = vpop.f32.mrf.mxu0
        %v2990 = vadd.f32 %v2910, %v2989
        %v2991 = vpop.f32.mrf.mxu0
        %2992 = vdwg.mxu0
        %v2993 = vmax.f32 %v2985, 0.0
        %v2994 = vmax.f32 %v2990, 0.0
        %v2995 = vld [vmem:[%s65] sm:$0xff]
        %v2996 = vld [vmem:[%s65 + $0x8] sm:$0xff]
        %v2997 = vld [vmem:[%s65 + $0x10] sm:$0xff]
        %v2998 = vld [vmem:[%s65 + $0x18] sm:$0xff]
        %v2999 = vld [vmem:[%s67] sm:$0x1]
        %v3001 = vlaneseq
        %v3002 = vshrl.u32 %v3001, 7
        %v3003 = vsub.s32 0, %v3002
        %v3004 = vrot.slane %v2999, %v3003
        %v3007 = vsel %vm1619, %v2993, 0
        %v3010 = vsel %vm1619, %v2994, 0
        %3012 = vmatprep.subr.mxu0 0.0
        %3013 = vmatpush1.msra.mxu0 0.0
        %3014 = vmatprep.subr.mxu0 0.0
        %3015 = vmatpush1.msra.mxu0 0.0
        %3016 = vmatprep.subr.mxu0 0.0
        %3017 = vmatpush1.msra.mxu0 0.0
        %3018 = vmatprep.subr.mxu0 0.0
        %3019 = vmatpush1.msra.mxu0 0.0
        %3020 = vmatprep.subr.mxu0 0.0
        %3021 = vmatpush1.msra.mxu0 0.0
        %3022 = vmatprep.subr.mxu0 0.0
        %3023 = vmatpush1.msra.mxu0 0.0
        %3024 = vmatprep.subr.mxu0 0.0
        %3025 = vmatpush1.msra.mxu0 0.0
        %3026 = vmatprep.subr.mxu0 0.0
        %3027 = vmatpush1.msra.mxu0 0.0
        %3028 = vmatprep.subr.mxu0 0.0
        %3029 = vmatpush1.msra.mxu0 0.0
        %3030 = vmatprep.subr.mxu0 0.0
        %3031 = vmatpush1.msra.mxu0 0.0
        %3032 = vmatprep.subr.mxu0 0.0
        %3033 = vmatpush1.msra.mxu0 0.0
        %3034 = vmatprep.subr.mxu0 0.0
        %3035 = vmatpush1.msra.mxu0 0.0
        %3036 = vmatprep.subr.mxu0 0.0
        %3037 = vmatpush1.msra.mxu0 %v2998
        %3038 = vmatprep.subr.mxu0 0.0
        %3039 = vmatpush1.msra.mxu0 %v2997
        %3040 = vmatprep.subr.mxu0 0.0
        %3041 = vmatpush1.msra.mxu0 %v2996
        %3042 = vmatprep.subr.mxu0 0.0
        %3043 = vmatpush1.msra.mxu0 %v2995
        %3044 = vmatprep.subr.mxu0 0.0
        %3045 = vmatpush2.msra.mxu0 0.0
        %3046 = vmatprep.subr.mxu0 0.0
        %3047 = vmatpush2.msra.mxu0 0.0
        %3048 = vmatprep.subr.mxu0 0.0
        %3049 = vmatpush2.msra.mxu0 0.0
        %3050 = vmatprep.subr.mxu0 0.0
        %3051 = vmatpush2.msra.mxu0 0.0
        %3052 = vmatprep.subr.mxu0 0.0
        %3053 = vmatpush2.msra.mxu0 0.0
        %3054 = vmatprep.subr.mxu0 0.0
        %3055 = vmatpush2.msra.mxu0 0.0
        %3056 = vmatprep.subr.mxu0 0.0
        %3057 = vmatpush2.msra.mxu0 0.0
        %3058 = vmatprep.subr.mxu0 0.0
        %3059 = vmatpush2.msra.mxu0 0.0
        %3060 = vmatprep.subr.mxu0 0.0
        %3061 = vmatpush2.msra.mxu0 0.0
        %3062 = vmatprep.subr.mxu0 0.0
        %3063 = vmatpush2.msra.mxu0 0.0
        %3064 = vmatprep.subr.mxu0 0.0
        %3065 = vmatpush2.msra.mxu0 0.0
        %3066 = vmatprep.subr.mxu0 0.0
        %3067 = vmatpush2.msra.mxu0 0.0
        %3068 = vmatprep.subr.mxu0 0.0
        %3069 = vmatpush2.msra.mxu0 0.0
        %3070 = vmatprep.subr.mxu0 0.0
        %3071 = vmatpush2.msra.mxu0 0.0
        %3072 = vmatprep.subr.mxu0 0.0
        %3073 = vmatpush2.msra.mxu0 0.0
        %3074 = vmatprep.subr.mxu0 0.0
        %3075 = vmatpush2.msra.mxu0 0.0
        %3076 = vmatprep.mubr.f32.mxu0 0.0
        %3077 = vmatmul.mubr.f32.gmra.mxu0 %v3007
        %v3078 = vpop.f32.mrf.mxu0
        %v3079 = vadd.f32 %v3004, %v3078
        %v3080 = vpop.f32.mrf.mxu0
        %3081 = vmatprep.mubr.f32.mxu0 0.0
        %3082 = vmatmul.mubr.f32.gmra.mxu0 %v3010
        %v3083 = vpop.f32.mrf.mxu0
        %v3084 = vadd.f32 %v3004, %v3083
        %v3085 = vpop.f32.mrf.mxu0
        %3086 = vdwg.mxu0
        %v3087 = vlaneseq
        %v3088 = vand.u32 %v3087, 127
        %v3089 = vmax.f32 %v3079, 0.0
        %v3090 = vmax.f32 %v3084, 0.0
        %vm3091 = vcmp.ne.f32.partialorder %v3079, %v3079
        %vm3092 = vcmp.ne.f32.partialorder %v3084, %v3084
        %v3093 = vadd.f32 %v3079, 0.0
        %v3094 = vadd.f32 %v3084, 0.0
        %v3095 = vand.u32 2147483647, %v3079
        %v3096 = vand.u32 2147483647, %v3084
        %v3097 = vsub.f32 0.0, %v3095
        %v3098 = vsub.f32 0.0, %v3096
        %v3099 = vmul.f32 %v3097, 1.442695
        %v3100 = vpow.pop %v3099
        %v3101 = vmul.f32 %v3098, 1.442695
        %v3102 = vpow.pop %v3101
        %v3103 = vadd.f32 %v3100, 1.0
        %v3104 = vlog2.pop %v3103
        %v3105 = vmul.f32 %v3104, 0.6931472
        %v3106 = vmul.f32 -0.5, %v3100
        %v3107 = vadd.f32 %v3106, 1.0
        %v3108 = vmul.f32 %v3107, %v3100
        %v3109 = vand.u32 2147483647, %v3100
        %vm3110 = vcmp.lt.f32.partialorder %v3109, 0.0004427343
        %v3111 = vsel %vm3110, %v3108, %v3105
        %v3112 = vadd.f32 %v3102, 1.0
        %v3113 = vlog2.pop %v3112
        %v3114 = vmul.f32 %v3113, 0.6931472
        %v3115 = vmul.f32 -0.5, %v3102
        %v3116 = vadd.f32 %v3115, 1.0
        %v3117 = vmul.f32 %v3116, %v3102
        %v3118 = vand.u32 2147483647, %v3102
        %vm3119 = vcmp.lt.f32.partialorder %v3118, 0.0004427343
        %v3120 = vsel %vm3119, %v3117, %v3114
        %v3121 = vadd.f32 %v3089, %v3111
        %v3122 = vadd.f32 %v3090, %v3120
        %v3123 = vsel %vm3091, %v3093, %v3121
        %v3124 = vsel %vm3092, %v3094, %v3122
        %v3125 = vmul.f32 %v3123, 0.9
        %v3126 = vmul.f32 %v3124, 0.9
        %v3127 = vadd.f32 %v3125, 0.1
        %v3128 = vadd.f32 %v3126, 0.1
        %vm3129 = vcmp.lt.s32.totalorder %v3088, 1
        %v3130 = vsel %vm3129, %v3079, %v3127
        %v3131 = vsel %vm3129, %v3084, %v3128
        %3132 = vst.msk [vmem:[%s1435] sm:$0xff] %vm1521, %v3130
        %3133 = vst.msk [vmem:[%s1435 + $0x8] sm:$0xff] %vm1521, %v3131
        %p3134 = scmp.lt.s32.totalorder %s100, 1
        %s3135 = scalar_select %p3134, %s100, 1
        %s3136 = smul.addr %s3135, 2
        %s3137 = smul.addr %s3136, 8
        %s3138 = scalar_lea.vmem %s69, %s3137
        %s3139 = sand.u32 %s868, 1
        %s3140 = scalar_lea.sflag [#allocation4], %s3139
        %s3141 = sand.u32 %s868, 1
        %s3142 = scalar_lea.vmem [#allocation38], %s3141
        // Predicated region
        $region249: #{tpu_custom_call.1} parent=155 // pred_check
          %p3143 = pneg %p852
        $region250: #{tpu_custom_call.1} parent=155 // pred_check_branch
          %3145 = sbr.rel (%p3143) target = $region252
        $region251: #{tpu_custom_call.1} parent=155 // pred_region
          _
        $region252: #{tpu_custom_call.1} parent=155 // pred_fallthru
          _
        // Predicated region
        $region253: #{tpu_custom_call.1} parent=155 // pred_check
          %p3146 = pneg %p878
        $region254: #{tpu_custom_call.1} parent=155 // pred_check_branch
          %3148 = sbr.rel (%p3146) target = $region256
        $region255: #{tpu_custom_call.1} parent=155 // pred_region
          %s3150 = ssub.s32 16, 16
          %3151 = vsyncadd %s3140, %s3150
          %s3152 = smul.addr %s100, 16
          %s3153 = scalar_lea.hbm %s71, %s3152
          %s3155 = sshll.u32 %s3142, 4
          %s3156 = int_to_ptr.vmem [resolvable:$true] %s3155
          %3158 = dma.vmem_to_hbm [thread:$0]  %s3156, 16, %s3153, %s3140
        $region256: #{tpu_custom_call.1} parent=155 // pred_fallthru
          _
      $region156: #{tpu_custom_call.1} parent=5 // pred_fallthru
        _
      %p3159 = scmp.le.s32.totalorder 2, %s95
      // Predicated region
      $region257: #{tpu_custom_call.1} parent=5 // pred_check
        %p3160 = pneg %p3159
      $region258: #{tpu_custom_call.1} parent=5 // pred_check_branch
        %3162 = sbr.rel (%p3160) target = $region260
      $region259: #{tpu_custom_call.1} parent=5 // pred_region
        %s3163 = ssub.s32 %s95, 2
        // Predicated region
        $region261: #{tpu_custom_call.1} parent=259 // pred_check
          %p3164 = pneg %p858
        $region262: #{tpu_custom_call.1} parent=259 // pred_check_branch
          %3166 = sbr.rel (%p3164) target = $region264
        $region263: #{tpu_custom_call.1} parent=259 // pred_region
          %p3167 = scmp.lt.s32.totalorder %s101, 1
          %s3168 = scalar_select %p3167, %s101, 1
          %s3169 = smul.addr %s3168, 2
          %s3170 = smul.addr %s3169, 8
          %s3171 = scalar_lea.vmem %s69, %s3170
        $region264: #{tpu_custom_call.1} parent=259 // pred_fallthru
          _
        // Predicated region
        $region265: #{tpu_custom_call.1} parent=259 // pred_check
          %p3172 = pneg %p884
        $region266: #{tpu_custom_call.1} parent=259 // pred_check_branch
          %3174 = sbr.rel (%p3172) target = $region268
        $region267: #{tpu_custom_call.1} parent=259 // pred_region
          %s3175 = sand.u32 %s869, 1
          %s3176 = scalar_lea.sflag [#allocation4], %s3175
          %s3177 = sand.u32 %s869, 1
          %s3178 = scalar_lea.vmem [#allocation38], %s3177
          %3179 = dma.done %s3176, 16
        $region268: #{tpu_custom_call.1} parent=259 // pred_fallthru
          _
      $region260: #{tpu_custom_call.1} parent=5 // pred_fallthru
        _
    $region6: #{tpu_custom_call.1} parent=1 // loop_footer
      %s99 = sadd.s32 1, %s95
    $region7: #{tpu_custom_call.1} parent=1 // loop_footer_branch
      %94 = sbr.rel target = $region3
    $region8: #{tpu_custom_call.1} parent=1 // loop_exit
      _
    %3180 = vsyncpa [#allocation3], 1
    %s3181 = scalar_lea.sflag [#allocation3], 1
    %3182 = vsyncpa %s3181, 1
    %3183 = vsyncpa [#allocation6], 1
    %3184 = vsyncpa [#allocation9], 1
    %3185 = vsyncpa [#allocation12], 1
    %3186 = vsyncpa [#allocation15], 1
    %3187 = vsyncpa [#allocation18], 1
    %3188 = vsyncpa [#allocation21], 1
    %3189 = vsyncpa [#allocation24], 1
    %3190 = vsyncpa [#allocation27], 1
    %3191 = vsyncpa [#allocation30], 1
    %3192 = vsyncpa [#allocation33], 1
    %3193 = vsyncpa [#allocation36], 1
    %3194 = vsyncpa [#allocation4], 1
    %s3195 = scalar_lea.sflag [#allocation4], 1
    %3196 = vsyncpa %s3195, 1

</llo_original>
